<compile_context>
chip_gen: v7x
topology: tpu7x:2x2x1
jax: 0.10.0
libtpu: 0.0.40
codegen_flags: <defaults>
</compile_context>

<pallas_src>
import jax
import jax.numpy as jnp
from jax.experimental import pallas as pl
from jax.experimental.pallas import tpu as pltpu


def _round_up(x: int, m: int) -> int:
    return (x + m - 1) // m * m


def _vmem_limit(block_bytes: int) -> int:
    # Headroom over the (double-buffered) working set; never exceeds 64 MiB so
    # the same setting is safe on v5e/v6e (128 MiB physical) and v7x (64 MiB).
    return int(min(max(3 * int(block_bytes), 32 * 1024 * 1024), 64 * 1024 * 1024))


def conv_block_forward(x, weight, bias, gamma, beta, *, stride=1, padding=1,
                       eps=1e-5):
    """Conv2d(+bias) -> BatchNorm2d (train-mode batch stats) -> ReLU.

    x:      (N, Cin, H, W)  NCHW (PyTorch convention)
    weight: (Cout, Cin, KH, KW)
    bias, gamma, beta: (Cout,)
    returns (N, Cout, OH, OW) NCHW
    """
    if stride != 1:
        # TODO(synk): stride > 1 (phase-decomposed input / strided taps) is not
        # implemented in the fused Pallas path; only stride == 1 is supported.
        raise NotImplementedError("Pallas ConvBlock path supports stride == 1 only")
    # TODO(synk): the ConvTranspose2d (transpose=True) branch has no Pallas path here.

    N, Cin, H, W = x.shape
    Cout, Cin_w, KH, KW = weight.shape
    assert Cin_w == Cin
    OH = (H + 2 * padding - KH) // stride + 1
    OW = (W + 2 * padding - KW) // stride + 1
    HP, WP = H + 2 * padding, W + 2 * padding

    CinP = _round_up(Cin, 8)       # sublane-friendly contraction dim
    CoutP = _round_up(Cout, 128)   # lane-dense output channels (unmasked stores)

    # ---- wrapper-side layout plumbing only (no in-kernel transposes) ----
    x_nhwc = jnp.transpose(x, (0, 2, 3, 1)).astype(jnp.float32)
    x_pad = jnp.pad(
        x_nhwc,
        ((0, 0), (padding, padding), (padding, padding), (0, CinP - Cin)),
    ).astype(jnp.bfloat16)         # bf16 MXU feed; accumulation stays f32

    w_t = jnp.transpose(weight.astype(jnp.float32), (2, 3, 1, 0))  # (KH,KW,Cin,Cout)
    w_t = jnp.pad(w_t, ((0, 0), (0, 0), (0, CinP - Cin), (0, CoutP - Cout)))
    w_mat = w_t.reshape(KH * KW, CinP, CoutP).astype(jnp.bfloat16)
    b_pad = jnp.pad(bias.astype(jnp.float32), (0, CoutP - Cout)).reshape(1, CoutP)

    # Output-row tile per grid step (must divide OH so no garbage rows hit the stats).
    TOH = next(t for t in (64, 32, 16, 8, 4, 2, 1) if OH % t == 0)
    NT = OH // TOH
    MT = TOH * OW                  # GEMM rows per tile

    # ---------- kernel 1: conv GEMM (taps unrolled) + partial BN statistics ----------
    def conv_stats_kernel(x_ref, w_ref, b_ref, y_ref, st_ref, acc_ref):
        # x_ref : (1, HP, WP, CinP)  bf16  full padded image, resident across t
        # w_ref : (KH*KW, CinP, CoutP) bf16  resident across the whole grid
        # b_ref : (1, CoutP) f32
        # y_ref : (1, TOH, OW, CoutP) f32   conv(+bias) output tile
        # st_ref: (1, 1, 2, CoutP) f32      per-tile [sum, sum_sq]
        # acc_ref: (MT, CoutP) f32 VMEM accumulator
        t = pl.program_id(1)
        row0 = t * TOH
        acc_ref[...] = jnp.zeros_like(acc_ref)
        for kh in range(KH):        # KH*KW accumulating bf16 MXU dots, f32 acc
            for kw in range(KW):
                patch = x_ref[0, pl.ds(row0 + kh, TOH), pl.ds(kw, OW), :]
                lhs = patch.reshape(MT, CinP)
                acc_ref[...] += jnp.dot(
                    lhs, w_ref[kh * KW + kw],
                    preferred_element_type=jnp.float32)
        y = acc_ref[...] + b_ref[...]                       # f32 epilogue
        y_ref[...] = y.reshape(1, TOH, OW, CoutP).astype(y_ref.dtype)
        s1 = jnp.sum(y, axis=0, keepdims=True)              # (1, CoutP)
        s2 = jnp.sum(y * y, axis=0, keepdims=True)          # (1, CoutP)
        st_ref[...] = jnp.concatenate([s1, s2], axis=0).reshape(1, 1, 2, CoutP)

    blk_a_bytes = (
        2 * (HP * WP * CinP * 2)        # double-buffered bf16 image block
        + KH * KW * CinP * CoutP * 2    # resident bf16 weights
        + 2 * (TOH * OW * CoutP * 4)    # double-buffered f32 y tile
        + MT * CoutP * 4                # f32 accumulator
        + 8 * CoutP * 4                 # bias + stats tiles
    )
    y_full, stats = pl.pallas_call(
        conv_stats_kernel,
        out_shape=(
            jax.ShapeDtypeStruct((N, OH, OW, CoutP), jnp.float32),
            jax.ShapeDtypeStruct((N, NT, 2, CoutP), jnp.float32),
        ),
        grid_spec=pltpu.PrefetchScalarGridSpec(
            num_scalar_prefetch=0,
            grid=(N, NT),
            in_specs=[
                pl.BlockSpec((1, HP, WP, CinP), lambda n, t: (n, 0, 0, 0)),
                pl.BlockSpec((KH * KW, CinP, CoutP), lambda n, t: (0, 0, 0)),
                pl.BlockSpec((1, CoutP), lambda n, t: (0, 0)),
            ],
            out_specs=(
                pl.BlockSpec((1, TOH, OW, CoutP), lambda n, t: (n, t, 0, 0)),
                pl.BlockSpec((1, 1, 2, CoutP), lambda n, t: (n, t, 0, 0)),
            ),
            scratch_shapes=[pltpu.VMEM((MT, CoutP), jnp.float32)],
        ),
        compiler_params=pltpu.CompilerParams(
            dimension_semantics=("parallel", "parallel"),   # shards over v7x's 2 TCs
            vmem_limit_bytes=_vmem_limit(blk_a_bytes),
        ),
    )(x_pad, w_mat, b_pad)

    # ---- tiny global reduction of per-tile stats (biased variance, torch train mode) ----
    M = N * OH * OW
    tot = jnp.sum(stats, axis=(0, 1))                        # (2, CoutP) f32
    mean = tot[0] / float(M)
    var = jnp.maximum(tot[1] / float(M) - mean * mean, 0.0)  # clamp before rsqrt
    gamma_p = jnp.pad(gamma.astype(jnp.float32), (0, CoutP - Cout))
    beta_p = jnp.pad(beta.astype(jnp.float32), (0, CoutP - Cout))
    params = jnp.stack([mean, var, gamma_p, beta_p], axis=0)  # (4, CoutP)

    # ---------- kernel 2: normalize * gamma + beta, ReLU (flat, lane-dense, mem-bound) ----------
    TM = 512 if M >= 512 else _round_up(M, 8)
    MP = _round_up(M, TM)
    y2 = y_full.reshape(M, CoutP)
    if MP != M:
        y2 = jnp.pad(y2, ((0, MP - M), (0, 0)))

    def bn_relu_kernel(y_ref, p_ref, o_ref):
        mean_v = p_ref[0:1, :]
        var_v = p_ref[1:2, :]
        g_v = p_ref[2:3, :]
        b_v = p_ref[3:4, :]
        inv_std = jax.lax.rsqrt(var_v + eps)    # EUP rsqrt (otherwise-idle slot)
        scale = g_v * inv_std
        shift = b_v - mean_v * scale
        o_ref[...] = jnp.maximum(y_ref[...] * scale + shift, 0.0).astype(o_ref.dtype)

    blk_b_bytes = 4 * (TM * CoutP * 4) + 4 * CoutP * 4
    out_flat = pl.pallas_call(
        bn_relu_kernel,
        out_shape=jax.ShapeDtypeStruct((MP, CoutP), x.dtype),
        grid_spec=pltpu.PrefetchScalarGridSpec(
            num_scalar_prefetch=0,
            grid=(MP // TM,),
            in_specs=[
                pl.BlockSpec((TM, CoutP), lambda i: (i, 0)),
                pl.BlockSpec((4, CoutP), lambda i: (0, 0)),
            ],
            out_specs=pl.BlockSpec((TM, CoutP), lambda i: (i, 0)),
        ),
        compiler_params=pltpu.CompilerParams(
            dimension_semantics=("parallel",),
            vmem_limit_bytes=_vmem_limit(blk_b_bytes),
        ),
    )(y2, params)

    out = out_flat[:M, :Cout].reshape(N, OH, OW, Cout)
    return jnp.transpose(out, (0, 3, 1, 2))   # back to NCHW


def _reference(x, weight, bias, gamma, beta, *, stride, padding, eps=1e-5):
    """Pure-JAX reference with the same bf16 operand quantization."""
    y = jax.lax.conv_general_dilated(
        x.astype(jnp.bfloat16), weight.astype(jnp.bfloat16),
        window_strides=(stride, stride),
        padding=[(padding, padding), (padding, padding)],
        dimension_numbers=("NCHW", "OIHW", "NCHW"),
        preferred_element_type=jnp.float32)
    y = y + bias.astype(jnp.float32)[None, :, None, None]
    mean = jnp.mean(y, axis=(0, 2, 3), keepdims=True)
    var = jnp.mean((y - mean) ** 2, axis=(0, 2, 3), keepdims=True)  # biased, torch-style
    yhat = (y - mean) * jax.lax.rsqrt(var + eps)
    out = yhat * gamma[None, :, None, None] + beta[None, :, None, None]
    return jnp.maximum(out, 0.0).astype(x.dtype)


if __name__ == "__main__":
    key = jax.random.PRNGKey(0)
    kx, kw, kb, kg, kbt = jax.random.split(key, 5)

    N, Cin, H, W = 2, 4, 16, 16
    Cout, ksize, stride, padding = 8, 3, 1, 1

    x = jax.random.normal(kx, (N, Cin, H, W), dtype=jnp.float32)
    weight = 0.2 * jax.random.normal(kw, (Cout, Cin, ksize, ksize), dtype=jnp.float32)
    bias = 0.1 * jax.random.normal(kb, (Cout,), dtype=jnp.float32)
    gamma = 1.0 + 0.3 * jax.random.normal(kg, (Cout,), dtype=jnp.float32)
    beta = 0.1 * jax.random.normal(kbt, (Cout,), dtype=jnp.float32)

    out = conv_block_forward(x, weight, bias, gamma, beta,
                             stride=stride, padding=padding)
    out = jax.block_until_ready(out)

    ref = jax.block_until_ready(
        _reference(x, weight, bias, gamma, beta, stride=stride, padding=padding))

    assert out.shape == ref.shape == (N, Cout, H, W), (out.shape, ref.shape)
    if not bool(jnp.allclose(out, ref, atol=2e-2, rtol=2e-2)):
        max_err = float(jnp.max(jnp.abs(out - ref)))
        raise AssertionError(f"Pallas ConvBlock mismatch, max abs err = {max_err}")
    print("KERNEL_OK")
</pallas_src>

<mosaic_0001>
module attributes {stable_mosaic.version = 11 : i64} {
  func.func @conv_stats_kernel(%arg0: i32, %arg1: i32, %arg2: memref<1x18x18x8xbf16, #tpu.memory_space<vmem>>, %arg3: memref<9x8x128xbf16, #tpu.memory_space<vmem>>, %arg4: memref<1x128xf32, #tpu.memory_space<vmem>>, %arg5: memref<1x16x16x128xf32, #tpu.memory_space<vmem>>, %arg6: memref<1x1x2x128xf32, #tpu.memory_space<vmem>>, %arg7: memref<256x128xf32, #tpu.memory_space<vmem>>) attributes {dimension_semantics = [#tpu.dimension_semantics<parallel>, #tpu.dimension_semantics<parallel>], iteration_bounds = array<i64: 2, 1>, scalar_prefetch = 0 : i64, scratch_operands = 1 : i64, tpu.core_type = #tpu.core_type<tc>, window_params = [{transform_indices = @transform_0, window_bounds = array<i64: 1, 18, 18, 8>}, {pipeline_mode = #tpu.pipeline_mode<synchronous>, transform_indices = @transform_1, window_bounds = array<i64: 9, 8, 128>}, {pipeline_mode = #tpu.pipeline_mode<synchronous>, transform_indices = @transform_2, window_bounds = array<i64: 1, 128>}, {transform_indices = @transform_3, window_bounds = array<i64: 1, 16, 16, 128>}, {transform_indices = @transform_4, window_bounds = array<i64: 1, 1, 2, 128>}]} {
    %c16_i32 = arith.constant 16 : i32
    %0 = arith.muli %arg1, %c16_i32 : i32
    %cst = arith.constant 0.000000e+00 : f32
    %1 = vector.broadcast %cst : f32 to vector<256x128xf32>
    %c0 = arith.constant 0 : index
    %c0_0 = arith.constant 0 : index
    %2 = vector.load %arg7[%c0, %c0_0] : memref<256x128xf32, #tpu.memory_space<vmem>>, vector<256x128xf32>
    tpu.vector_store %arg7[%c0, %c0_0], %1 {strides = array<i32>} : memref<256x128xf32, #tpu.memory_space<vmem>>, vector<256x128xf32>,
    %c0_i32 = arith.constant 0 : i32
    %3 = arith.addi %0, %c0_i32 : i32
    %c0_1 = arith.constant 0 : index
    %4 = arith.index_cast %3 : i32 to index
    %c0_2 = arith.constant 0 : index
    %c0_3 = arith.constant 0 : index
    %5 = vector.load %arg2[%c0_1, %4, %c0_2, %c0_3] : memref<1x18x18x8xbf16, #tpu.memory_space<vmem>>, vector<1x16x16x8xbf16>
    %6 = vector.shape_cast %5 : vector<1x16x16x8xbf16> to vector<16x16x8xbf16>
    %7 = vector.shape_cast %6 : vector<16x16x8xbf16> to vector<256x8xbf16>
    %c0_4 = arith.constant 0 : index
    %c0_5 = arith.constant 0 : index
    %8 = vector.load %arg7[%c0_4, %c0_5] : memref<256x128xf32, #tpu.memory_space<vmem>>, vector<256x128xf32>
    %c0_6 = arith.constant 0 : index
    %c0_7 = arith.constant 0 : index
    %c0_8 = arith.constant 0 : index
    %9 = vector.load %arg3[%c0_6, %c0_7, %c0_8] : memref<9x8x128xbf16, #tpu.memory_space<vmem>>, vector<1x8x128xbf16>
    %10 = vector.shape_cast %9 : vector<1x8x128xbf16> to vector<8x128xbf16>
    %cst_9 = arith.constant dense<0.000000e+00> : vector<256x128xf32>
    %11 = tpu.matmul %7, %10, %cst_9 {dimension_numbers = #tpu.dot_dimension_numbers<[1], [0], [0], [1], [0, 0, 1, 1], [], []>} : vector<256x8xbf16>, vector<8x128xbf16>, vector<256x128xf32> -> vector<256x128xf32>
    %12 = arith.addf %8, %11 : vector<256x128xf32>
    %c0_10 = arith.constant 0 : index
    %c0_11 = arith.constant 0 : index
    %13 = vector.load %arg7[%c0_10, %c0_11] : memref<256x128xf32, #tpu.memory_space<vmem>>, vector<256x128xf32>
    tpu.vector_store %arg7[%c0_10, %c0_11], %12 {strides = array<i32>} : memref<256x128xf32, #tpu.memory_space<vmem>>, vector<256x128xf32>,
    %c0_i32_12 = arith.constant 0 : i32
    %14 = arith.addi %0, %c0_i32_12 : i32
    %c0_13 = arith.constant 0 : index
    %15 = arith.index_cast %14 : i32 to index
    %c1 = arith.constant 1 : index
    %c0_14 = arith.constant 0 : index
    %16 = vector.load %arg2[%c0_13, %15, %c1, %c0_14] : memref<1x18x18x8xbf16, #tpu.memory_space<vmem>>, vector<1x16x16x8xbf16>
    %17 = vector.shape_cast %16 : vector<1x16x16x8xbf16> to vector<16x16x8xbf16>
    %18 = vector.shape_cast %17 : vector<16x16x8xbf16> to vector<256x8xbf16>
    %c0_15 = arith.constant 0 : index
    %c0_16 = arith.constant 0 : index
    %19 = vector.load %arg7[%c0_15, %c0_16] : memref<256x128xf32, #tpu.memory_space<vmem>>, vector<256x128xf32>
    %c1_17 = arith.constant 1 : index
    %c0_18 = arith.constant 0 : index
    %c0_19 = arith.constant 0 : index
    %20 = vector.load %arg3[%c1_17, %c0_18, %c0_19] : memref<9x8x128xbf16, #tpu.memory_space<vmem>>, vector<1x8x128xbf16>
    %21 = vector.shape_cast %20 : vector<1x8x128xbf16> to vector<8x128xbf16>
    %cst_20 = arith.constant dense<0.000000e+00> : vector<256x128xf32>
    %22 = tpu.matmul %18, %21, %cst_20 {dimension_numbers = #tpu.dot_dimension_numbers<[1], [0], [0], [1], [0, 0, 1, 1], [], []>} : vector<256x8xbf16>, vector<8x128xbf16>, vector<256x128xf32> -> vector<256x128xf32>
    %23 = arith.addf %19, %22 : vector<256x128xf32>
    %c0_21 = arith.constant 0 : index
    %c0_22 = arith.constant 0 : index
    %24 = vector.load %arg7[%c0_21, %c0_22] : memref<256x128xf32, #tpu.memory_space<vmem>>, vector<256x128xf32>
    tpu.vector_store %arg7[%c0_21, %c0_22], %23 {strides = array<i32>} : memref<256x128xf32, #tpu.memory_space<vmem>>, vector<256x128xf32>,
    %c0_i32_23 = arith.constant 0 : i32
    %25 = arith.addi %0, %c0_i32_23 : i32
    %c0_24 = arith.constant 0 : index
    %26 = arith.index_cast %25 : i32 to index
    %c2 = arith.constant 2 : index
    %c0_25 = arith.constant 0 : index
    %27 = vector.load %arg2[%c0_24, %26, %c2, %c0_25] : memref<1x18x18x8xbf16, #tpu.memory_space<vmem>>, vector<1x16x16x8xbf16>
    %28 = vector.shape_cast %27 : vector<1x16x16x8xbf16> to vector<16x16x8xbf16>
    %29 = vector.shape_cast %28 : vector<16x16x8xbf16> to vector<256x8xbf16>
    %c0_26 = arith.constant 0 : index
    %c0_27 = arith.constant 0 : index
    %30 = vector.load %arg7[%c0_26, %c0_27] : memref<256x128xf32, #tpu.memory_space<vmem>>, vector<256x128xf32>
    %c2_28 = arith.constant 2 : index
    %c0_29 = arith.constant 0 : index
    %c0_30 = arith.constant 0 : index
    %31 = vector.load %arg3[%c2_28, %c0_29, %c0_30] : memref<9x8x128xbf16, #tpu.memory_space<vmem>>, vector<1x8x128xbf16>
    %32 = vector.shape_cast %31 : vector<1x8x128xbf16> to vector<8x128xbf16>
    %cst_31 = arith.constant dense<0.000000e+00> : vector<256x128xf32>
    %33 = tpu.matmul %29, %32, %cst_31 {dimension_numbers = #tpu.dot_dimension_numbers<[1], [0], [0], [1], [0, 0, 1, 1], [], []>} : vector<256x8xbf16>, vector<8x128xbf16>, vector<256x128xf32> -> vector<256x128xf32>
    %34 = arith.addf %30, %33 : vector<256x128xf32>
    %c0_32 = arith.constant 0 : index
    %c0_33 = arith.constant 0 : index
    %35 = vector.load %arg7[%c0_32, %c0_33] : memref<256x128xf32, #tpu.memory_space<vmem>>, vector<256x128xf32>
    tpu.vector_store %arg7[%c0_32, %c0_33], %34 {strides = array<i32>} : memref<256x128xf32, #tpu.memory_space<vmem>>, vector<256x128xf32>,
    %c1_i32 = arith.constant 1 : i32
    %36 = arith.addi %0, %c1_i32 : i32
    %c0_34 = arith.constant 0 : index
    %37 = arith.index_cast %36 : i32 to index
    %c0_35 = arith.constant 0 : index
    %c0_36 = arith.constant 0 : index
    %38 = vector.load %arg2[%c0_34, %37, %c0_35, %c0_36] : memref<1x18x18x8xbf16, #tpu.memory_space<vmem>>, vector<1x16x16x8xbf16>
    %39 = vector.shape_cast %38 : vector<1x16x16x8xbf16> to vector<16x16x8xbf16>
    %40 = vector.shape_cast %39 : vector<16x16x8xbf16> to vector<256x8xbf16>
    %c0_37 = arith.constant 0 : index
    %c0_38 = arith.constant 0 : index
    %41 = vector.load %arg7[%c0_37, %c0_38] : memref<256x128xf32, #tpu.memory_space<vmem>>, vector<256x128xf32>
    %c3 = arith.constant 3 : index
    %c0_39 = arith.constant 0 : index
    %c0_40 = arith.constant 0 : index
    %42 = vector.load %arg3[%c3, %c0_39, %c0_40] : memref<9x8x128xbf16, #tpu.memory_space<vmem>>, vector<1x8x128xbf16>
    %43 = vector.shape_cast %42 : vector<1x8x128xbf16> to vector<8x128xbf16>
    %cst_41 = arith.constant dense<0.000000e+00> : vector<256x128xf32>
    %44 = tpu.matmul %40, %43, %cst_41 {dimension_numbers = #tpu.dot_dimension_numbers<[1], [0], [0], [1], [0, 0, 1, 1], [], []>} : vector<256x8xbf16>, vector<8x128xbf16>, vector<256x128xf32> -> vector<256x128xf32>
    %45 = arith.addf %41, %44 : vector<256x128xf32>
    %c0_42 = arith.constant 0 : index
    %c0_43 = arith.constant 0 : index
    %46 = vector.load %arg7[%c0_42, %c0_43] : memref<256x128xf32, #tpu.memory_space<vmem>>, vector<256x128xf32>
    tpu.vector_store %arg7[%c0_42, %c0_43], %45 {strides = array<i32>} : memref<256x128xf32, #tpu.memory_space<vmem>>, vector<256x128xf32>,
    %c1_i32_44 = arith.constant 1 : i32
    %47 = arith.addi %0, %c1_i32_44 : i32
    %c0_45 = arith.constant 0 : index
    %48 = arith.index_cast %47 : i32 to index
    %c1_46 = arith.constant 1 : index
    %c0_47 = arith.constant 0 : index
    %49 = vector.load %arg2[%c0_45, %48, %c1_46, %c0_47] : memref<1x18x18x8xbf16, #tpu.memory_space<vmem>>, vector<1x16x16x8xbf16>
    %50 = vector.shape_cast %49 : vector<1x16x16x8xbf16> to vector<16x16x8xbf16>
    %51 = vector.shape_cast %50 : vector<16x16x8xbf16> to vector<256x8xbf16>
    %c0_48 = arith.constant 0 : index
    %c0_49 = arith.constant 0 : index
    %52 = vector.load %arg7[%c0_48, %c0_49] : memref<256x128xf32, #tpu.memory_space<vmem>>, vector<256x128xf32>
    %c4 = arith.constant 4 : index
    %c0_50 = arith.constant 0 : index
    %c0_51 = arith.constant 0 : index
    %53 = vector.load %arg3[%c4, %c0_50, %c0_51] : memref<9x8x128xbf16, #tpu.memory_space<vmem>>, vector<1x8x128xbf16>
    %54 = vector.shape_cast %53 : vector<1x8x128xbf16> to vector<8x128xbf16>
    %cst_52 = arith.constant dense<0.000000e+00> : vector<256x128xf32>
    %55 = tpu.matmul %51, %54, %cst_52 {dimension_numbers = #tpu.dot_dimension_numbers<[1], [0], [0], [1], [0, 0, 1, 1], [], []>} : vector<256x8xbf16>, vector<8x128xbf16>, vector<256x128xf32> -> vector<256x128xf32>
    %56 = arith.addf %52, %55 : vector<256x128xf32>
    %c0_53 = arith.constant 0 : index
    %c0_54 = arith.constant 0 : index
    %57 = vector.load %arg7[%c0_53, %c0_54] : memref<256x128xf32, #tpu.memory_space<vmem>>, vector<256x128xf32>
    tpu.vector_store %arg7[%c0_53, %c0_54], %56 {strides = array<i32>} : memref<256x128xf32, #tpu.memory_space<vmem>>, vector<256x128xf32>,
    %c1_i32_55 = arith.constant 1 : i32
    %58 = arith.addi %0, %c1_i32_55 : i32
    %c0_56 = arith.constant 0 : index
    %59 = arith.index_cast %58 : i32 to index
    %c2_57 = arith.constant 2 : index
    %c0_58 = arith.constant 0 : index
    %60 = vector.load %arg2[%c0_56, %59, %c2_57, %c0_58] : memref<1x18x18x8xbf16, #tpu.memory_space<vmem>>, vector<1x16x16x8xbf16>
    %61 = vector.shape_cast %60 : vector<1x16x16x8xbf16> to vector<16x16x8xbf16>
    %62 = vector.shape_cast %61 : vector<16x16x8xbf16> to vector<256x8xbf16>
    %c0_59 = arith.constant 0 : index
    %c0_60 = arith.constant 0 : index
    %63 = vector.load %arg7[%c0_59, %c0_60] : memref<256x128xf32, #tpu.memory_space<vmem>>, vector<256x128xf32>
    %c5 = arith.constant 5 : index
    %c0_61 = arith.constant 0 : index
    %c0_62 = arith.constant 0 : index
    %64 = vector.load %arg3[%c5, %c0_61, %c0_62] : memref<9x8x128xbf16, #tpu.memory_space<vmem>>, vector<1x8x128xbf16>
    %65 = vector.shape_cast %64 : vector<1x8x128xbf16> to vector<8x128xbf16>
    %cst_63 = arith.constant dense<0.000000e+00> : vector<256x128xf32>
    %66 = tpu.matmul %62, %65, %cst_63 {dimension_numbers = #tpu.dot_dimension_numbers<[1], [0], [0], [1], [0, 0, 1, 1], [], []>} : vector<256x8xbf16>, vector<8x128xbf16>, vector<256x128xf32> -> vector<256x128xf32>
    %67 = arith.addf %63, %66 : vector<256x128xf32>
    %c0_64 = arith.constant 0 : index
    %c0_65 = arith.constant 0 : index
    %68 = vector.load %arg7[%c0_64, %c0_65] : memref<256x128xf32, #tpu.memory_space<vmem>>, vector<256x128xf32>
    tpu.vector_store %arg7[%c0_64, %c0_65], %67 {strides = array<i32>} : memref<256x128xf32, #tpu.memory_space<vmem>>, vector<256x128xf32>,
    %c2_i32 = arith.constant 2 : i32
    %69 = arith.addi %0, %c2_i32 : i32
    %c0_66 = arith.constant 0 : index
    %70 = arith.index_cast %69 : i32 to index
    %c0_67 = arith.constant 0 : index
    %c0_68 = arith.constant 0 : index
    %71 = vector.load %arg2[%c0_66, %70, %c0_67, %c0_68] : memref<1x18x18x8xbf16, #tpu.memory_space<vmem>>, vector<1x16x16x8xbf16>
    %72 = vector.shape_cast %71 : vector<1x16x16x8xbf16> to vector<16x16x8xbf16>
    %73 = vector.shape_cast %72 : vector<16x16x8xbf16> to vector<256x8xbf16>
    %c0_69 = arith.constant 0 : index
    %c0_70 = arith.constant 0 : index
    %74 = vector.load %arg7[%c0_69, %c0_70] : memref<256x128xf32, #tpu.memory_space<vmem>>, vector<256x128xf32>
    %c6 = arith.constant 6 : index
    %c0_71 = arith.constant 0 : index
    %c0_72 = arith.constant 0 : index
    %75 = vector.load %arg3[%c6, %c0_71, %c0_72] : memref<9x8x128xbf16, #tpu.memory_space<vmem>>, vector<1x8x128xbf16>
    %76 = vector.shape_cast %75 : vector<1x8x128xbf16> to vector<8x128xbf16>
    %cst_73 = arith.constant dense<0.000000e+00> : vector<256x128xf32>
    %77 = tpu.matmul %73, %76, %cst_73 {dimension_numbers = #tpu.dot_dimension_numbers<[1], [0], [0], [1], [0, 0, 1, 1], [], []>} : vector<256x8xbf16>, vector<8x128xbf16>, vector<256x128xf32> -> vector<256x128xf32>
    %78 = arith.addf %74, %77 : vector<256x128xf32>
    %c0_74 = arith.constant 0 : index
    %c0_75 = arith.constant 0 : index
    %79 = vector.load %arg7[%c0_74, %c0_75] : memref<256x128xf32, #tpu.memory_space<vmem>>, vector<256x128xf32>
    tpu.vector_store %arg7[%c0_74, %c0_75], %78 {strides = array<i32>} : memref<256x128xf32, #tpu.memory_space<vmem>>, vector<256x128xf32>,
    %c2_i32_76 = arith.constant 2 : i32
    %80 = arith.addi %0, %c2_i32_76 : i32
    %c0_77 = arith.constant 0 : index
    %81 = arith.index_cast %80 : i32 to index
    %c1_78 = arith.constant 1 : index
    %c0_79 = arith.constant 0 : index
    %82 = vector.load %arg2[%c0_77, %81, %c1_78, %c0_79] : memref<1x18x18x8xbf16, #tpu.memory_space<vmem>>, vector<1x16x16x8xbf16>
    %83 = vector.shape_cast %82 : vector<1x16x16x8xbf16> to vector<16x16x8xbf16>
    %84 = vector.shape_cast %83 : vector<16x16x8xbf16> to vector<256x8xbf16>
    %c0_80 = arith.constant 0 : index
    %c0_81 = arith.constant 0 : index
    %85 = vector.load %arg7[%c0_80, %c0_81] : memref<256x128xf32, #tpu.memory_space<vmem>>, vector<256x128xf32>
    %c7 = arith.constant 7 : index
    %c0_82 = arith.constant 0 : index
    %c0_83 = arith.constant 0 : index
    %86 = vector.load %arg3[%c7, %c0_82, %c0_83] : memref<9x8x128xbf16, #tpu.memory_space<vmem>>, vector<1x8x128xbf16>
    %87 = vector.shape_cast %86 : vector<1x8x128xbf16> to vector<8x128xbf16>
    %cst_84 = arith.constant dense<0.000000e+00> : vector<256x128xf32>
    %88 = tpu.matmul %84, %87, %cst_84 {dimension_numbers = #tpu.dot_dimension_numbers<[1], [0], [0], [1], [0, 0, 1, 1], [], []>} : vector<256x8xbf16>, vector<8x128xbf16>, vector<256x128xf32> -> vector<256x128xf32>
    %89 = arith.addf %85, %88 : vector<256x128xf32>
    %c0_85 = arith.constant 0 : index
    %c0_86 = arith.constant 0 : index
    %90 = vector.load %arg7[%c0_85, %c0_86] : memref<256x128xf32, #tpu.memory_space<vmem>>, vector<256x128xf32>
    tpu.vector_store %arg7[%c0_85, %c0_86], %89 {strides = array<i32>} : memref<256x128xf32, #tpu.memory_space<vmem>>, vector<256x128xf32>,
    %c2_i32_87 = arith.constant 2 : i32
    %91 = arith.addi %0, %c2_i32_87 : i32
    %c0_88 = arith.constant 0 : index
    %92 = arith.index_cast %91 : i32 to index
    %c2_89 = arith.constant 2 : index
    %c0_90 = arith.constant 0 : index
    %93 = vector.load %arg2[%c0_88, %92, %c2_89, %c0_90] : memref<1x18x18x8xbf16, #tpu.memory_space<vmem>>, vector<1x16x16x8xbf16>
    %94 = vector.shape_cast %93 : vector<1x16x16x8xbf16> to vector<16x16x8xbf16>
    %95 = vector.shape_cast %94 : vector<16x16x8xbf16> to vector<256x8xbf16>
    %c0_91 = arith.constant 0 : index
    %c0_92 = arith.constant 0 : index
    %96 = vector.load %arg7[%c0_91, %c0_92] : memref<256x128xf32, #tpu.memory_space<vmem>>, vector<256x128xf32>
    %c8 = arith.constant 8 : index
    %c0_93 = arith.constant 0 : index
    %c0_94 = arith.constant 0 : index
    %97 = vector.load %arg3[%c8, %c0_93, %c0_94] : memref<9x8x128xbf16, #tpu.memory_space<vmem>>, vector<1x8x128xbf16>
    %98 = vector.shape_cast %97 : vector<1x8x128xbf16> to vector<8x128xbf16>
    %cst_95 = arith.constant dense<0.000000e+00> : vector<256x128xf32>
    %99 = tpu.matmul %95, %98, %cst_95 {dimension_numbers = #tpu.dot_dimension_numbers<[1], [0], [0], [1], [0, 0, 1, 1], [], []>} : vector<256x8xbf16>, vector<8x128xbf16>, vector<256x128xf32> -> vector<256x128xf32>
    %100 = arith.addf %96, %99 : vector<256x128xf32>
    %c0_96 = arith.constant 0 : index
    %c0_97 = arith.constant 0 : index
    %101 = vector.load %arg7[%c0_96, %c0_97] : memref<256x128xf32, #tpu.memory_space<vmem>>, vector<256x128xf32>
    tpu.vector_store %arg7[%c0_96, %c0_97], %100 {strides = array<i32>} : memref<256x128xf32, #tpu.memory_space<vmem>>, vector<256x128xf32>,
    %c0_98 = arith.constant 0 : index
    %c0_99 = arith.constant 0 : index
    %102 = vector.load %arg7[%c0_98, %c0_99] : memref<256x128xf32, #tpu.memory_space<vmem>>, vector<256x128xf32>
    %c0_100 = arith.constant 0 : index
    %c0_101 = arith.constant 0 : index
    %103 = vector.load %arg4[%c0_100, %c0_101] : memref<1x128xf32, #tpu.memory_space<vmem>>, vector<1x128xf32>
    %104 = vector.broadcast %103 : vector<1x128xf32> to vector<256x128xf32>
    %105 = arith.addf %102, %104 : vector<256x128xf32>
    %106 = vector.shape_cast %105 : vector<256x128xf32> to vector<1x16x16x128xf32>
    %c0_102 = arith.constant 0 : index
    %c0_103 = arith.constant 0 : index
    %c0_104 = arith.constant 0 : index
    %c0_105 = arith.constant 0 : index
    %107 = vector.load %arg5[%c0_102, %c0_103, %c0_104, %c0_105] : memref<1x16x16x128xf32, #tpu.memory_space<vmem>>, vector<1x16x16x128xf32>
    tpu.vector_store %arg5[%c0_102, %c0_103, %c0_104, %c0_105], %106 {strides = array<i32>} : memref<1x16x16x128xf32, #tpu.memory_space<vmem>>, vector<1x16x16x128xf32>,
    %cst_106 = arith.constant dense<0.000000e+00> : vector<128xf32>
    %108 = vector.multi_reduction <add>, %105, %cst_106 [0] : vector<256x128xf32> to vector<128xf32>
    %109 = vector.shape_cast %108 : vector<128xf32> to vector<1x128xf32>
    %110 = arith.mulf %105, %105 : vector<256x128xf32>
    %cst_107 = arith.constant dense<0.000000e+00> : vector<128xf32>
    %111 = vector.multi_reduction <add>, %110, %cst_107 [0] : vector<256x128xf32> to vector<128xf32>
    %112 = vector.shape_cast %111 : vector<128xf32> to vector<1x128xf32>
    %113 = tpu.concatenate %109, %112 in 0 : vector<1x128xf32>, vector<1x128xf32> -> vector<2x128xf32>
    %114 = vector.shape_cast %113 : vector<2x128xf32> to vector<1x1x2x128xf32>
    %c0_108 = arith.constant 0 : index
    %c0_109 = arith.constant 0 : index
    %c0_110 = arith.constant 0 : index
    %c0_111 = arith.constant 0 : index
    %115 = vector.load %arg6[%c0_108, %c0_109, %c0_110, %c0_111] : memref<1x1x2x128xf32, #tpu.memory_space<vmem>>, vector<1x1x2x128xf32>
    tpu.vector_store %arg6[%c0_108, %c0_109, %c0_110, %c0_111], %114 {strides = array<i32>} : memref<1x1x2x128xf32, #tpu.memory_space<vmem>>, vector<1x1x2x128xf32>,
    return
  }
  func.func @transform_0(%arg0: i32, %arg1: i32) -> (i32, i32, i32, i32) {
    %c0_i32 = arith.constant 0 : i32
    %c0_i32_0 = arith.constant 0 : i32
    %c0_i32_1 = arith.constant 0 : i32
    %c0_i32_2 = arith.constant 0 : i32
    return %arg0, %c0_i32, %c0_i32_0, %c0_i32_1 : i32, i32, i32, i32
  }
  func.func @transform_1(%arg0: i32, %arg1: i32) -> (i32, i32, i32) {
    %c0_i32 = arith.constant 0 : i32
    %c0_i32_0 = arith.constant 0 : i32
    %c0_i32_1 = arith.constant 0 : i32
    %c0_i32_2 = arith.constant 0 : i32
    return %c0_i32, %c0_i32_0, %c0_i32_1 : i32, i32, i32
  }
  func.func @transform_2(%arg0: i32, %arg1: i32) -> (i32, i32) {
    %c0_i32 = arith.constant 0 : i32
    %c0_i32_0 = arith.constant 0 : i32
    %c0_i32_1 = arith.constant 0 : i32
    return %c0_i32, %c0_i32_0 : i32, i32
  }
  func.func @transform_3(%arg0: i32, %arg1: i32) -> (i32, i32, i32, i32) {
    %c0_i32 = arith.constant 0 : i32
    %c0_i32_0 = arith.constant 0 : i32
    %c0_i32_1 = arith.constant 0 : i32
    return %arg0, %arg1, %c0_i32, %c0_i32_0 : i32, i32, i32, i32
  }
  func.func @transform_4(%arg0: i32, %arg1: i32) -> (i32, i32, i32, i32) {
    %c0_i32 = arith.constant 0 : i32
    %c0_i32_0 = arith.constant 0 : i32
    %c0_i32_1 = arith.constant 0 : i32
    return %arg0, %arg1, %c0_i32, %c0_i32_0 : i32, i32, i32, i32
  }
}

</mosaic_0001>

<llo_original>
// kernel: tpu_custom_call.1
$region0: #{tpu_custom_call.1}
  #allocation0 [shape = 'u32[]', space=smem, size = 0x4, offset = 0x4, fixed_abs, tag = 'smem constant byte address 0x4 - core index']
  #allocation1 [shape = 'u32[144,128]{1,0:T(1,128)}', space=vmem, size = 0x12000, scoped, tag = 'internal scratch']
  #allocation2 [shape = 'f32[256,128]{1,0:T(8,128)}', space=vmem, size = 0x20000, scoped, tag = 'scratch operand']
  %s0 = inlined_call_operand.vmem [shape: bf16[2,18,18,8], index: 0, kind: input, shape index: {}]
  %s1 = inlined_call_operand.vmem [shape: bf16[9,8,128], index: 1, kind: input, shape index: {}]
  %s2 = inlined_call_operand.vmem [shape: f32[1,128], index: 2, kind: input, shape index: {}]
  %s3 = inlined_call_operand.hbm [shape: f32[2,16,16,128], index: 3, kind: output, shape index: {0}]
  %s4 = inlined_call_operand.hbm [shape: f32[2,1,2,128], index: 4, kind: output, shape index: {1}]
  %5 = xla_tuple %s3, %s4
  %s6 = sld [smem:[#allocation0]]
  $region53: #{tpu_custom_call.1} parent=0
    _
  %s8 = ssub.s32 1, %s6
  %s9 = scalar_select 0, %s8, %s6
  $region1: #{tpu_custom_call.1} parent=0
    #allocation3 [shape = 'u8[262144]{0}', space=vmem, size = 0x40000, scoped, tag = 'output window, operand 0']
    #allocation4 [shape = 's32[2]{0}', space=sflag, size = 0x8, scoped, tag = 'scoped memory for tpu_custom_call.1']
    #allocation5 [shape = 'u8[2048]{0}', space=vmem, size = 0x800, scoped, tag = 'output window, operand 1']
    #allocation6 [shape = 's32[2]{0}', space=sflag, size = 0x8, scoped, tag = 'scoped memory for tpu_custom_call.1']
    %10 = vsyncpa [#allocation4], 0
    %s11 = scalar_lea.sflag [#allocation4], 1
    %12 = vsyncpa %s11, 0
    %13 = vsyncpa [#allocation6], 0
    %s14 = scalar_lea.sflag [#allocation6], 1
    %15 = vsyncpa %s14, 0
    loop: start=0, step=1, limit=4
    $region2: #{tpu_custom_call.1} parent=1 // loop_pre_header
      _
    $region3: #{tpu_custom_call.1} parent=1 // loop_header
      %s17 = sphi 0, %s21
      %p18 = scmp.ge.s32.totalorder %s17, 4
      %s24 = sphi 0, %s36
      %s25 = sphi 0, %s32
      %s26 = sphi 0, %s24
      %s27 = sphi 0, %s25
      %s28 = sphi 0, %s26
      %s29 = sphi 0, %s27
      %s39 = sphi 0, %s41
      %s42 = sphi 0, %s39
      %s43 = sphi 0, %s42
      %s59 = sphi 0, %s43
      %s63 = sphi 0, %s63
      %s65 = sphi 0, %s63
      %s66 = sphi 0, %s65
      %s80 = sphi 0, %s66
      %s84 = sphi 0, %s84
      %s86 = sphi 0, %s84
      %s87 = sphi 0, %s86
      %s101 = sphi 0, %s87
      %s109 = sphi 0, %s111
      %s112 = sphi 0, %s109
      %s113 = sphi 0, %s112
      %s129 = sphi 0, %s113
      %s137 = sphi 0, %s139
      %s140 = sphi 0, %s137
      %s141 = sphi 0, %s140
      %s157 = sphi 0, %s141
    $region4: #{tpu_custom_call.1} parent=1 // loop_header_branch
      %20 = sbr.rel (%p18) target = $region8
    $region5: #{tpu_custom_call.1} parent=1 // loop_body
      %s22 = ssub.s32 %s17, 1
      %s23 = ssub.s32 %s17, 2
      %s30 = sadd.s32 1, %s25
      %p31 = scmp.ge.s32.totalorder %s30, 1
      %s32 = scalar_select %p31, 0, %s30
      %s33 = sadd.s32 1, %s24
      %s34 = scalar_select %p31, %s33, %s24
      %p35 = scmp.ge.s32.totalorder %s34, 2
      %s36 = scalar_select %p35, 0, %s34
      %s37 = ssub.s32 %s24, %s36
      %p38 = scmp.eq.s32.totalorder %s37, 0
      %s40 = sadd.s32 %s39, 1
      %s41 = scalar_select %p38, %s39, %s40
      %p44 = pneg %p38
      %p45 = scmp.eq.s32.totalorder %s17, 1
      %p46 = por %p44, %p45
      %p47 = scmp.ne.s32.totalorder %s39, %s42
      %p48 = scmp.eq.s32.totalorder %s17, 0
      %p49 = por %p47, %p48
      %p50 = scmp.ne.s32.totalorder %s39, %s42
      %p51 = scmp.eq.s32.totalorder %s22, 1
      %p52 = por %p50, %p51
      %p53 = scmp.ne.s32.totalorder %s42, %s43
      %p54 = scmp.eq.s32.totalorder %s22, 0
      %p55 = por %p53, %p54
      %p56 = scmp.ne.s32.totalorder %s42, %s43
      %p57 = scmp.eq.s32.totalorder %s23, 1
      %p58 = por %p56, %p57
      %p60 = scmp.ne.s32.totalorder %s43, %s59
      %p61 = scmp.eq.s32.totalorder %s23, 0
      %p62 = por %p60, %p61
      %s64 = sadd.s32 %s63, 1
      %p67 = scmp.eq.s32.totalorder %s17, 1
      %p68 = scmp.ne.s32.totalorder %s63, %s65
      %p69 = scmp.eq.s32.totalorder %s17, 0
      %p70 = por %p68, %p69
      %p71 = scmp.ne.s32.totalorder %s63, %s65
      %p72 = scmp.eq.s32.totalorder %s22, 1
      %p73 = por %p71, %p72
      %p74 = scmp.ne.s32.totalorder %s65, %s66
      %p75 = scmp.eq.s32.totalorder %s22, 0
      %p76 = por %p74, %p75
      %p77 = scmp.ne.s32.totalorder %s65, %s66
      %p78 = scmp.eq.s32.totalorder %s23, 1
      %p79 = por %p77, %p78
      %p81 = scmp.ne.s32.totalorder %s66, %s80
      %p82 = scmp.eq.s32.totalorder %s23, 0
      %p83 = por %p81, %p82
      %s85 = sadd.s32 %s84, 1
      %p88 = scmp.eq.s32.totalorder %s17, 1
      %p89 = scmp.ne.s32.totalorder %s84, %s86
      %p90 = scmp.eq.s32.totalorder %s17, 0
      %p91 = por %p89, %p90
      %p92 = scmp.ne.s32.totalorder %s84, %s86
      %p93 = scmp.eq.s32.totalorder %s22, 1
      %p94 = por %p92, %p93
      %p95 = scmp.ne.s32.totalorder %s86, %s87
      %p96 = scmp.eq.s32.totalorder %s22, 0
      %p97 = por %p95, %p96
      %p98 = scmp.ne.s32.totalorder %s86, %s87
      %p99 = scmp.eq.s32.totalorder %s23, 1
      %p100 = por %p98, %p99
      %p102 = scmp.ne.s32.totalorder %s87, %s101
      %p103 = scmp.eq.s32.totalorder %s23, 0
      %p104 = por %p102, %p103
      %s105 = ssub.s32 %s24, %s36
      %s106 = ssub.s32 %s25, %s32
      %s107 = sor.u32 %s105, %s106
      %p108 = scmp.eq.s32.totalorder %s107, 0
      %s110 = sadd.s32 %s109, 1
      %s111 = scalar_select %p108, %s109, %s110
      %p114 = pneg %p108
      %p115 = scmp.eq.s32.totalorder %s17, 1
      %p116 = por %p114, %p115
      %p117 = scmp.ne.s32.totalorder %s109, %s112
      %p118 = scmp.eq.s32.totalorder %s17, 0
      %p119 = por %p117, %p118
      %p120 = scmp.ne.s32.totalorder %s109, %s112
      %p121 = scmp.eq.s32.totalorder %s22, 1
      %p122 = por %p120, %p121
      %p123 = scmp.ne.s32.totalorder %s112, %s113
      %p124 = scmp.eq.s32.totalorder %s22, 0
      %p125 = por %p123, %p124
      %p126 = scmp.ne.s32.totalorder %s112, %s113
      %p127 = scmp.eq.s32.totalorder %s23, 1
      %p128 = por %p126, %p127
      %p130 = scmp.ne.s32.totalorder %s113, %s129
      %p131 = scmp.eq.s32.totalorder %s23, 0
      %p132 = por %p130, %p131
      %s133 = ssub.s32 %s24, %s36
      %s134 = ssub.s32 %s25, %s32
      %s135 = sor.u32 %s133, %s134
      %p136 = scmp.eq.s32.totalorder %s135, 0
      %s138 = sadd.s32 %s137, 1
      %s139 = scalar_select %p136, %s137, %s138
      %p142 = pneg %p136
      %p143 = scmp.eq.s32.totalorder %s17, 1
      %p144 = por %p142, %p143
      %p145 = scmp.ne.s32.totalorder %s137, %s140
      %p146 = scmp.eq.s32.totalorder %s17, 0
      %p147 = por %p145, %p146
      %p148 = scmp.ne.s32.totalorder %s137, %s140
      %p149 = scmp.eq.s32.totalorder %s22, 1
      %p150 = por %p148, %p149
      %p151 = scmp.ne.s32.totalorder %s140, %s141
      %p152 = scmp.eq.s32.totalorder %s22, 0
      %p153 = por %p151, %p152
      %p154 = scmp.ne.s32.totalorder %s140, %s141
      %p155 = scmp.eq.s32.totalorder %s23, 1
      %p156 = por %p154, %p155
      %p158 = scmp.ne.s32.totalorder %s141, %s157
      %p159 = scmp.eq.s32.totalorder %s23, 0
      %p160 = por %p158, %p159
      %p161 = scmp.le.s32.totalorder 1, %s17
      %p162 = scmp.lt.s32.totalorder %s17, 3
      %p163 = pnand %p161, %p162
      %p164 = pneg %p163
      // Predicated region
      $region9: #{tpu_custom_call.1} parent=5 // pred_check
        _
      $region10: #{tpu_custom_call.1} parent=5 // pred_check_branch
        %166 = sbr.rel (%p163) target = $region12
      $region11: #{tpu_custom_call.1} parent=5 // pred_region
        %s167 = ssub.s32 %s17, 1
        // Predicated region
        $region13: #{tpu_custom_call.1} parent=11 // pred_check
          %p168 = pneg %p76
        $region14: #{tpu_custom_call.1} parent=11 // pred_check_branch
          %170 = sbr.rel (%p168) target = $region16
        $region15: #{tpu_custom_call.1} parent=11 // pred_region
          _
        $region16: #{tpu_custom_call.1} parent=11 // pred_fallthru
          _
        // Predicated region
        $region17: #{tpu_custom_call.1} parent=11 // pred_check
          %p171 = pneg %p97
        $region18: #{tpu_custom_call.1} parent=11 // pred_check_branch
          %173 = sbr.rel (%p171) target = $region20
        $region19: #{tpu_custom_call.1} parent=11 // pred_region
          _
        $region20: #{tpu_custom_call.1} parent=11 // pred_fallthru
          _
      $region12: #{tpu_custom_call.1} parent=5 // pred_fallthru
        _
      %p174 = scmp.lt.s32.totalorder %s17, 2
      // Predicated region
      $region21: #{tpu_custom_call.1} parent=5 // pred_check
        %p175 = pneg %p174
      $region22: #{tpu_custom_call.1} parent=5 // pred_check_branch
        %177 = sbr.rel (%p175) target = $region24
      $region23: #{tpu_custom_call.1} parent=5 // pred_region
        // Predicated region
        $region25: #{tpu_custom_call.1} parent=23 // pred_check
          %p178 = pneg %p49
        $region26: #{tpu_custom_call.1} parent=23 // pred_check_branch
          %180 = sbr.rel (%p178) target = $region28
        $region27: #{tpu_custom_call.1} parent=23 // pred_region
          %p181 = scmp.lt.s32.totalorder %s24, 1
          %s182 = scalar_select %p181, %s24, 1
          %s183 = smul.addr %s182, 54
          %s184 = smul.addr %s183, 4
          %s185 = scalar_lea.vmem %s0, %s184
        $region28: #{tpu_custom_call.1} parent=23 // pred_fallthru
          _
      $region24: #{tpu_custom_call.1} parent=5 // pred_fallthru
        _
      %p186 = scmp.le.s32.totalorder 1, %s17
      %p187 = scmp.lt.s32.totalorder %s17, 3
      %p188 = pnand %p186, %p187
      %p189 = pneg %p188
      // Predicated region
      $region29: #{tpu_custom_call.1} parent=5 // pred_check
        _
      $region30: #{tpu_custom_call.1} parent=5 // pred_check_branch
        %191 = sbr.rel (%p188) target = $region32
      $region31: #{tpu_custom_call.1} parent=5 // pred_region
        %s192 = ssub.s32 %s17, 1
        %p193 = scmp.lt.s32.totalorder %s26, 1
        %s194 = scalar_select %p193, %s26, 1
        %s195 = smul.addr %s194, 54
        %s196 = smul.addr %s195, 4
        %s197 = scalar_lea.vmem %s0, %s196
        %p198 = pneg %p55
        %p199 = pneg %p52
        %p200 = pneg %p76
        %p201 = pneg %p73
        %p202 = pneg %p97
        %p203 = pneg %p94
        %p204 = pneg %p125
        %p205 = pneg %p122
        %s206 = sand.u32 %s112, 1
        %s207 = scalar_lea.sflag [#allocation4], %s206
        %s208 = sand.u32 %s112, 1
        %s209 = smul.addr %s208, 256
        %s210 = scalar_lea.vmem [#allocation3], %s209
        %p211 = pneg %p153
        %p212 = pneg %p150
        %s213 = sand.u32 %s140, 1
        %s214 = scalar_lea.sflag [#allocation6], %s213
        %s215 = sand.u32 %s140, 1
        %s216 = smul.addr %s215, 2
        %s217 = scalar_lea.vmem [#allocation5], %s216
        %p218 = scmp.lt.s32.totalorder %s26, 1
        %s219 = scalar_select %p218, %s26, 1
        %s220 = smul.addr %s219, 54
        %s221 = smul.addr %s220, 4
        %s222 = scalar_lea.vmem %s0, %s221
        %s223 = smul.u32 16, %s27
        %s225 = smul.u32 %s27, 16
        %226 = vst [vmem:[#allocation2] sm:$0xff] 0.0
        %227 = vst [vmem:[#allocation2 + $0x8] sm:$0xff] 0.0
        %228 = vst [vmem:[#allocation2 + $0x10] sm:$0xff] 0.0
        %229 = vst [vmem:[#allocation2 + $0x18] sm:$0xff] 0.0
        %230 = vst [vmem:[#allocation2 + $0x20] sm:$0xff] 0.0
        %231 = vst [vmem:[#allocation2 + $0x28] sm:$0xff] 0.0
        %232 = vst [vmem:[#allocation2 + $0x30] sm:$0xff] 0.0
        %233 = vst [vmem:[#allocation2 + $0x38] sm:$0xff] 0.0
        %234 = vst [vmem:[#allocation2 + $0x40] sm:$0xff] 0.0
        %235 = vst [vmem:[#allocation2 + $0x48] sm:$0xff] 0.0
        %236 = vst [vmem:[#allocation2 + $0x50] sm:$0xff] 0.0
        %237 = vst [vmem:[#allocation2 + $0x58] sm:$0xff] 0.0
        %238 = vst [vmem:[#allocation2 + $0x60] sm:$0xff] 0.0
        %239 = vst [vmem:[#allocation2 + $0x68] sm:$0xff] 0.0
        %240 = vst [vmem:[#allocation2 + $0x70] sm:$0xff] 0.0
        %241 = vst [vmem:[#allocation2 + $0x78] sm:$0xff] 0.0
        %242 = vst [vmem:[#allocation2 + $0x80] sm:$0xff] 0.0
        %243 = vst [vmem:[#allocation2 + $0x88] sm:$0xff] 0.0
        %244 = vst [vmem:[#allocation2 + $0x90] sm:$0xff] 0.0
        %245 = vst [vmem:[#allocation2 + $0x98] sm:$0xff] 0.0
        %246 = vst [vmem:[#allocation2 + $0xa0] sm:$0xff] 0.0
        %247 = vst [vmem:[#allocation2 + $0xa8] sm:$0xff] 0.0
        %248 = vst [vmem:[#allocation2 + $0xb0] sm:$0xff] 0.0
        %249 = vst [vmem:[#allocation2 + $0xb8] sm:$0xff] 0.0
        %250 = vst [vmem:[#allocation2 + $0xc0] sm:$0xff] 0.0
        %251 = vst [vmem:[#allocation2 + $0xc8] sm:$0xff] 0.0
        %252 = vst [vmem:[#allocation2 + $0xd0] sm:$0xff] 0.0
        %253 = vst [vmem:[#allocation2 + $0xd8] sm:$0xff] 0.0
        %254 = vst [vmem:[#allocation2 + $0xe0] sm:$0xff] 0.0
        %255 = vst [vmem:[#allocation2 + $0xe8] sm:$0xff] 0.0
        %256 = vst [vmem:[#allocation2 + $0xf0] sm:$0xff] 0.0
        %257 = vst [vmem:[#allocation2 + $0xf8] sm:$0xff] 0.0
        %s258 = smul.u32 %s225, 3
        %s259 = smul.addr %s258, 4
        %s260 = scalar_lea.vmem %s222, %s259
        %v261 = vld [vmem:[%s260] sm:$0xf]
        %v262 = vld [vmem:[%s260 + $0x4] sm:$0xf]
        %v263 = vld [vmem:[%s260 + $0xc] sm:$0xf]
        %v264 = vld [vmem:[%s260 + $0x10] sm:$0xf]
        %v265 = vld [vmem:[%s260 + $0x18] sm:$0xf]
        %v266 = vld [vmem:[%s260 + $0x1c] sm:$0xf]
        %v267 = vld [vmem:[%s260 + $0x24] sm:$0xf]
        %v268 = vld [vmem:[%s260 + $0x28] sm:$0xf]
        %v269 = vld [vmem:[%s260 + $0x30] sm:$0xf]
        %v270 = vld [vmem:[%s260 + $0x34] sm:$0xf]
        %v271 = vld [vmem:[%s260 + $0x3c] sm:$0xf]
        %v272 = vld [vmem:[%s260 + $0x40] sm:$0xf]
        %v273 = vld [vmem:[%s260 + $0x48] sm:$0xf]
        %v274 = vld [vmem:[%s260 + $0x4c] sm:$0xf]
        %v275 = vld [vmem:[%s260 + $0x54] sm:$0xf]
        %v276 = vld [vmem:[%s260 + $0x58] sm:$0xf]
        %v277 = vld [vmem:[%s260 + $0x60] sm:$0xf]
        %v278 = vld [vmem:[%s260 + $0x64] sm:$0xf]
        %v279 = vld [vmem:[%s260 + $0x6c] sm:$0xf]
        %v280 = vld [vmem:[%s260 + $0x70] sm:$0xf]
        %v281 = vld [vmem:[%s260 + $0x78] sm:$0xf]
        %v282 = vld [vmem:[%s260 + $0x7c] sm:$0xf]
        %v283 = vld [vmem:[%s260 + $0x84] sm:$0xf]
        %v284 = vld [vmem:[%s260 + $0x88] sm:$0xf]
        %v285 = vld [vmem:[%s260 + $0x90] sm:$0xf]
        %v286 = vld [vmem:[%s260 + $0x94] sm:$0xf]
        %v287 = vld [vmem:[%s260 + $0x9c] sm:$0xf]
        %v288 = vld [vmem:[%s260 + $0xa0] sm:$0xf]
        %v289 = vld [vmem:[%s260 + $0xa8] sm:$0xf]
        %v290 = vld [vmem:[%s260 + $0xac] sm:$0xf]
        %v291 = vld [vmem:[%s260 + $0xb4] sm:$0xf]
        %v292 = vld [vmem:[%s260 + $0xb8] sm:$0xf]
        %v293 = vld [vmem:[#allocation2] sm:$0xff]
        %v294 = vld [vmem:[#allocation2 + $0x8] sm:$0xff]
        %v295 = vld [vmem:[#allocation2 + $0x10] sm:$0xff]
        %v296 = vld [vmem:[#allocation2 + $0x18] sm:$0xff]
        %v297 = vld [vmem:[#allocation2 + $0x20] sm:$0xff]
        %v298 = vld [vmem:[#allocation2 + $0x28] sm:$0xff]
        %v299 = vld [vmem:[#allocation2 + $0x30] sm:$0xff]
        %v300 = vld [vmem:[#allocation2 + $0x38] sm:$0xff]
        %v301 = vld [vmem:[#allocation2 + $0x40] sm:$0xff]
        %v302 = vld [vmem:[#allocation2 + $0x48] sm:$0xff]
        %v303 = vld [vmem:[#allocation2 + $0x50] sm:$0xff]
        %v304 = vld [vmem:[#allocation2 + $0x58] sm:$0xff]
        %v305 = vld [vmem:[#allocation2 + $0x60] sm:$0xff]
        %v306 = vld [vmem:[#allocation2 + $0x68] sm:$0xff]
        %v307 = vld [vmem:[#allocation2 + $0x70] sm:$0xff]
        %v308 = vld [vmem:[#allocation2 + $0x78] sm:$0xff]
        %v309 = vld [vmem:[#allocation2 + $0x80] sm:$0xff]
        %v310 = vld [vmem:[#allocation2 + $0x88] sm:$0xff]
        %v311 = vld [vmem:[#allocation2 + $0x90] sm:$0xff]
        %v312 = vld [vmem:[#allocation2 + $0x98] sm:$0xff]
        %v313 = vld [vmem:[#allocation2 + $0xa0] sm:$0xff]
        %v314 = vld [vmem:[#allocation2 + $0xa8] sm:$0xff]
        %v315 = vld [vmem:[#allocation2 + $0xb0] sm:$0xff]
        %v316 = vld [vmem:[#allocation2 + $0xb8] sm:$0xff]
        %v317 = vld [vmem:[#allocation2 + $0xc0] sm:$0xff]
        %v318 = vld [vmem:[#allocation2 + $0xc8] sm:$0xff]
        %v319 = vld [vmem:[#allocation2 + $0xd0] sm:$0xff]
        %v320 = vld [vmem:[#allocation2 + $0xd8] sm:$0xff]
        %v321 = vld [vmem:[#allocation2 + $0xe0] sm:$0xff]
        %v322 = vld [vmem:[#allocation2 + $0xe8] sm:$0xff]
        %v323 = vld [vmem:[#allocation2 + $0xf0] sm:$0xff]
        %v324 = vld [vmem:[#allocation2 + $0xf8] sm:$0xff]
        %v325 = vld [vmem:[%s1] sm:$0xf]
        %v358 = vunpack.c.l.b16 %v261
        %v359 = vunpack.c.l.b16 %v262
        %v360 = vunpack.c.l.b16 %v263
        %v361 = vunpack.c.l.b16 %v264
        %v362 = vunpack.c.l.b16 %v265
        %v363 = vunpack.c.l.b16 %v266
        %v364 = vunpack.c.l.b16 %v267
        %v365 = vunpack.c.l.b16 %v268
        %v366 = vunpack.c.l.b16 %v269
        %v367 = vunpack.c.l.b16 %v270
        %v368 = vunpack.c.l.b16 %v271
        %v369 = vunpack.c.l.b16 %v272
        %v370 = vunpack.c.l.b16 %v273
        %v371 = vunpack.c.l.b16 %v274
        %v372 = vunpack.c.l.b16 %v275
        %v373 = vunpack.c.l.b16 %v276
        %v374 = vunpack.c.l.b16 %v277
        %v375 = vunpack.c.l.b16 %v278
        %v376 = vunpack.c.l.b16 %v279
        %v377 = vunpack.c.l.b16 %v280
        %v378 = vunpack.c.l.b16 %v281
        %v379 = vunpack.c.l.b16 %v282
        %v380 = vunpack.c.l.b16 %v283
        %v381 = vunpack.c.l.b16 %v284
        %v382 = vunpack.c.l.b16 %v285
        %v383 = vunpack.c.l.b16 %v286
        %v384 = vunpack.c.l.b16 %v287
        %v385 = vunpack.c.l.b16 %v288
        %v386 = vunpack.c.l.b16 %v289
        %v387 = vunpack.c.l.b16 %v290
        %v388 = vunpack.c.l.b16 %v291
        %v389 = vunpack.c.l.b16 %v292
        %v390 = vpack.c.b16 %v359, %v358
        %v391 = vpack.c.b16 %v361, %v360
        %v392 = vpack.c.b16 %v363, %v362
        %v393 = vpack.c.b16 %v365, %v364
        %v394 = vpack.c.b16 %v367, %v366
        %v395 = vpack.c.b16 %v369, %v368
        %v396 = vpack.c.b16 %v371, %v370
        %v397 = vpack.c.b16 %v373, %v372
        %v398 = vpack.c.b16 %v375, %v374
        %v399 = vpack.c.b16 %v377, %v376
        %v400 = vpack.c.b16 %v379, %v378
        %v401 = vpack.c.b16 %v381, %v380
        %v402 = vpack.c.b16 %v383, %v382
        %v403 = vpack.c.b16 %v385, %v384
        %v404 = vpack.c.b16 %v387, %v386
        %v405 = vpack.c.b16 %v389, %v388
        %vm406 = vcmask 64512
        %v408 = vsel %vm406, %v390, 0
        %v411 = vsel %vm406, %v391, 0
        %v414 = vsel %vm406, %v392, 0
        %v417 = vsel %vm406, %v393, 0
        %v420 = vsel %vm406, %v394, 0
        %v423 = vsel %vm406, %v395, 0
        %v426 = vsel %vm406, %v396, 0
        %v429 = vsel %vm406, %v397, 0
        %v432 = vsel %vm406, %v398, 0
        %v435 = vsel %vm406, %v399, 0
        %v438 = vsel %vm406, %v400, 0
        %v441 = vsel %vm406, %v401, 0
        %v444 = vsel %vm406, %v402, 0
        %v447 = vsel %vm406, %v403, 0
        %v450 = vsel %vm406, %v404, 0
        %v453 = vsel %vm406, %v405, 0
        %vm455 = vcmask 1043456
        %v457 = vsel %vm455, %v325, 0
        %459 = vmatprep.subr.bf16.mxu0 0
        %460 = vmatpush1.bf16.msra.mxu0 %v457
        %461 = vmatprep.subr.bf16.mxu0 0
        %462 = vmatpush1.bf16.msra.mxu0 0
        %463 = vmatprep.subr.bf16.mxu0 0
        %464 = vmatpush1.bf16.msra.mxu0 0
        %465 = vmatprep.subr.bf16.mxu0 0
        %466 = vmatpush1.bf16.msra.mxu0 0
        %467 = vmatprep.subr.bf16.mxu0 0
        %468 = vmatpush1.bf16.msra.mxu0 0
        %469 = vmatprep.subr.bf16.mxu0 0
        %470 = vmatpush1.bf16.msra.mxu0 0
        %471 = vmatprep.subr.bf16.mxu0 0
        %472 = vmatpush1.bf16.msra.mxu0 0
        %473 = vmatprep.subr.bf16.mxu0 0
        %474 = vmatpush1.bf16.msra.mxu0 0
        %475 = vmatprep.subr.bf16.mxu0 0
        %476 = vmatpush1.bf16.msra.mxu0 0
        %477 = vmatprep.subr.bf16.mxu0 0
        %478 = vmatpush1.bf16.msra.mxu0 0
        %479 = vmatprep.subr.bf16.mxu0 0
        %480 = vmatpush1.bf16.msra.mxu0 0
        %481 = vmatprep.subr.bf16.mxu0 0
        %482 = vmatpush1.bf16.msra.mxu0 0
        %483 = vmatprep.subr.bf16.mxu0 0
        %484 = vmatpush1.bf16.msra.mxu0 0
        %485 = vmatprep.subr.bf16.mxu0 0
        %486 = vmatpush1.bf16.msra.mxu0 0
        %487 = vmatprep.subr.bf16.mxu0 0
        %488 = vmatpush1.bf16.msra.mxu0 0
        %489 = vmatprep.subr.bf16.mxu0 0
        %490 = vmatpush1.bf16.msra.mxu0 0
        %491 = vmatprep.mubr.bf16.mxu0 0
        %492 = vmatmul.mubr.bf16.gmra.mrb[0].mxu0 %v408
        %v493 = vpop.f32.mrb[0].mxu0
        %v494 = vadd.f32 0.0, %v493
        %v495 = vpop.f32.mrb[0].mxu0
        %v496 = vpop.f32.mrb[0].mxu0
        %v497 = vadd.f32 0.0, %v496
        %v498 = vpop.f32.mrb[0].mxu0
        %499 = vmatprep.mubr.bf16.mxu0 0
        %500 = vmatmul.mubr.bf16.gmra.mrb[0].mxu0 %v411
        %v501 = vpop.f32.mrb[0].mxu0
        %v502 = vadd.f32 0.0, %v501
        %v503 = vpop.f32.mrb[0].mxu0
        %v504 = vpop.f32.mrb[0].mxu0
        %v505 = vadd.f32 0.0, %v504
        %v506 = vpop.f32.mrb[0].mxu0
        %507 = vmatprep.mubr.bf16.mxu0 0
        %508 = vmatmul.mubr.bf16.gmra.mrb[0].mxu0 %v414
        %v509 = vpop.f32.mrb[0].mxu0
        %v510 = vadd.f32 0.0, %v509
        %v511 = vpop.f32.mrb[0].mxu0
        %v512 = vpop.f32.mrb[0].mxu0
        %v513 = vadd.f32 0.0, %v512
        %v514 = vpop.f32.mrb[0].mxu0
        %515 = vmatprep.mubr.bf16.mxu0 0
        %516 = vmatmul.mubr.bf16.gmra.mrb[0].mxu0 %v417
        %v517 = vpop.f32.mrb[0].mxu0
        %v518 = vadd.f32 0.0, %v517
        %v519 = vpop.f32.mrb[0].mxu0
        %v520 = vpop.f32.mrb[0].mxu0
        %v521 = vadd.f32 0.0, %v520
        %v522 = vpop.f32.mrb[0].mxu0
        %523 = vmatprep.mubr.bf16.mxu0 0
        %524 = vmatmul.mubr.bf16.gmra.mrb[0].mxu0 %v420
        %v525 = vpop.f32.mrb[0].mxu0
        %v526 = vadd.f32 0.0, %v525
        %v527 = vpop.f32.mrb[0].mxu0
        %v528 = vpop.f32.mrb[0].mxu0
        %v529 = vadd.f32 0.0, %v528
        %v530 = vpop.f32.mrb[0].mxu0
        %531 = vmatprep.mubr.bf16.mxu0 0
        %532 = vmatmul.mubr.bf16.gmra.mrb[0].mxu0 %v423
        %v533 = vpop.f32.mrb[0].mxu0
        %v534 = vadd.f32 0.0, %v533
        %v535 = vpop.f32.mrb[0].mxu0
        %v536 = vpop.f32.mrb[0].mxu0
        %v537 = vadd.f32 0.0, %v536
        %v538 = vpop.f32.mrb[0].mxu0
        %539 = vmatprep.mubr.bf16.mxu0 0
        %540 = vmatmul.mubr.bf16.gmra.mrb[0].mxu0 %v426
        %v541 = vpop.f32.mrb[0].mxu0
        %v542 = vadd.f32 0.0, %v541
        %v543 = vpop.f32.mrb[0].mxu0
        %v544 = vpop.f32.mrb[0].mxu0
        %v545 = vadd.f32 0.0, %v544
        %v546 = vpop.f32.mrb[0].mxu0
        %547 = vmatprep.mubr.bf16.mxu0 0
        %548 = vmatmul.mubr.bf16.gmra.mrb[0].mxu0 %v429
        %v549 = vpop.f32.mrb[0].mxu0
        %v550 = vadd.f32 0.0, %v549
        %v551 = vpop.f32.mrb[0].mxu0
        %v552 = vpop.f32.mrb[0].mxu0
        %v553 = vadd.f32 0.0, %v552
        %v554 = vpop.f32.mrb[0].mxu0
        %555 = vmatprep.mubr.bf16.mxu0 0
        %556 = vmatmul.mubr.bf16.gmra.mrb[0].mxu0 %v432
        %v557 = vpop.f32.mrb[0].mxu0
        %v558 = vadd.f32 0.0, %v557
        %v559 = vpop.f32.mrb[0].mxu0
        %v560 = vpop.f32.mrb[0].mxu0
        %v561 = vadd.f32 0.0, %v560
        %v562 = vpop.f32.mrb[0].mxu0
        %563 = vmatprep.mubr.bf16.mxu0 0
        %564 = vmatmul.mubr.bf16.gmra.mrb[0].mxu0 %v435
        %v565 = vpop.f32.mrb[0].mxu0
        %v566 = vadd.f32 0.0, %v565
        %v567 = vpop.f32.mrb[0].mxu0
        %v568 = vpop.f32.mrb[0].mxu0
        %v569 = vadd.f32 0.0, %v568
        %v570 = vpop.f32.mrb[0].mxu0
        %571 = vmatprep.mubr.bf16.mxu0 0
        %572 = vmatmul.mubr.bf16.gmra.mrb[0].mxu0 %v438
        %v573 = vpop.f32.mrb[0].mxu0
        %v574 = vadd.f32 0.0, %v573
        %v575 = vpop.f32.mrb[0].mxu0
        %v576 = vpop.f32.mrb[0].mxu0
        %v577 = vadd.f32 0.0, %v576
        %v578 = vpop.f32.mrb[0].mxu0
        %579 = vmatprep.mubr.bf16.mxu0 0
        %580 = vmatmul.mubr.bf16.gmra.mrb[0].mxu0 %v441
        %v581 = vpop.f32.mrb[0].mxu0
        %v582 = vadd.f32 0.0, %v581
        %v583 = vpop.f32.mrb[0].mxu0
        %v584 = vpop.f32.mrb[0].mxu0
        %v585 = vadd.f32 0.0, %v584
        %v586 = vpop.f32.mrb[0].mxu0
        %587 = vmatprep.mubr.bf16.mxu0 0
        %588 = vmatmul.mubr.bf16.gmra.mrb[0].mxu0 %v444
        %v589 = vpop.f32.mrb[0].mxu0
        %v590 = vadd.f32 0.0, %v589
        %v591 = vpop.f32.mrb[0].mxu0
        %v592 = vpop.f32.mrb[0].mxu0
        %v593 = vadd.f32 0.0, %v592
        %v594 = vpop.f32.mrb[0].mxu0
        %595 = vmatprep.mubr.bf16.mxu0 0
        %596 = vmatmul.mubr.bf16.gmra.mrb[0].mxu0 %v447
        %v597 = vpop.f32.mrb[0].mxu0
        %v598 = vadd.f32 0.0, %v597
        %v599 = vpop.f32.mrb[0].mxu0
        %v600 = vpop.f32.mrb[0].mxu0
        %v601 = vadd.f32 0.0, %v600
        %v602 = vpop.f32.mrb[0].mxu0
        %603 = vmatprep.mubr.bf16.mxu0 0
        %604 = vmatmul.mubr.bf16.gmra.mrb[0].mxu0 %v450
        %v605 = vpop.f32.mrb[0].mxu0
        %v606 = vadd.f32 0.0, %v605
        %v607 = vpop.f32.mrb[0].mxu0
        %v608 = vpop.f32.mrb[0].mxu0
        %v609 = vadd.f32 0.0, %v608
        %v610 = vpop.f32.mrb[0].mxu0
        %611 = vmatprep.mubr.bf16.mxu0 0
        %612 = vmatmul.mubr.bf16.gmra.mrb[0].mxu0 %v453
        %v613 = vpop.f32.mrb[0].mxu0
        %v614 = vadd.f32 0.0, %v613
        %v615 = vpop.f32.mrb[0].mxu0
        %v616 = vpop.f32.mrb[0].mxu0
        %v617 = vadd.f32 0.0, %v616
        %v618 = vpop.f32.mrb[0].mxu0
        %619 = vdwg.mxu0
        %v620 = vadd.f32 %v293, %v494
        %v621 = vadd.f32 %v294, %v497
        %v622 = vadd.f32 %v295, %v502
        %v623 = vadd.f32 %v296, %v505
        %v624 = vadd.f32 %v297, %v510
        %v625 = vadd.f32 %v298, %v513
        %v626 = vadd.f32 %v299, %v518
        %v627 = vadd.f32 %v300, %v521
        %v628 = vadd.f32 %v301, %v526
        %v629 = vadd.f32 %v302, %v529
        %v630 = vadd.f32 %v303, %v534
        %v631 = vadd.f32 %v304, %v537
        %v632 = vadd.f32 %v305, %v542
        %v633 = vadd.f32 %v306, %v545
        %v634 = vadd.f32 %v307, %v550
        %v635 = vadd.f32 %v308, %v553
        %v636 = vadd.f32 %v309, %v558
        %v637 = vadd.f32 %v310, %v561
        %v638 = vadd.f32 %v311, %v566
        %v639 = vadd.f32 %v312, %v569
        %v640 = vadd.f32 %v313, %v574
        %v641 = vadd.f32 %v314, %v577
        %v642 = vadd.f32 %v315, %v582
        %v643 = vadd.f32 %v316, %v585
        %v644 = vadd.f32 %v317, %v590
        %v645 = vadd.f32 %v318, %v593
        %v646 = vadd.f32 %v319, %v598
        %v647 = vadd.f32 %v320, %v601
        %v648 = vadd.f32 %v321, %v606
        %v649 = vadd.f32 %v322, %v609
        %v650 = vadd.f32 %v323, %v614
        %v651 = vadd.f32 %v324, %v617
        %652 = vst [vmem:[#allocation2] sm:$0xff] %v620
        %653 = vst [vmem:[#allocation2 + $0x8] sm:$0xff] %v621
        %654 = vst [vmem:[#allocation2 + $0x10] sm:$0xff] %v622
        %655 = vst [vmem:[#allocation2 + $0x18] sm:$0xff] %v623
        %656 = vst [vmem:[#allocation2 + $0x20] sm:$0xff] %v624
        %657 = vst [vmem:[#allocation2 + $0x28] sm:$0xff] %v625
        %658 = vst [vmem:[#allocation2 + $0x30] sm:$0xff] %v626
        %659 = vst [vmem:[#allocation2 + $0x38] sm:$0xff] %v627
        %660 = vst [vmem:[#allocation2 + $0x40] sm:$0xff] %v628
        %661 = vst [vmem:[#allocation2 + $0x48] sm:$0xff] %v629
        %662 = vst [vmem:[#allocation2 + $0x50] sm:$0xff] %v630
        %663 = vst [vmem:[#allocation2 + $0x58] sm:$0xff] %v631
        %664 = vst [vmem:[#allocation2 + $0x60] sm:$0xff] %v632
        %665 = vst [vmem:[#allocation2 + $0x68] sm:$0xff] %v633
        %666 = vst [vmem:[#allocation2 + $0x70] sm:$0xff] %v634
        %667 = vst [vmem:[#allocation2 + $0x78] sm:$0xff] %v635
        %668 = vst [vmem:[#allocation2 + $0x80] sm:$0xff] %v636
        %669 = vst [vmem:[#allocation2 + $0x88] sm:$0xff] %v637
        %670 = vst [vmem:[#allocation2 + $0x90] sm:$0xff] %v638
        %671 = vst [vmem:[#allocation2 + $0x98] sm:$0xff] %v639
        %672 = vst [vmem:[#allocation2 + $0xa0] sm:$0xff] %v640
        %673 = vst [vmem:[#allocation2 + $0xa8] sm:$0xff] %v641
        %674 = vst [vmem:[#allocation2 + $0xb0] sm:$0xff] %v642
        %675 = vst [vmem:[#allocation2 + $0xb8] sm:$0xff] %v643
        %676 = vst [vmem:[#allocation2 + $0xc0] sm:$0xff] %v644
        %677 = vst [vmem:[#allocation2 + $0xc8] sm:$0xff] %v645
        %678 = vst [vmem:[#allocation2 + $0xd0] sm:$0xff] %v646
        %679 = vst [vmem:[#allocation2 + $0xd8] sm:$0xff] %v647
        %680 = vst [vmem:[#allocation2 + $0xe0] sm:$0xff] %v648
        %681 = vst [vmem:[#allocation2 + $0xe8] sm:$0xff] %v649
        %682 = vst [vmem:[#allocation2 + $0xf0] sm:$0xff] %v650
        %683 = vst [vmem:[#allocation2 + $0xf8] sm:$0xff] %v651
        %v684 = vld [vmem:[%s260] sm:$0xf]
        %v685 = vld [vmem:[%s260 + $0x4] sm:$0xf]
        %v686 = vld [vmem:[%s260 + $0x8] sm:$0x1]
        %v687 = vld [vmem:[%s260 + $0xc] sm:$0xf]
        %v688 = vld [vmem:[%s260 + $0x10] sm:$0xf]
        %v689 = vld [vmem:[%s260 + $0x14] sm:$0x1]
        %v690 = vld [vmem:[%s260 + $0x18] sm:$0xf]
        %v691 = vld [vmem:[%s260 + $0x1c] sm:$0xf]
        %v692 = vld [vmem:[%s260 + $0x20] sm:$0x1]
        %v693 = vld [vmem:[%s260 + $0x24] sm:$0xf]
        %v694 = vld [vmem:[%s260 + $0x28] sm:$0xf]
        %v695 = vld [vmem:[%s260 + $0x2c] sm:$0x1]
        %v696 = vld [vmem:[%s260 + $0x30] sm:$0xf]
        %v697 = vld [vmem:[%s260 + $0x34] sm:$0xf]
        %v698 = vld [vmem:[%s260 + $0x38] sm:$0x1]
        %v699 = vld [vmem:[%s260 + $0x3c] sm:$0xf]
        %v700 = vld [vmem:[%s260 + $0x40] sm:$0xf]
        %v701 = vld [vmem:[%s260 + $0x44] sm:$0x1]
        %v702 = vld [vmem:[%s260 + $0x48] sm:$0xf]
        %v703 = vld [vmem:[%s260 + $0x4c] sm:$0xf]
        %v704 = vld [vmem:[%s260 + $0x50] sm:$0x1]
        %v705 = vld [vmem:[%s260 + $0x54] sm:$0xf]
        %v706 = vld [vmem:[%s260 + $0x58] sm:$0xf]
        %v707 = vld [vmem:[%s260 + $0x5c] sm:$0x1]
        %v708 = vld [vmem:[%s260 + $0x60] sm:$0xf]
        %v709 = vld [vmem:[%s260 + $0x64] sm:$0xf]
        %v710 = vld [vmem:[%s260 + $0x68] sm:$0x1]
        %v711 = vld [vmem:[%s260 + $0x6c] sm:$0xf]
        %v712 = vld [vmem:[%s260 + $0x70] sm:$0xf]
        %v713 = vld [vmem:[%s260 + $0x74] sm:$0x1]
        %v714 = vld [vmem:[%s260 + $0x78] sm:$0xf]
        %v715 = vld [vmem:[%s260 + $0x7c] sm:$0xf]
        %v716 = vld [vmem:[%s260 + $0x80] sm:$0x1]
        %v717 = vld [vmem:[%s260 + $0x84] sm:$0xf]
        %v718 = vld [vmem:[%s260 + $0x88] sm:$0xf]
        %v719 = vld [vmem:[%s260 + $0x8c] sm:$0x1]
        %v720 = vld [vmem:[%s260 + $0x90] sm:$0xf]
        %v721 = vld [vmem:[%s260 + $0x94] sm:$0xf]
        %v722 = vld [vmem:[%s260 + $0x98] sm:$0x1]
        %v723 = vld [vmem:[%s260 + $0x9c] sm:$0xf]
        %v724 = vld [vmem:[%s260 + $0xa0] sm:$0xf]
        %v725 = vld [vmem:[%s260 + $0xa4] sm:$0x1]
        %v726 = vld [vmem:[%s260 + $0xa8] sm:$0xf]
        %v727 = vld [vmem:[%s260 + $0xac] sm:$0xf]
        %v728 = vld [vmem:[%s260 + $0xb0] sm:$0x1]
        %v729 = vld [vmem:[%s260 + $0xb4] sm:$0xf]
        %v730 = vld [vmem:[%s260 + $0xb8] sm:$0xf]
        %v731 = vld [vmem:[%s260 + $0xbc] sm:$0x1]
        %vm732 = vsmask.f32 3328
        %vm733 = vsmask.f32 7440
        %vm734 = vmor %vm732, %vm733
        %v736 = vshrl.u32 %v684, 16
        %v738 = vrot.slane %v736, 4
        %v739 = vshll.u32 %v684, 16
        %v741 = vrot.slane %v739, 5
        %v742 = vor.u32 %v738, %v741
        %v743 = vrot.slane %v742, 4
        %v745 = vshll.u32 %v685, 16
        %v747 = vrot.slane %v745, 5
        %v748 = vsel %vm734, %v743, %v747
        %v749 = vshrl.u32 %v685, 16
        %v751 = vrot.slane %v749, 4
        %v752 = vor.u32 %v751, %v747
        %v753 = vrot.slane %v752, 4
        %v755 = vshll.u32 %v686, 16
        %v757 = vrot.slane %v755, 5
        %v758 = vsel %vm734, %v753, %v757
        %v760 = vshrl.u32 %v687, 16
        %v762 = vrot.slane %v760, 4
        %v763 = vshll.u32 %v687, 16
        %v765 = vrot.slane %v763, 5
        %v766 = vor.u32 %v762, %v765
        %v767 = vrot.slane %v766, 4
        %v769 = vshll.u32 %v688, 16
        %v771 = vrot.slane %v769, 5
        %v772 = vsel %vm734, %v767, %v771
        %v773 = vshrl.u32 %v688, 16
        %v775 = vrot.slane %v773, 4
        %v776 = vor.u32 %v775, %v771
        %v777 = vrot.slane %v776, 4
        %v779 = vshll.u32 %v689, 16
        %v781 = vrot.slane %v779, 5
        %v782 = vsel %vm734, %v777, %v781
        %v784 = vshrl.u32 %v690, 16
        %v786 = vrot.slane %v784, 4
        %v787 = vshll.u32 %v690, 16
        %v789 = vrot.slane %v787, 5
        %v790 = vor.u32 %v786, %v789
        %v791 = vrot.slane %v790, 4
        %v793 = vshll.u32 %v691, 16
        %v795 = vrot.slane %v793, 5
        %v796 = vsel %vm734, %v791, %v795
        %v797 = vshrl.u32 %v691, 16
        %v799 = vrot.slane %v797, 4
        %v800 = vor.u32 %v799, %v795
        %v801 = vrot.slane %v800, 4
        %v803 = vshll.u32 %v692, 16
        %v805 = vrot.slane %v803, 5
        %v806 = vsel %vm734, %v801, %v805
        %v808 = vshrl.u32 %v693, 16
        %v810 = vrot.slane %v808, 4
        %v811 = vshll.u32 %v693, 16
        %v813 = vrot.slane %v811, 5
        %v814 = vor.u32 %v810, %v813
        %v815 = vrot.slane %v814, 4
        %v817 = vshll.u32 %v694, 16
        %v819 = vrot.slane %v817, 5
        %v820 = vsel %vm734, %v815, %v819
        %v821 = vshrl.u32 %v694, 16
        %v823 = vrot.slane %v821, 4
        %v824 = vor.u32 %v823, %v819
        %v825 = vrot.slane %v824, 4
        %v827 = vshll.u32 %v695, 16
        %v829 = vrot.slane %v827, 5
        %v830 = vsel %vm734, %v825, %v829
        %v832 = vshrl.u32 %v696, 16
        %v834 = vrot.slane %v832, 4
        %v835 = vshll.u32 %v696, 16
        %v837 = vrot.slane %v835, 5
        %v838 = vor.u32 %v834, %v837
        %v839 = vrot.slane %v838, 4
        %v841 = vshll.u32 %v697, 16
        %v843 = vrot.slane %v841, 5
        %v844 = vsel %vm734, %v839, %v843
        %v845 = vshrl.u32 %v697, 16
        %v847 = vrot.slane %v845, 4
        %v848 = vor.u32 %v847, %v843
        %v849 = vrot.slane %v848, 4
        %v851 = vshll.u32 %v698, 16
        %v853 = vrot.slane %v851, 5
        %v854 = vsel %vm734, %v849, %v853
        %v856 = vshrl.u32 %v699, 16
        %v858 = vrot.slane %v856, 4
        %v859 = vshll.u32 %v699, 16
        %v861 = vrot.slane %v859, 5
        %v862 = vor.u32 %v858, %v861
        %v863 = vrot.slane %v862, 4
        %v865 = vshll.u32 %v700, 16
        %v867 = vrot.slane %v865, 5
        %v868 = vsel %vm734, %v863, %v867
        %v869 = vshrl.u32 %v700, 16
        %v871 = vrot.slane %v869, 4
        %v872 = vor.u32 %v871, %v867
        %v873 = vrot.slane %v872, 4
        %v875 = vshll.u32 %v701, 16
        %v877 = vrot.slane %v875, 5
        %v878 = vsel %vm734, %v873, %v877
        %v880 = vshrl.u32 %v702, 16
        %v882 = vrot.slane %v880, 4
        %v883 = vshll.u32 %v702, 16
        %v885 = vrot.slane %v883, 5
        %v886 = vor.u32 %v882, %v885
        %v887 = vrot.slane %v886, 4
        %v889 = vshll.u32 %v703, 16
        %v891 = vrot.slane %v889, 5
        %v892 = vsel %vm734, %v887, %v891
        %v893 = vshrl.u32 %v703, 16
        %v895 = vrot.slane %v893, 4
        %v896 = vor.u32 %v895, %v891
        %v897 = vrot.slane %v896, 4
        %v899 = vshll.u32 %v704, 16
        %v901 = vrot.slane %v899, 5
        %v902 = vsel %vm734, %v897, %v901
        %v904 = vshrl.u32 %v705, 16
        %v906 = vrot.slane %v904, 4
        %v907 = vshll.u32 %v705, 16
        %v909 = vrot.slane %v907, 5
        %v910 = vor.u32 %v906, %v909
        %v911 = vrot.slane %v910, 4
        %v913 = vshll.u32 %v706, 16
        %v915 = vrot.slane %v913, 5
        %v916 = vsel %vm734, %v911, %v915
        %v917 = vshrl.u32 %v706, 16
        %v919 = vrot.slane %v917, 4
        %v920 = vor.u32 %v919, %v915
        %v921 = vrot.slane %v920, 4
        %v923 = vshll.u32 %v707, 16
        %v925 = vrot.slane %v923, 5
        %v926 = vsel %vm734, %v921, %v925
        %v928 = vshrl.u32 %v708, 16
        %v930 = vrot.slane %v928, 4
        %v931 = vshll.u32 %v708, 16
        %v933 = vrot.slane %v931, 5
        %v934 = vor.u32 %v930, %v933
        %v935 = vrot.slane %v934, 4
        %v937 = vshll.u32 %v709, 16
        %v939 = vrot.slane %v937, 5
        %v940 = vsel %vm734, %v935, %v939
        %v941 = vshrl.u32 %v709, 16
        %v943 = vrot.slane %v941, 4
        %v944 = vor.u32 %v943, %v939
        %v945 = vrot.slane %v944, 4
        %v947 = vshll.u32 %v710, 16
        %v949 = vrot.slane %v947, 5
        %v950 = vsel %vm734, %v945, %v949
        %v952 = vshrl.u32 %v711, 16
        %v954 = vrot.slane %v952, 4
        %v955 = vshll.u32 %v711, 16
        %v957 = vrot.slane %v955, 5
        %v958 = vor.u32 %v954, %v957
        %v959 = vrot.slane %v958, 4
        %v961 = vshll.u32 %v712, 16
        %v963 = vrot.slane %v961, 5
        %v964 = vsel %vm734, %v959, %v963
        %v965 = vshrl.u32 %v712, 16
        %v967 = vrot.slane %v965, 4
        %v968 = vor.u32 %v967, %v963
        %v969 = vrot.slane %v968, 4
        %v971 = vshll.u32 %v713, 16
        %v973 = vrot.slane %v971, 5
        %v974 = vsel %vm734, %v969, %v973
        %v976 = vshrl.u32 %v714, 16
        %v978 = vrot.slane %v976, 4
        %v979 = vshll.u32 %v714, 16
        %v981 = vrot.slane %v979, 5
        %v982 = vor.u32 %v978, %v981
        %v983 = vrot.slane %v982, 4
        %v985 = vshll.u32 %v715, 16
        %v987 = vrot.slane %v985, 5
        %v988 = vsel %vm734, %v983, %v987
        %v989 = vshrl.u32 %v715, 16
        %v991 = vrot.slane %v989, 4
        %v992 = vor.u32 %v991, %v987
        %v993 = vrot.slane %v992, 4
        %v995 = vshll.u32 %v716, 16
        %v997 = vrot.slane %v995, 5
        %v998 = vsel %vm734, %v993, %v997
        %v1000 = vshrl.u32 %v717, 16
        %v1002 = vrot.slane %v1000, 4
        %v1003 = vshll.u32 %v717, 16
        %v1005 = vrot.slane %v1003, 5
        %v1006 = vor.u32 %v1002, %v1005
        %v1007 = vrot.slane %v1006, 4
        %v1009 = vshll.u32 %v718, 16
        %v1011 = vrot.slane %v1009, 5
        %v1012 = vsel %vm734, %v1007, %v1011
        %v1013 = vshrl.u32 %v718, 16
        %v1015 = vrot.slane %v1013, 4
        %v1016 = vor.u32 %v1015, %v1011
        %v1017 = vrot.slane %v1016, 4
        %v1019 = vshll.u32 %v719, 16
        %v1021 = vrot.slane %v1019, 5
        %v1022 = vsel %vm734, %v1017, %v1021
        %v1024 = vshrl.u32 %v720, 16
        %v1026 = vrot.slane %v1024, 4
        %v1027 = vshll.u32 %v720, 16
        %v1029 = vrot.slane %v1027, 5
        %v1030 = vor.u32 %v1026, %v1029
        %v1031 = vrot.slane %v1030, 4
        %v1033 = vshll.u32 %v721, 16
        %v1035 = vrot.slane %v1033, 5
        %v1036 = vsel %vm734, %v1031, %v1035
        %v1037 = vshrl.u32 %v721, 16
        %v1039 = vrot.slane %v1037, 4
        %v1040 = vor.u32 %v1039, %v1035
        %v1041 = vrot.slane %v1040, 4
        %v1043 = vshll.u32 %v722, 16
        %v1045 = vrot.slane %v1043, 5
        %v1046 = vsel %vm734, %v1041, %v1045
        %v1048 = vshrl.u32 %v723, 16
        %v1050 = vrot.slane %v1048, 4
        %v1051 = vshll.u32 %v723, 16
        %v1053 = vrot.slane %v1051, 5
        %v1054 = vor.u32 %v1050, %v1053
        %v1055 = vrot.slane %v1054, 4
        %v1057 = vshll.u32 %v724, 16
        %v1059 = vrot.slane %v1057, 5
        %v1060 = vsel %vm734, %v1055, %v1059
        %v1061 = vshrl.u32 %v724, 16
        %v1063 = vrot.slane %v1061, 4
        %v1064 = vor.u32 %v1063, %v1059
        %v1065 = vrot.slane %v1064, 4
        %v1067 = vshll.u32 %v725, 16
        %v1069 = vrot.slane %v1067, 5
        %v1070 = vsel %vm734, %v1065, %v1069
        %v1072 = vshrl.u32 %v726, 16
        %v1074 = vrot.slane %v1072, 4
        %v1075 = vshll.u32 %v726, 16
        %v1077 = vrot.slane %v1075, 5
        %v1078 = vor.u32 %v1074, %v1077
        %v1079 = vrot.slane %v1078, 4
        %v1081 = vshll.u32 %v727, 16
        %v1083 = vrot.slane %v1081, 5
        %v1084 = vsel %vm734, %v1079, %v1083
        %v1085 = vshrl.u32 %v727, 16
        %v1087 = vrot.slane %v1085, 4
        %v1088 = vor.u32 %v1087, %v1083
        %v1089 = vrot.slane %v1088, 4
        %v1091 = vshll.u32 %v728, 16
        %v1093 = vrot.slane %v1091, 5
        %v1094 = vsel %vm734, %v1089, %v1093
        %v1096 = vshrl.u32 %v729, 16
        %v1098 = vrot.slane %v1096, 4
        %v1099 = vshll.u32 %v729, 16
        %v1101 = vrot.slane %v1099, 5
        %v1102 = vor.u32 %v1098, %v1101
        %v1103 = vrot.slane %v1102, 4
        %v1105 = vshll.u32 %v730, 16
        %v1107 = vrot.slane %v1105, 5
        %v1108 = vsel %vm734, %v1103, %v1107
        %v1109 = vshrl.u32 %v730, 16
        %v1111 = vrot.slane %v1109, 4
        %v1112 = vor.u32 %v1111, %v1107
        %v1113 = vrot.slane %v1112, 4
        %v1115 = vshll.u32 %v731, 16
        %v1117 = vrot.slane %v1115, 5
        %v1118 = vsel %vm734, %v1113, %v1117
        %v1119 = vld [vmem:[#allocation2] sm:$0xff]
        %v1120 = vld [vmem:[#allocation2 + $0x8] sm:$0xff]
        %v1121 = vld [vmem:[#allocation2 + $0x10] sm:$0xff]
        %v1122 = vld [vmem:[#allocation2 + $0x18] sm:$0xff]
        %v1123 = vld [vmem:[#allocation2 + $0x20] sm:$0xff]
        %v1124 = vld [vmem:[#allocation2 + $0x28] sm:$0xff]
        %v1125 = vld [vmem:[#allocation2 + $0x30] sm:$0xff]
        %v1126 = vld [vmem:[#allocation2 + $0x38] sm:$0xff]
        %v1127 = vld [vmem:[#allocation2 + $0x40] sm:$0xff]
        %v1128 = vld [vmem:[#allocation2 + $0x48] sm:$0xff]
        %v1129 = vld [vmem:[#allocation2 + $0x50] sm:$0xff]
        %v1130 = vld [vmem:[#allocation2 + $0x58] sm:$0xff]
        %v1131 = vld [vmem:[#allocation2 + $0x60] sm:$0xff]
        %v1132 = vld [vmem:[#allocation2 + $0x68] sm:$0xff]
        %v1133 = vld [vmem:[#allocation2 + $0x70] sm:$0xff]
        %v1134 = vld [vmem:[#allocation2 + $0x78] sm:$0xff]
        %v1135 = vld [vmem:[#allocation2 + $0x80] sm:$0xff]
        %v1136 = vld [vmem:[#allocation2 + $0x88] sm:$0xff]
        %v1137 = vld [vmem:[#allocation2 + $0x90] sm:$0xff]
        %v1138 = vld [vmem:[#allocation2 + $0x98] sm:$0xff]
        %v1139 = vld [vmem:[#allocation2 + $0xa0] sm:$0xff]
        %v1140 = vld [vmem:[#allocation2 + $0xa8] sm:$0xff]
        %v1141 = vld [vmem:[#allocation2 + $0xb0] sm:$0xff]
        %v1142 = vld [vmem:[#allocation2 + $0xb8] sm:$0xff]
        %v1143 = vld [vmem:[#allocation2 + $0xc0] sm:$0xff]
        %v1144 = vld [vmem:[#allocation2 + $0xc8] sm:$0xff]
        %v1145 = vld [vmem:[#allocation2 + $0xd0] sm:$0xff]
        %v1146 = vld [vmem:[#allocation2 + $0xd8] sm:$0xff]
        %v1147 = vld [vmem:[#allocation2 + $0xe0] sm:$0xff]
        %v1148 = vld [vmem:[#allocation2 + $0xe8] sm:$0xff]
        %v1149 = vld [vmem:[#allocation2 + $0xf0] sm:$0xff]
        %v1150 = vld [vmem:[#allocation2 + $0xf8] sm:$0xff]
        %s1151 = scalar_lea.vmem %s1, 4
        %v1152 = vld [vmem:[%s1151] sm:$0xf]
        %v1153 = vunpack.c.l.b16 %v748
        %v1154 = vunpack.c.l.b16 %v758
        %v1155 = vunpack.c.l.b16 %v772
        %v1156 = vunpack.c.l.b16 %v782
        %v1157 = vunpack.c.l.b16 %v796
        %v1158 = vunpack.c.l.b16 %v806
        %v1159 = vunpack.c.l.b16 %v820
        %v1160 = vunpack.c.l.b16 %v830
        %v1161 = vunpack.c.l.b16 %v844
        %v1162 = vunpack.c.l.b16 %v854
        %v1163 = vunpack.c.l.b16 %v868
        %v1164 = vunpack.c.l.b16 %v878
        %v1165 = vunpack.c.l.b16 %v892
        %v1166 = vunpack.c.l.b16 %v902
        %v1167 = vunpack.c.l.b16 %v916
        %v1168 = vunpack.c.l.b16 %v926
        %v1169 = vunpack.c.l.b16 %v940
        %v1170 = vunpack.c.l.b16 %v950
        %v1171 = vunpack.c.l.b16 %v964
        %v1172 = vunpack.c.l.b16 %v974
        %v1173 = vunpack.c.l.b16 %v988
        %v1174 = vunpack.c.l.b16 %v998
        %v1175 = vunpack.c.l.b16 %v1012
        %v1176 = vunpack.c.l.b16 %v1022
        %v1177 = vunpack.c.l.b16 %v1036
        %v1178 = vunpack.c.l.b16 %v1046
        %v1179 = vunpack.c.l.b16 %v1060
        %v1180 = vunpack.c.l.b16 %v1070
        %v1181 = vunpack.c.l.b16 %v1084
        %v1182 = vunpack.c.l.b16 %v1094
        %v1183 = vunpack.c.l.b16 %v1108
        %v1184 = vunpack.c.l.b16 %v1118
        %v1185 = vpack.c.b16 %v1154, %v1153
        %v1186 = vpack.c.b16 %v1156, %v1155
        %v1187 = vpack.c.b16 %v1158, %v1157
        %v1188 = vpack.c.b16 %v1160, %v1159
        %v1189 = vpack.c.b16 %v1162, %v1161
        %v1190 = vpack.c.b16 %v1164, %v1163
        %v1191 = vpack.c.b16 %v1166, %v1165
        %v1192 = vpack.c.b16 %v1168, %v1167
        %v1193 = vpack.c.b16 %v1170, %v1169
        %v1194 = vpack.c.b16 %v1172, %v1171
        %v1195 = vpack.c.b16 %v1174, %v1173
        %v1196 = vpack.c.b16 %v1176, %v1175
        %v1197 = vpack.c.b16 %v1178, %v1177
        %v1198 = vpack.c.b16 %v1180, %v1179
        %v1199 = vpack.c.b16 %v1182, %v1181
        %v1200 = vpack.c.b16 %v1184, %v1183
        %v1202 = vsel %vm406, %v1185, 0
        %v1205 = vsel %vm406, %v1186, 0
        %v1208 = vsel %vm406, %v1187, 0
        %v1211 = vsel %vm406, %v1188, 0
        %v1214 = vsel %vm406, %v1189, 0
        %v1217 = vsel %vm406, %v1190, 0
        %v1220 = vsel %vm406, %v1191, 0
        %v1223 = vsel %vm406, %v1192, 0
        %v1226 = vsel %vm406, %v1193, 0
        %v1229 = vsel %vm406, %v1194, 0
        %v1232 = vsel %vm406, %v1195, 0
        %v1235 = vsel %vm406, %v1196, 0
        %v1238 = vsel %vm406, %v1197, 0
        %v1241 = vsel %vm406, %v1198, 0
        %v1244 = vsel %vm406, %v1199, 0
        %v1247 = vsel %vm406, %v1200, 0
        %v1250 = vsel %vm455, %v1152, 0
        %1252 = vmatprep.subr.bf16.mxu0 0
        %1253 = vmatpush1.bf16.msra.mxu0 %v1250
        %1254 = vmatprep.subr.bf16.mxu0 0
        %1255 = vmatpush1.bf16.msra.mxu0 0
        %1256 = vmatprep.subr.bf16.mxu0 0
        %1257 = vmatpush1.bf16.msra.mxu0 0
        %1258 = vmatprep.subr.bf16.mxu0 0
        %1259 = vmatpush1.bf16.msra.mxu0 0
        %1260 = vmatprep.subr.bf16.mxu0 0
        %1261 = vmatpush1.bf16.msra.mxu0 0
        %1262 = vmatprep.subr.bf16.mxu0 0
        %1263 = vmatpush1.bf16.msra.mxu0 0
        %1264 = vmatprep.subr.bf16.mxu0 0
        %1265 = vmatpush1.bf16.msra.mxu0 0
        %1266 = vmatprep.subr.bf16.mxu0 0
        %1267 = vmatpush1.bf16.msra.mxu0 0
        %1268 = vmatprep.subr.bf16.mxu0 0
        %1269 = vmatpush1.bf16.msra.mxu0 0
        %1270 = vmatprep.subr.bf16.mxu0 0
        %1271 = vmatpush1.bf16.msra.mxu0 0
        %1272 = vmatprep.subr.bf16.mxu0 0
        %1273 = vmatpush1.bf16.msra.mxu0 0
        %1274 = vmatprep.subr.bf16.mxu0 0
        %1275 = vmatpush1.bf16.msra.mxu0 0
        %1276 = vmatprep.subr.bf16.mxu0 0
        %1277 = vmatpush1.bf16.msra.mxu0 0
        %1278 = vmatprep.subr.bf16.mxu0 0
        %1279 = vmatpush1.bf16.msra.mxu0 0
        %1280 = vmatprep.subr.bf16.mxu0 0
        %1281 = vmatpush1.bf16.msra.mxu0 0
        %1282 = vmatprep.subr.bf16.mxu0 0
        %1283 = vmatpush1.bf16.msra.mxu0 0
        %1284 = vmatprep.mubr.bf16.mxu0 0
        %1285 = vmatmul.mubr.bf16.gmra.mrb[0].mxu0 %v1202
        %v1286 = vpop.f32.mrb[0].mxu0
        %v1287 = vadd.f32 0.0, %v1286
        %v1288 = vpop.f32.mrb[0].mxu0
        %v1289 = vpop.f32.mrb[0].mxu0
        %v1290 = vadd.f32 0.0, %v1289
        %v1291 = vpop.f32.mrb[0].mxu0
        %1292 = vmatprep.mubr.bf16.mxu0 0
        %1293 = vmatmul.mubr.bf16.gmra.mrb[0].mxu0 %v1205
        %v1294 = vpop.f32.mrb[0].mxu0
        %v1295 = vadd.f32 0.0, %v1294
        %v1296 = vpop.f32.mrb[0].mxu0
        %v1297 = vpop.f32.mrb[0].mxu0
        %v1298 = vadd.f32 0.0, %v1297
        %v1299 = vpop.f32.mrb[0].mxu0
        %1300 = vmatprep.mubr.bf16.mxu0 0
        %1301 = vmatmul.mubr.bf16.gmra.mrb[0].mxu0 %v1208
        %v1302 = vpop.f32.mrb[0].mxu0
        %v1303 = vadd.f32 0.0, %v1302
        %v1304 = vpop.f32.mrb[0].mxu0
        %v1305 = vpop.f32.mrb[0].mxu0
        %v1306 = vadd.f32 0.0, %v1305
        %v1307 = vpop.f32.mrb[0].mxu0
        %1308 = vmatprep.mubr.bf16.mxu0 0
        %1309 = vmatmul.mubr.bf16.gmra.mrb[0].mxu0 %v1211
        %v1310 = vpop.f32.mrb[0].mxu0
        %v1311 = vadd.f32 0.0, %v1310
        %v1312 = vpop.f32.mrb[0].mxu0
        %v1313 = vpop.f32.mrb[0].mxu0
        %v1314 = vadd.f32 0.0, %v1313
        %v1315 = vpop.f32.mrb[0].mxu0
        %1316 = vmatprep.mubr.bf16.mxu0 0
        %1317 = vmatmul.mubr.bf16.gmra.mrb[0].mxu0 %v1214
        %v1318 = vpop.f32.mrb[0].mxu0
        %v1319 = vadd.f32 0.0, %v1318
        %v1320 = vpop.f32.mrb[0].mxu0
        %v1321 = vpop.f32.mrb[0].mxu0
        %v1322 = vadd.f32 0.0, %v1321
        %v1323 = vpop.f32.mrb[0].mxu0
        %1324 = vmatprep.mubr.bf16.mxu0 0
        %1325 = vmatmul.mubr.bf16.gmra.mrb[0].mxu0 %v1217
        %v1326 = vpop.f32.mrb[0].mxu0
        %v1327 = vadd.f32 0.0, %v1326
        %v1328 = vpop.f32.mrb[0].mxu0
        %v1329 = vpop.f32.mrb[0].mxu0
        %v1330 = vadd.f32 0.0, %v1329
        %v1331 = vpop.f32.mrb[0].mxu0
        %1332 = vmatprep.mubr.bf16.mxu0 0
        %1333 = vmatmul.mubr.bf16.gmra.mrb[0].mxu0 %v1220
        %v1334 = vpop.f32.mrb[0].mxu0
        %v1335 = vadd.f32 0.0, %v1334
        %v1336 = vpop.f32.mrb[0].mxu0
        %v1337 = vpop.f32.mrb[0].mxu0
        %v1338 = vadd.f32 0.0, %v1337
        %v1339 = vpop.f32.mrb[0].mxu0
        %1340 = vmatprep.mubr.bf16.mxu0 0
        %1341 = vmatmul.mubr.bf16.gmra.mrb[0].mxu0 %v1223
        %v1342 = vpop.f32.mrb[0].mxu0
        %v1343 = vadd.f32 0.0, %v1342
        %v1344 = vpop.f32.mrb[0].mxu0
        %v1345 = vpop.f32.mrb[0].mxu0
        %v1346 = vadd.f32 0.0, %v1345
        %v1347 = vpop.f32.mrb[0].mxu0
        %1348 = vmatprep.mubr.bf16.mxu0 0
        %1349 = vmatmul.mubr.bf16.gmra.mrb[0].mxu0 %v1226
        %v1350 = vpop.f32.mrb[0].mxu0
        %v1351 = vadd.f32 0.0, %v1350
        %v1352 = vpop.f32.mrb[0].mxu0
        %v1353 = vpop.f32.mrb[0].mxu0
        %v1354 = vadd.f32 0.0, %v1353
        %v1355 = vpop.f32.mrb[0].mxu0
        %1356 = vmatprep.mubr.bf16.mxu0 0
        %1357 = vmatmul.mubr.bf16.gmra.mrb[0].mxu0 %v1229
        %v1358 = vpop.f32.mrb[0].mxu0
        %v1359 = vadd.f32 0.0, %v1358
        %v1360 = vpop.f32.mrb[0].mxu0
        %v1361 = vpop.f32.mrb[0].mxu0
        %v1362 = vadd.f32 0.0, %v1361
        %v1363 = vpop.f32.mrb[0].mxu0
        %1364 = vmatprep.mubr.bf16.mxu0 0
        %1365 = vmatmul.mubr.bf16.gmra.mrb[0].mxu0 %v1232
        %v1366 = vpop.f32.mrb[0].mxu0
        %v1367 = vadd.f32 0.0, %v1366
        %v1368 = vpop.f32.mrb[0].mxu0
        %v1369 = vpop.f32.mrb[0].mxu0
        %v1370 = vadd.f32 0.0, %v1369
        %v1371 = vpop.f32.mrb[0].mxu0
        %1372 = vmatprep.mubr.bf16.mxu0 0
        %1373 = vmatmul.mubr.bf16.gmra.mrb[0].mxu0 %v1235
        %v1374 = vpop.f32.mrb[0].mxu0
        %v1375 = vadd.f32 0.0, %v1374
        %v1376 = vpop.f32.mrb[0].mxu0
        %v1377 = vpop.f32.mrb[0].mxu0
        %v1378 = vadd.f32 0.0, %v1377
        %v1379 = vpop.f32.mrb[0].mxu0
        %1380 = vmatprep.mubr.bf16.mxu0 0
        %1381 = vmatmul.mubr.bf16.gmra.mrb[0].mxu0 %v1238
        %v1382 = vpop.f32.mrb[0].mxu0
        %v1383 = vadd.f32 0.0, %v1382
        %v1384 = vpop.f32.mrb[0].mxu0
        %v1385 = vpop.f32.mrb[0].mxu0
        %v1386 = vadd.f32 0.0, %v1385
        %v1387 = vpop.f32.mrb[0].mxu0
        %1388 = vmatprep.mubr.bf16.mxu0 0
        %1389 = vmatmul.mubr.bf16.gmra.mrb[0].mxu0 %v1241
        %v1390 = vpop.f32.mrb[0].mxu0
        %v1391 = vadd.f32 0.0, %v1390
        %v1392 = vpop.f32.mrb[0].mxu0
        %v1393 = vpop.f32.mrb[0].mxu0
        %v1394 = vadd.f32 0.0, %v1393
        %v1395 = vpop.f32.mrb[0].mxu0
        %1396 = vmatprep.mubr.bf16.mxu0 0
        %1397 = vmatmul.mubr.bf16.gmra.mrb[0].mxu0 %v1244
        %v1398 = vpop.f32.mrb[0].mxu0
        %v1399 = vadd.f32 0.0, %v1398
        %v1400 = vpop.f32.mrb[0].mxu0
        %v1401 = vpop.f32.mrb[0].mxu0
        %v1402 = vadd.f32 0.0, %v1401
        %v1403 = vpop.f32.mrb[0].mxu0
        %1404 = vmatprep.mubr.bf16.mxu0 0
        %1405 = vmatmul.mubr.bf16.gmra.mrb[0].mxu0 %v1247
        %v1406 = vpop.f32.mrb[0].mxu0
        %v1407 = vadd.f32 0.0, %v1406
        %v1408 = vpop.f32.mrb[0].mxu0
        %v1409 = vpop.f32.mrb[0].mxu0
        %v1410 = vadd.f32 0.0, %v1409
        %v1411 = vpop.f32.mrb[0].mxu0
        %1412 = vdwg.mxu0
        %v1413 = vadd.f32 %v1119, %v1287
        %v1414 = vadd.f32 %v1120, %v1290
        %v1415 = vadd.f32 %v1121, %v1295
        %v1416 = vadd.f32 %v1122, %v1298
        %v1417 = vadd.f32 %v1123, %v1303
        %v1418 = vadd.f32 %v1124, %v1306
        %v1419 = vadd.f32 %v1125, %v1311
        %v1420 = vadd.f32 %v1126, %v1314
        %v1421 = vadd.f32 %v1127, %v1319
        %v1422 = vadd.f32 %v1128, %v1322
        %v1423 = vadd.f32 %v1129, %v1327
        %v1424 = vadd.f32 %v1130, %v1330
        %v1425 = vadd.f32 %v1131, %v1335
        %v1426 = vadd.f32 %v1132, %v1338
        %v1427 = vadd.f32 %v1133, %v1343
        %v1428 = vadd.f32 %v1134, %v1346
        %v1429 = vadd.f32 %v1135, %v1351
        %v1430 = vadd.f32 %v1136, %v1354
        %v1431 = vadd.f32 %v1137, %v1359
        %v1432 = vadd.f32 %v1138, %v1362
        %v1433 = vadd.f32 %v1139, %v1367
        %v1434 = vadd.f32 %v1140, %v1370
        %v1435 = vadd.f32 %v1141, %v1375
        %v1436 = vadd.f32 %v1142, %v1378
        %v1437 = vadd.f32 %v1143, %v1383
        %v1438 = vadd.f32 %v1144, %v1386
        %v1439 = vadd.f32 %v1145, %v1391
        %v1440 = vadd.f32 %v1146, %v1394
        %v1441 = vadd.f32 %v1147, %v1399
        %v1442 = vadd.f32 %v1148, %v1402
        %v1443 = vadd.f32 %v1149, %v1407
        %v1444 = vadd.f32 %v1150, %v1410
        %1445 = vst [vmem:[#allocation2] sm:$0xff] %v1413
        %1446 = vst [vmem:[#allocation2 + $0x8] sm:$0xff] %v1414
        %1447 = vst [vmem:[#allocation2 + $0x10] sm:$0xff] %v1415
        %1448 = vst [vmem:[#allocation2 + $0x18] sm:$0xff] %v1416
        %1449 = vst [vmem:[#allocation2 + $0x20] sm:$0xff] %v1417
        %1450 = vst [vmem:[#allocation2 + $0x28] sm:$0xff] %v1418
        %1451 = vst [vmem:[#allocation2 + $0x30] sm:$0xff] %v1419
        %1452 = vst [vmem:[#allocation2 + $0x38] sm:$0xff] %v1420
        %1453 = vst [vmem:[#allocation2 + $0x40] sm:$0xff] %v1421
        %1454 = vst [vmem:[#allocation2 + $0x48] sm:$0xff] %v1422
        %1455 = vst [vmem:[#allocation2 + $0x50] sm:$0xff] %v1423
        %1456 = vst [vmem:[#allocation2 + $0x58] sm:$0xff] %v1424
        %1457 = vst [vmem:[#allocation2 + $0x60] sm:$0xff] %v1425
        %1458 = vst [vmem:[#allocation2 + $0x68] sm:$0xff] %v1426
        %1459 = vst [vmem:[#allocation2 + $0x70] sm:$0xff] %v1427
        %1460 = vst [vmem:[#allocation2 + $0x78] sm:$0xff] %v1428
        %1461 = vst [vmem:[#allocation2 + $0x80] sm:$0xff] %v1429
        %1462 = vst [vmem:[#allocation2 + $0x88] sm:$0xff] %v1430
        %1463 = vst [vmem:[#allocation2 + $0x90] sm:$0xff] %v1431
        %1464 = vst [vmem:[#allocation2 + $0x98] sm:$0xff] %v1432
        %1465 = vst [vmem:[#allocation2 + $0xa0] sm:$0xff] %v1433
        %1466 = vst [vmem:[#allocation2 + $0xa8] sm:$0xff] %v1434
        %1467 = vst [vmem:[#allocation2 + $0xb0] sm:$0xff] %v1435
        %1468 = vst [vmem:[#allocation2 + $0xb8] sm:$0xff] %v1436
        %1469 = vst [vmem:[#allocation2 + $0xc0] sm:$0xff] %v1437
        %1470 = vst [vmem:[#allocation2 + $0xc8] sm:$0xff] %v1438
        %1471 = vst [vmem:[#allocation2 + $0xd0] sm:$0xff] %v1439
        %1472 = vst [vmem:[#allocation2 + $0xd8] sm:$0xff] %v1440
        %1473 = vst [vmem:[#allocation2 + $0xe0] sm:$0xff] %v1441
        %1474 = vst [vmem:[#allocation2 + $0xe8] sm:$0xff] %v1442
        %1475 = vst [vmem:[#allocation2 + $0xf0] sm:$0xff] %v1443
        %1476 = vst [vmem:[#allocation2 + $0xf8] sm:$0xff] %v1444
        %v1477 = vld [vmem:[%s260] sm:$0xe]
        %v1478 = vld [vmem:[%s260 + $0x4] sm:$0xf]
        %v1479 = vld [vmem:[%s260 + $0x8] sm:$0x1]
        %v1480 = vld [vmem:[%s260 + $0xc] sm:$0xe]
        %v1481 = vld [vmem:[%s260 + $0x10] sm:$0xf]
        %v1482 = vld [vmem:[%s260 + $0x14] sm:$0x1]
        %v1483 = vld [vmem:[%s260 + $0x18] sm:$0xe]
        %v1484 = vld [vmem:[%s260 + $0x1c] sm:$0xf]
        %v1485 = vld [vmem:[%s260 + $0x20] sm:$0x1]
        %v1486 = vld [vmem:[%s260 + $0x24] sm:$0xe]
        %v1487 = vld [vmem:[%s260 + $0x28] sm:$0xf]
        %v1488 = vld [vmem:[%s260 + $0x2c] sm:$0x1]
        %v1489 = vld [vmem:[%s260 + $0x30] sm:$0xe]
        %v1490 = vld [vmem:[%s260 + $0x34] sm:$0xf]
        %v1491 = vld [vmem:[%s260 + $0x38] sm:$0x1]
        %v1492 = vld [vmem:[%s260 + $0x3c] sm:$0xe]
        %v1493 = vld [vmem:[%s260 + $0x40] sm:$0xf]
        %v1494 = vld [vmem:[%s260 + $0x44] sm:$0x1]
        %v1495 = vld [vmem:[%s260 + $0x48] sm:$0xe]
        %v1496 = vld [vmem:[%s260 + $0x4c] sm:$0xf]
        %v1497 = vld [vmem:[%s260 + $0x50] sm:$0x1]
        %v1498 = vld [vmem:[%s260 + $0x54] sm:$0xe]
        %v1499 = vld [vmem:[%s260 + $0x58] sm:$0xf]
        %v1500 = vld [vmem:[%s260 + $0x5c] sm:$0x1]
        %v1501 = vld [vmem:[%s260 + $0x60] sm:$0xe]
        %v1502 = vld [vmem:[%s260 + $0x64] sm:$0xf]
        %v1503 = vld [vmem:[%s260 + $0x68] sm:$0x1]
        %v1504 = vld [vmem:[%s260 + $0x6c] sm:$0xe]
        %v1505 = vld [vmem:[%s260 + $0x70] sm:$0xf]
        %v1506 = vld [vmem:[%s260 + $0x74] sm:$0x1]
        %v1507 = vld [vmem:[%s260 + $0x78] sm:$0xe]
        %v1508 = vld [vmem:[%s260 + $0x7c] sm:$0xf]
        %v1509 = vld [vmem:[%s260 + $0x80] sm:$0x1]
        %v1510 = vld [vmem:[%s260 + $0x84] sm:$0xe]
        %v1511 = vld [vmem:[%s260 + $0x88] sm:$0xf]
        %v1512 = vld [vmem:[%s260 + $0x8c] sm:$0x1]
        %v1513 = vld [vmem:[%s260 + $0x90] sm:$0xe]
        %v1514 = vld [vmem:[%s260 + $0x94] sm:$0xf]
        %v1515 = vld [vmem:[%s260 + $0x98] sm:$0x1]
        %v1516 = vld [vmem:[%s260 + $0x9c] sm:$0xe]
        %v1517 = vld [vmem:[%s260 + $0xa0] sm:$0xf]
        %v1518 = vld [vmem:[%s260 + $0xa4] sm:$0x1]
        %v1519 = vld [vmem:[%s260 + $0xa8] sm:$0xe]
        %v1520 = vld [vmem:[%s260 + $0xac] sm:$0xf]
        %v1521 = vld [vmem:[%s260 + $0xb0] sm:$0x1]
        %v1522 = vld [vmem:[%s260 + $0xb4] sm:$0xe]
        %v1523 = vld [vmem:[%s260 + $0xb8] sm:$0xf]
        %v1524 = vld [vmem:[%s260 + $0xbc] sm:$0x1]
        %vm1573 = vcmask 1042432
        %vm1574 = vcmask 1046532
        %vm1575 = vmor %vm1573, %vm1574
        %v1576 = vrot.slane %v1477, 5
        %v1577 = vrot.slane %v1576, 4
        %v1578 = vrot.slane %v1478, 5
        %v1579 = vsel %vm1575, %v1577, %v1578
        %v1580 = vrot.slane %v1578, 4
        %v1581 = vrot.slane %v1479, 5
        %v1582 = vsel %vm1575, %v1580, %v1581
        %v1583 = vrot.slane %v1480, 5
        %v1584 = vrot.slane %v1583, 4
        %v1585 = vrot.slane %v1481, 5
        %v1586 = vsel %vm1575, %v1584, %v1585
        %v1587 = vrot.slane %v1585, 4
        %v1588 = vrot.slane %v1482, 5
        %v1589 = vsel %vm1575, %v1587, %v1588
        %v1590 = vrot.slane %v1483, 5
        %v1591 = vrot.slane %v1590, 4
        %v1592 = vrot.slane %v1484, 5
        %v1593 = vsel %vm1575, %v1591, %v1592
        %v1594 = vrot.slane %v1592, 4
        %v1595 = vrot.slane %v1485, 5
        %v1596 = vsel %vm1575, %v1594, %v1595
        %v1597 = vrot.slane %v1486, 5
        %v1598 = vrot.slane %v1597, 4
        %v1599 = vrot.slane %v1487, 5
        %v1600 = vsel %vm1575, %v1598, %v1599
        %v1601 = vrot.slane %v1599, 4
        %v1602 = vrot.slane %v1488, 5
        %v1603 = vsel %vm1575, %v1601, %v1602
        %v1604 = vrot.slane %v1489, 5
        %v1605 = vrot.slane %v1604, 4
        %v1606 = vrot.slane %v1490, 5
        %v1607 = vsel %vm1575, %v1605, %v1606
        %v1608 = vrot.slane %v1606, 4
        %v1609 = vrot.slane %v1491, 5
        %v1610 = vsel %vm1575, %v1608, %v1609
        %v1611 = vrot.slane %v1492, 5
        %v1612 = vrot.slane %v1611, 4
        %v1613 = vrot.slane %v1493, 5
        %v1614 = vsel %vm1575, %v1612, %v1613
        %v1615 = vrot.slane %v1613, 4
        %v1616 = vrot.slane %v1494, 5
        %v1617 = vsel %vm1575, %v1615, %v1616
        %v1618 = vrot.slane %v1495, 5
        %v1619 = vrot.slane %v1618, 4
        %v1620 = vrot.slane %v1496, 5
        %v1621 = vsel %vm1575, %v1619, %v1620
        %v1622 = vrot.slane %v1620, 4
        %v1623 = vrot.slane %v1497, 5
        %v1624 = vsel %vm1575, %v1622, %v1623
        %v1625 = vrot.slane %v1498, 5
        %v1626 = vrot.slane %v1625, 4
        %v1627 = vrot.slane %v1499, 5
        %v1628 = vsel %vm1575, %v1626, %v1627
        %v1629 = vrot.slane %v1627, 4
        %v1630 = vrot.slane %v1500, 5
        %v1631 = vsel %vm1575, %v1629, %v1630
        %v1632 = vrot.slane %v1501, 5
        %v1633 = vrot.slane %v1632, 4
        %v1634 = vrot.slane %v1502, 5
        %v1635 = vsel %vm1575, %v1633, %v1634
        %v1636 = vrot.slane %v1634, 4
        %v1637 = vrot.slane %v1503, 5
        %v1638 = vsel %vm1575, %v1636, %v1637
        %v1639 = vrot.slane %v1504, 5
        %v1640 = vrot.slane %v1639, 4
        %v1641 = vrot.slane %v1505, 5
        %v1642 = vsel %vm1575, %v1640, %v1641
        %v1643 = vrot.slane %v1641, 4
        %v1644 = vrot.slane %v1506, 5
        %v1645 = vsel %vm1575, %v1643, %v1644
        %v1646 = vrot.slane %v1507, 5
        %v1647 = vrot.slane %v1646, 4
        %v1648 = vrot.slane %v1508, 5
        %v1649 = vsel %vm1575, %v1647, %v1648
        %v1650 = vrot.slane %v1648, 4
        %v1651 = vrot.slane %v1509, 5
        %v1652 = vsel %vm1575, %v1650, %v1651
        %v1653 = vrot.slane %v1510, 5
        %v1654 = vrot.slane %v1653, 4
        %v1655 = vrot.slane %v1511, 5
        %v1656 = vsel %vm1575, %v1654, %v1655
        %v1657 = vrot.slane %v1655, 4
        %v1658 = vrot.slane %v1512, 5
        %v1659 = vsel %vm1575, %v1657, %v1658
        %v1660 = vrot.slane %v1513, 5
        %v1661 = vrot.slane %v1660, 4
        %v1662 = vrot.slane %v1514, 5
        %v1663 = vsel %vm1575, %v1661, %v1662
        %v1664 = vrot.slane %v1662, 4
        %v1665 = vrot.slane %v1515, 5
        %v1666 = vsel %vm1575, %v1664, %v1665
        %v1667 = vrot.slane %v1516, 5
        %v1668 = vrot.slane %v1667, 4
        %v1669 = vrot.slane %v1517, 5
        %v1670 = vsel %vm1575, %v1668, %v1669
        %v1671 = vrot.slane %v1669, 4
        %v1672 = vrot.slane %v1518, 5
        %v1673 = vsel %vm1575, %v1671, %v1672
        %v1674 = vrot.slane %v1519, 5
        %v1675 = vrot.slane %v1674, 4
        %v1676 = vrot.slane %v1520, 5
        %v1677 = vsel %vm1575, %v1675, %v1676
        %v1678 = vrot.slane %v1676, 4
        %v1679 = vrot.slane %v1521, 5
        %v1680 = vsel %vm1575, %v1678, %v1679
        %v1681 = vrot.slane %v1522, 5
        %v1682 = vrot.slane %v1681, 4
        %v1683 = vrot.slane %v1523, 5
        %v1684 = vsel %vm1575, %v1682, %v1683
        %v1685 = vrot.slane %v1683, 4
        %v1686 = vrot.slane %v1524, 5
        %v1687 = vsel %vm1575, %v1685, %v1686
        %v1688 = vld [vmem:[#allocation2] sm:$0xff]
        %v1689 = vld [vmem:[#allocation2 + $0x8] sm:$0xff]
        %v1690 = vld [vmem:[#allocation2 + $0x10] sm:$0xff]
        %v1691 = vld [vmem:[#allocation2 + $0x18] sm:$0xff]
        %v1692 = vld [vmem:[#allocation2 + $0x20] sm:$0xff]
        %v1693 = vld [vmem:[#allocation2 + $0x28] sm:$0xff]
        %v1694 = vld [vmem:[#allocation2 + $0x30] sm:$0xff]
        %v1695 = vld [vmem:[#allocation2 + $0x38] sm:$0xff]
        %v1696 = vld [vmem:[#allocation2 + $0x40] sm:$0xff]
        %v1697 = vld [vmem:[#allocation2 + $0x48] sm:$0xff]
        %v1698 = vld [vmem:[#allocation2 + $0x50] sm:$0xff]
        %v1699 = vld [vmem:[#allocation2 + $0x58] sm:$0xff]
        %v1700 = vld [vmem:[#allocation2 + $0x60] sm:$0xff]
        %v1701 = vld [vmem:[#allocation2 + $0x68] sm:$0xff]
        %v1702 = vld [vmem:[#allocation2 + $0x70] sm:$0xff]
        %v1703 = vld [vmem:[#allocation2 + $0x78] sm:$0xff]
        %v1704 = vld [vmem:[#allocation2 + $0x80] sm:$0xff]
        %v1705 = vld [vmem:[#allocation2 + $0x88] sm:$0xff]
        %v1706 = vld [vmem:[#allocation2 + $0x90] sm:$0xff]
        %v1707 = vld [vmem:[#allocation2 + $0x98] sm:$0xff]
        %v1708 = vld [vmem:[#allocation2 + $0xa0] sm:$0xff]
        %v1709 = vld [vmem:[#allocation2 + $0xa8] sm:$0xff]
        %v1710 = vld [vmem:[#allocation2 + $0xb0] sm:$0xff]
        %v1711 = vld [vmem:[#allocation2 + $0xb8] sm:$0xff]
        %v1712 = vld [vmem:[#allocation2 + $0xc0] sm:$0xff]
        %v1713 = vld [vmem:[#allocation2 + $0xc8] sm:$0xff]
        %v1714 = vld [vmem:[#allocation2 + $0xd0] sm:$0xff]
        %v1715 = vld [vmem:[#allocation2 + $0xd8] sm:$0xff]
        %v1716 = vld [vmem:[#allocation2 + $0xe0] sm:$0xff]
        %v1717 = vld [vmem:[#allocation2 + $0xe8] sm:$0xff]
        %v1718 = vld [vmem:[#allocation2 + $0xf0] sm:$0xff]
        %v1719 = vld [vmem:[#allocation2 + $0xf8] sm:$0xff]
        %s1720 = scalar_lea.vmem %s1, 8
        %v1721 = vld [vmem:[%s1720] sm:$0xf]
        %v1722 = vunpack.c.l.b16 %v1579
        %v1723 = vunpack.c.l.b16 %v1582
        %v1724 = vunpack.c.l.b16 %v1586
        %v1725 = vunpack.c.l.b16 %v1589
        %v1726 = vunpack.c.l.b16 %v1593
        %v1727 = vunpack.c.l.b16 %v1596
        %v1728 = vunpack.c.l.b16 %v1600
        %v1729 = vunpack.c.l.b16 %v1603
        %v1730 = vunpack.c.l.b16 %v1607
        %v1731 = vunpack.c.l.b16 %v1610
        %v1732 = vunpack.c.l.b16 %v1614
        %v1733 = vunpack.c.l.b16 %v1617
        %v1734 = vunpack.c.l.b16 %v1621
        %v1735 = vunpack.c.l.b16 %v1624
        %v1736 = vunpack.c.l.b16 %v1628
        %v1737 = vunpack.c.l.b16 %v1631
        %v1738 = vunpack.c.l.b16 %v1635
        %v1739 = vunpack.c.l.b16 %v1638
        %v1740 = vunpack.c.l.b16 %v1642
        %v1741 = vunpack.c.l.b16 %v1645
        %v1742 = vunpack.c.l.b16 %v1649
        %v1743 = vunpack.c.l.b16 %v1652
        %v1744 = vunpack.c.l.b16 %v1656
        %v1745 = vunpack.c.l.b16 %v1659
        %v1746 = vunpack.c.l.b16 %v1663
        %v1747 = vunpack.c.l.b16 %v1666
        %v1748 = vunpack.c.l.b16 %v1670
        %v1749 = vunpack.c.l.b16 %v1673
        %v1750 = vunpack.c.l.b16 %v1677
        %v1751 = vunpack.c.l.b16 %v1680
        %v1752 = vunpack.c.l.b16 %v1684
        %v1753 = vunpack.c.l.b16 %v1687
        %v1754 = vpack.c.b16 %v1723, %v1722
        %v1755 = vpack.c.b16 %v1725, %v1724
        %v1756 = vpack.c.b16 %v1727, %v1726
        %v1757 = vpack.c.b16 %v1729, %v1728
        %v1758 = vpack.c.b16 %v1731, %v1730
        %v1759 = vpack.c.b16 %v1733, %v1732
        %v1760 = vpack.c.b16 %v1735, %v1734
        %v1761 = vpack.c.b16 %v1737, %v1736
        %v1762 = vpack.c.b16 %v1739, %v1738
        %v1763 = vpack.c.b16 %v1741, %v1740
        %v1764 = vpack.c.b16 %v1743, %v1742
        %v1765 = vpack.c.b16 %v1745, %v1744
        %v1766 = vpack.c.b16 %v1747, %v1746
        %v1767 = vpack.c.b16 %v1749, %v1748
        %v1768 = vpack.c.b16 %v1751, %v1750
        %v1769 = vpack.c.b16 %v1753, %v1752
        %v1771 = vsel %vm406, %v1754, 0
        %v1774 = vsel %vm406, %v1755, 0
        %v1777 = vsel %vm406, %v1756, 0
        %v1780 = vsel %vm406, %v1757, 0
        %v1783 = vsel %vm406, %v1758, 0
        %v1786 = vsel %vm406, %v1759, 0
        %v1789 = vsel %vm406, %v1760, 0
        %v1792 = vsel %vm406, %v1761, 0
        %v1795 = vsel %vm406, %v1762, 0
        %v1798 = vsel %vm406, %v1763, 0
        %v1801 = vsel %vm406, %v1764, 0
        %v1804 = vsel %vm406, %v1765, 0
        %v1807 = vsel %vm406, %v1766, 0
        %v1810 = vsel %vm406, %v1767, 0
        %v1813 = vsel %vm406, %v1768, 0
        %v1816 = vsel %vm406, %v1769, 0
        %v1819 = vsel %vm455, %v1721, 0
        %1821 = vmatprep.subr.bf16.mxu0 0
        %1822 = vmatpush1.bf16.msra.mxu0 %v1819
        %1823 = vmatprep.subr.bf16.mxu0 0
        %1824 = vmatpush1.bf16.msra.mxu0 0
        %1825 = vmatprep.subr.bf16.mxu0 0
        %1826 = vmatpush1.bf16.msra.mxu0 0
        %1827 = vmatprep.subr.bf16.mxu0 0
        %1828 = vmatpush1.bf16.msra.mxu0 0
        %1829 = vmatprep.subr.bf16.mxu0 0
        %1830 = vmatpush1.bf16.msra.mxu0 0
        %1831 = vmatprep.subr.bf16.mxu0 0
        %1832 = vmatpush1.bf16.msra.mxu0 0
        %1833 = vmatprep.subr.bf16.mxu0 0
        %1834 = vmatpush1.bf16.msra.mxu0 0
        %1835 = vmatprep.subr.bf16.mxu0 0
        %1836 = vmatpush1.bf16.msra.mxu0 0
        %1837 = vmatprep.subr.bf16.mxu0 0
        %1838 = vmatpush1.bf16.msra.mxu0 0
        %1839 = vmatprep.subr.bf16.mxu0 0
        %1840 = vmatpush1.bf16.msra.mxu0 0
        %1841 = vmatprep.subr.bf16.mxu0 0
        %1842 = vmatpush1.bf16.msra.mxu0 0
        %1843 = vmatprep.subr.bf16.mxu0 0
        %1844 = vmatpush1.bf16.msra.mxu0 0
        %1845 = vmatprep.subr.bf16.mxu0 0
        %1846 = vmatpush1.bf16.msra.mxu0 0
        %1847 = vmatprep.subr.bf16.mxu0 0
        %1848 = vmatpush1.bf16.msra.mxu0 0
        %1849 = vmatprep.subr.bf16.mxu0 0
        %1850 = vmatpush1.bf16.msra.mxu0 0
        %1851 = vmatprep.subr.bf16.mxu0 0
        %1852 = vmatpush1.bf16.msra.mxu0 0
        %1853 = vmatprep.mubr.bf16.mxu0 0
        %1854 = vmatmul.mubr.bf16.gmra.mrb[0].mxu0 %v1771
        %v1855 = vpop.f32.mrb[0].mxu0
        %v1856 = vadd.f32 0.0, %v1855
        %v1857 = vpop.f32.mrb[0].mxu0
        %v1858 = vpop.f32.mrb[0].mxu0
        %v1859 = vadd.f32 0.0, %v1858
        %v1860 = vpop.f32.mrb[0].mxu0
        %1861 = vmatprep.mubr.bf16.mxu0 0
        %1862 = vmatmul.mubr.bf16.gmra.mrb[0].mxu0 %v1774
        %v1863 = vpop.f32.mrb[0].mxu0
        %v1864 = vadd.f32 0.0, %v1863
        %v1865 = vpop.f32.mrb[0].mxu0
        %v1866 = vpop.f32.mrb[0].mxu0
        %v1867 = vadd.f32 0.0, %v1866
        %v1868 = vpop.f32.mrb[0].mxu0
        %1869 = vmatprep.mubr.bf16.mxu0 0
        %1870 = vmatmul.mubr.bf16.gmra.mrb[0].mxu0 %v1777
        %v1871 = vpop.f32.mrb[0].mxu0
        %v1872 = vadd.f32 0.0, %v1871
        %v1873 = vpop.f32.mrb[0].mxu0
        %v1874 = vpop.f32.mrb[0].mxu0
        %v1875 = vadd.f32 0.0, %v1874
        %v1876 = vpop.f32.mrb[0].mxu0
        %1877 = vmatprep.mubr.bf16.mxu0 0
        %1878 = vmatmul.mubr.bf16.gmra.mrb[0].mxu0 %v1780
        %v1879 = vpop.f32.mrb[0].mxu0
        %v1880 = vadd.f32 0.0, %v1879
        %v1881 = vpop.f32.mrb[0].mxu0
        %v1882 = vpop.f32.mrb[0].mxu0
        %v1883 = vadd.f32 0.0, %v1882
        %v1884 = vpop.f32.mrb[0].mxu0
        %1885 = vmatprep.mubr.bf16.mxu0 0
        %1886 = vmatmul.mubr.bf16.gmra.mrb[0].mxu0 %v1783
        %v1887 = vpop.f32.mrb[0].mxu0
        %v1888 = vadd.f32 0.0, %v1887
        %v1889 = vpop.f32.mrb[0].mxu0
        %v1890 = vpop.f32.mrb[0].mxu0
        %v1891 = vadd.f32 0.0, %v1890
        %v1892 = vpop.f32.mrb[0].mxu0
        %1893 = vmatprep.mubr.bf16.mxu0 0
        %1894 = vmatmul.mubr.bf16.gmra.mrb[0].mxu0 %v1786
        %v1895 = vpop.f32.mrb[0].mxu0
        %v1896 = vadd.f32 0.0, %v1895
        %v1897 = vpop.f32.mrb[0].mxu0
        %v1898 = vpop.f32.mrb[0].mxu0
        %v1899 = vadd.f32 0.0, %v1898
        %v1900 = vpop.f32.mrb[0].mxu0
        %1901 = vmatprep.mubr.bf16.mxu0 0
        %1902 = vmatmul.mubr.bf16.gmra.mrb[0].mxu0 %v1789
        %v1903 = vpop.f32.mrb[0].mxu0
        %v1904 = vadd.f32 0.0, %v1903
        %v1905 = vpop.f32.mrb[0].mxu0
        %v1906 = vpop.f32.mrb[0].mxu0
        %v1907 = vadd.f32 0.0, %v1906
        %v1908 = vpop.f32.mrb[0].mxu0
        %1909 = vmatprep.mubr.bf16.mxu0 0
        %1910 = vmatmul.mubr.bf16.gmra.mrb[0].mxu0 %v1792
        %v1911 = vpop.f32.mrb[0].mxu0
        %v1912 = vadd.f32 0.0, %v1911
        %v1913 = vpop.f32.mrb[0].mxu0
        %v1914 = vpop.f32.mrb[0].mxu0
        %v1915 = vadd.f32 0.0, %v1914
        %v1916 = vpop.f32.mrb[0].mxu0
        %1917 = vmatprep.mubr.bf16.mxu0 0
        %1918 = vmatmul.mubr.bf16.gmra.mrb[0].mxu0 %v1795
        %v1919 = vpop.f32.mrb[0].mxu0
        %v1920 = vadd.f32 0.0, %v1919
        %v1921 = vpop.f32.mrb[0].mxu0
        %v1922 = vpop.f32.mrb[0].mxu0
        %v1923 = vadd.f32 0.0, %v1922
        %v1924 = vpop.f32.mrb[0].mxu0
        %1925 = vmatprep.mubr.bf16.mxu0 0
        %1926 = vmatmul.mubr.bf16.gmra.mrb[0].mxu0 %v1798
        %v1927 = vpop.f32.mrb[0].mxu0
        %v1928 = vadd.f32 0.0, %v1927
        %v1929 = vpop.f32.mrb[0].mxu0
        %v1930 = vpop.f32.mrb[0].mxu0
        %v1931 = vadd.f32 0.0, %v1930
        %v1932 = vpop.f32.mrb[0].mxu0
        %1933 = vmatprep.mubr.bf16.mxu0 0
        %1934 = vmatmul.mubr.bf16.gmra.mrb[0].mxu0 %v1801
        %v1935 = vpop.f32.mrb[0].mxu0
        %v1936 = vadd.f32 0.0, %v1935
        %v1937 = vpop.f32.mrb[0].mxu0
        %v1938 = vpop.f32.mrb[0].mxu0
        %v1939 = vadd.f32 0.0, %v1938
        %v1940 = vpop.f32.mrb[0].mxu0
        %1941 = vmatprep.mubr.bf16.mxu0 0
        %1942 = vmatmul.mubr.bf16.gmra.mrb[0].mxu0 %v1804
        %v1943 = vpop.f32.mrb[0].mxu0
        %v1944 = vadd.f32 0.0, %v1943
        %v1945 = vpop.f32.mrb[0].mxu0
        %v1946 = vpop.f32.mrb[0].mxu0
        %v1947 = vadd.f32 0.0, %v1946
        %v1948 = vpop.f32.mrb[0].mxu0
        %1949 = vmatprep.mubr.bf16.mxu0 0
        %1950 = vmatmul.mubr.bf16.gmra.mrb[0].mxu0 %v1807
        %v1951 = vpop.f32.mrb[0].mxu0
        %v1952 = vadd.f32 0.0, %v1951
        %v1953 = vpop.f32.mrb[0].mxu0
        %v1954 = vpop.f32.mrb[0].mxu0
        %v1955 = vadd.f32 0.0, %v1954
        %v1956 = vpop.f32.mrb[0].mxu0
        %1957 = vmatprep.mubr.bf16.mxu0 0
        %1958 = vmatmul.mubr.bf16.gmra.mrb[0].mxu0 %v1810
        %v1959 = vpop.f32.mrb[0].mxu0
        %v1960 = vadd.f32 0.0, %v1959
        %v1961 = vpop.f32.mrb[0].mxu0
        %v1962 = vpop.f32.mrb[0].mxu0
        %v1963 = vadd.f32 0.0, %v1962
        %v1964 = vpop.f32.mrb[0].mxu0
        %1965 = vmatprep.mubr.bf16.mxu0 0
        %1966 = vmatmul.mubr.bf16.gmra.mrb[0].mxu0 %v1813
        %v1967 = vpop.f32.mrb[0].mxu0
        %v1968 = vadd.f32 0.0, %v1967
        %v1969 = vpop.f32.mrb[0].mxu0
        %v1970 = vpop.f32.mrb[0].mxu0
        %v1971 = vadd.f32 0.0, %v1970
        %v1972 = vpop.f32.mrb[0].mxu0
        %1973 = vmatprep.mubr.bf16.mxu0 0
        %1974 = vmatmul.mubr.bf16.gmra.mrb[0].mxu0 %v1816
        %v1975 = vpop.f32.mrb[0].mxu0
        %v1976 = vadd.f32 0.0, %v1975
        %v1977 = vpop.f32.mrb[0].mxu0
        %v1978 = vpop.f32.mrb[0].mxu0
        %v1979 = vadd.f32 0.0, %v1978
        %v1980 = vpop.f32.mrb[0].mxu0
        %1981 = vdwg.mxu0
        %v1982 = vadd.f32 %v1688, %v1856
        %v1983 = vadd.f32 %v1689, %v1859
        %v1984 = vadd.f32 %v1690, %v1864
        %v1985 = vadd.f32 %v1691, %v1867
        %v1986 = vadd.f32 %v1692, %v1872
        %v1987 = vadd.f32 %v1693, %v1875
        %v1988 = vadd.f32 %v1694, %v1880
        %v1989 = vadd.f32 %v1695, %v1883
        %v1990 = vadd.f32 %v1696, %v1888
        %v1991 = vadd.f32 %v1697, %v1891
        %v1992 = vadd.f32 %v1698, %v1896
        %v1993 = vadd.f32 %v1699, %v1899
        %v1994 = vadd.f32 %v1700, %v1904
        %v1995 = vadd.f32 %v1701, %v1907
        %v1996 = vadd.f32 %v1702, %v1912
        %v1997 = vadd.f32 %v1703, %v1915
        %v1998 = vadd.f32 %v1704, %v1920
        %v1999 = vadd.f32 %v1705, %v1923
        %v2000 = vadd.f32 %v1706, %v1928
        %v2001 = vadd.f32 %v1707, %v1931
        %v2002 = vadd.f32 %v1708, %v1936
        %v2003 = vadd.f32 %v1709, %v1939
        %v2004 = vadd.f32 %v1710, %v1944
        %v2005 = vadd.f32 %v1711, %v1947
        %v2006 = vadd.f32 %v1712, %v1952
        %v2007 = vadd.f32 %v1713, %v1955
        %v2008 = vadd.f32 %v1714, %v1960
        %v2009 = vadd.f32 %v1715, %v1963
        %v2010 = vadd.f32 %v1716, %v1968
        %v2011 = vadd.f32 %v1717, %v1971
        %v2012 = vadd.f32 %v1718, %v1976
        %v2013 = vadd.f32 %v1719, %v1979
        %2014 = vst [vmem:[#allocation2] sm:$0xff] %v1982
        %2015 = vst [vmem:[#allocation2 + $0x8] sm:$0xff] %v1983
        %2016 = vst [vmem:[#allocation2 + $0x10] sm:$0xff] %v1984
        %2017 = vst [vmem:[#allocation2 + $0x18] sm:$0xff] %v1985
        %2018 = vst [vmem:[#allocation2 + $0x20] sm:$0xff] %v1986
        %2019 = vst [vmem:[#allocation2 + $0x28] sm:$0xff] %v1987
        %2020 = vst [vmem:[#allocation2 + $0x30] sm:$0xff] %v1988
        %2021 = vst [vmem:[#allocation2 + $0x38] sm:$0xff] %v1989
        %2022 = vst [vmem:[#allocation2 + $0x40] sm:$0xff] %v1990
        %2023 = vst [vmem:[#allocation2 + $0x48] sm:$0xff] %v1991
        %2024 = vst [vmem:[#allocation2 + $0x50] sm:$0xff] %v1992
        %2025 = vst [vmem:[#allocation2 + $0x58] sm:$0xff] %v1993
        %2026 = vst [vmem:[#allocation2 + $0x60] sm:$0xff] %v1994
        %2027 = vst [vmem:[#allocation2 + $0x68] sm:$0xff] %v1995
        %2028 = vst [vmem:[#allocation2 + $0x70] sm:$0xff] %v1996
        %2029 = vst [vmem:[#allocation2 + $0x78] sm:$0xff] %v1997
        %2030 = vst [vmem:[#allocation2 + $0x80] sm:$0xff] %v1998
        %2031 = vst [vmem:[#allocation2 + $0x88] sm:$0xff] %v1999
        %2032 = vst [vmem:[#allocation2 + $0x90] sm:$0xff] %v2000
        %2033 = vst [vmem:[#allocation2 + $0x98] sm:$0xff] %v2001
        %2034 = vst [vmem:[#allocation2 + $0xa0] sm:$0xff] %v2002
        %2035 = vst [vmem:[#allocation2 + $0xa8] sm:$0xff] %v2003
        %2036 = vst [vmem:[#allocation2 + $0xb0] sm:$0xff] %v2004
        %2037 = vst [vmem:[#allocation2 + $0xb8] sm:$0xff] %v2005
        %2038 = vst [vmem:[#allocation2 + $0xc0] sm:$0xff] %v2006
        %2039 = vst [vmem:[#allocation2 + $0xc8] sm:$0xff] %v2007
        %2040 = vst [vmem:[#allocation2 + $0xd0] sm:$0xff] %v2008
        %2041 = vst [vmem:[#allocation2 + $0xd8] sm:$0xff] %v2009
        %2042 = vst [vmem:[#allocation2 + $0xe0] sm:$0xff] %v2010
        %2043 = vst [vmem:[#allocation2 + $0xe8] sm:$0xff] %v2011
        %2044 = vst [vmem:[#allocation2 + $0xf0] sm:$0xff] %v2012
        %2045 = vst [vmem:[#allocation2 + $0xf8] sm:$0xff] %v2013
        %s2046 = sadd.s32 %s225, 1
        %s2047 = smul.u32 %s2046, 3
        %s2048 = smul.addr %s2047, 4
        %s2049 = scalar_lea.vmem %s222, %s2048
        %v2050 = vld [vmem:[%s2049] sm:$0xf]
        %v2051 = vld [vmem:[%s2049 + $0x4] sm:$0xf]
        %v2052 = vld [vmem:[%s2049 + $0xc] sm:$0xf]
        %v2053 = vld [vmem:[%s2049 + $0x10] sm:$0xf]
        %v2054 = vld [vmem:[%s2049 + $0x18] sm:$0xf]
        %v2055 = vld [vmem:[%s2049 + $0x1c] sm:$0xf]
        %v2056 = vld [vmem:[%s2049 + $0x24] sm:$0xf]
        %v2057 = vld [vmem:[%s2049 + $0x28] sm:$0xf]
        %v2058 = vld [vmem:[%s2049 + $0x30] sm:$0xf]
        %v2059 = vld [vmem:[%s2049 + $0x34] sm:$0xf]
        %v2060 = vld [vmem:[%s2049 + $0x3c] sm:$0xf]
        %v2061 = vld [vmem:[%s2049 + $0x40] sm:$0xf]
        %v2062 = vld [vmem:[%s2049 + $0x48] sm:$0xf]
        %v2063 = vld [vmem:[%s2049 + $0x4c] sm:$0xf]
        %v2064 = vld [vmem:[%s2049 + $0x54] sm:$0xf]
        %v2065 = vld [vmem:[%s2049 + $0x58] sm:$0xf]
        %v2066 = vld [vmem:[%s2049 + $0x60] sm:$0xf]
        %v2067 = vld [vmem:[%s2049 + $0x64] sm:$0xf]
        %v2068 = vld [vmem:[%s2049 + $0x6c] sm:$0xf]
        %v2069 = vld [vmem:[%s2049 + $0x70] sm:$0xf]
        %v2070 = vld [vmem:[%s2049 + $0x78] sm:$0xf]
        %v2071 = vld [vmem:[%s2049 + $0x7c] sm:$0xf]
        %v2072 = vld [vmem:[%s2049 + $0x84] sm:$0xf]
        %v2073 = vld [vmem:[%s2049 + $0x88] sm:$0xf]
        %v2074 = vld [vmem:[%s2049 + $0x90] sm:$0xf]
        %v2075 = vld [vmem:[%s2049 + $0x94] sm:$0xf]
        %v2076 = vld [vmem:[%s2049 + $0x9c] sm:$0xf]
        %v2077 = vld [vmem:[%s2049 + $0xa0] sm:$0xf]
        %v2078 = vld [vmem:[%s2049 + $0xa8] sm:$0xf]
        %v2079 = vld [vmem:[%s2049 + $0xac] sm:$0xf]
        %v2080 = vld [vmem:[%s2049 + $0xb4] sm:$0xf]
        %v2081 = vld [vmem:[%s2049 + $0xb8] sm:$0xf]
        %v2082 = vld [vmem:[#allocation2] sm:$0xff]
        %v2083 = vld [vmem:[#allocation2 + $0x8] sm:$0xff]
        %v2084 = vld [vmem:[#allocation2 + $0x10] sm:$0xff]
        %v2085 = vld [vmem:[#allocation2 + $0x18] sm:$0xff]
        %v2086 = vld [vmem:[#allocation2 + $0x20] sm:$0xff]
        %v2087 = vld [vmem:[#allocation2 + $0x28] sm:$0xff]
        %v2088 = vld [vmem:[#allocation2 + $0x30] sm:$0xff]
        %v2089 = vld [vmem:[#allocation2 + $0x38] sm:$0xff]
        %v2090 = vld [vmem:[#allocation2 + $0x40] sm:$0xff]
        %v2091 = vld [vmem:[#allocation2 + $0x48] sm:$0xff]
        %v2092 = vld [vmem:[#allocation2 + $0x50] sm:$0xff]
        %v2093 = vld [vmem:[#allocation2 + $0x58] sm:$0xff]
        %v2094 = vld [vmem:[#allocation2 + $0x60] sm:$0xff]
        %v2095 = vld [vmem:[#allocation2 + $0x68] sm:$0xff]
        %v2096 = vld [vmem:[#allocation2 + $0x70] sm:$0xff]
        %v2097 = vld [vmem:[#allocation2 + $0x78] sm:$0xff]
        %v2098 = vld [vmem:[#allocation2 + $0x80] sm:$0xff]
        %v2099 = vld [vmem:[#allocation2 + $0x88] sm:$0xff]
        %v2100 = vld [vmem:[#allocation2 + $0x90] sm:$0xff]
        %v2101 = vld [vmem:[#allocation2 + $0x98] sm:$0xff]
        %v2102 = vld [vmem:[#allocation2 + $0xa0] sm:$0xff]
        %v2103 = vld [vmem:[#allocation2 + $0xa8] sm:$0xff]
        %v2104 = vld [vmem:[#allocation2 + $0xb0] sm:$0xff]
        %v2105 = vld [vmem:[#allocation2 + $0xb8] sm:$0xff]
        %v2106 = vld [vmem:[#allocation2 + $0xc0] sm:$0xff]
        %v2107 = vld [vmem:[#allocation2 + $0xc8] sm:$0xff]
        %v2108 = vld [vmem:[#allocation2 + $0xd0] sm:$0xff]
        %v2109 = vld [vmem:[#allocation2 + $0xd8] sm:$0xff]
        %v2110 = vld [vmem:[#allocation2 + $0xe0] sm:$0xff]
        %v2111 = vld [vmem:[#allocation2 + $0xe8] sm:$0xff]
        %v2112 = vld [vmem:[#allocation2 + $0xf0] sm:$0xff]
        %v2113 = vld [vmem:[#allocation2 + $0xf8] sm:$0xff]
        %s2114 = scalar_lea.vmem %s1, 12
        %v2115 = vld [vmem:[%s2114] sm:$0xf]
        %v2148 = vunpack.c.l.b16 %v2050
        %v2149 = vunpack.c.l.b16 %v2051
        %v2150 = vunpack.c.l.b16 %v2052
        %v2151 = vunpack.c.l.b16 %v2053
        %v2152 = vunpack.c.l.b16 %v2054
        %v2153 = vunpack.c.l.b16 %v2055
        %v2154 = vunpack.c.l.b16 %v2056
        %v2155 = vunpack.c.l.b16 %v2057
        %v2156 = vunpack.c.l.b16 %v2058
        %v2157 = vunpack.c.l.b16 %v2059
        %v2158 = vunpack.c.l.b16 %v2060
        %v2159 = vunpack.c.l.b16 %v2061
        %v2160 = vunpack.c.l.b16 %v2062
        %v2161 = vunpack.c.l.b16 %v2063
        %v2162 = vunpack.c.l.b16 %v2064
        %v2163 = vunpack.c.l.b16 %v2065
        %v2164 = vunpack.c.l.b16 %v2066
        %v2165 = vunpack.c.l.b16 %v2067
        %v2166 = vunpack.c.l.b16 %v2068
        %v2167 = vunpack.c.l.b16 %v2069
        %v2168 = vunpack.c.l.b16 %v2070
        %v2169 = vunpack.c.l.b16 %v2071
        %v2170 = vunpack.c.l.b16 %v2072
        %v2171 = vunpack.c.l.b16 %v2073
        %v2172 = vunpack.c.l.b16 %v2074
        %v2173 = vunpack.c.l.b16 %v2075
        %v2174 = vunpack.c.l.b16 %v2076
        %v2175 = vunpack.c.l.b16 %v2077
        %v2176 = vunpack.c.l.b16 %v2078
        %v2177 = vunpack.c.l.b16 %v2079
        %v2178 = vunpack.c.l.b16 %v2080
        %v2179 = vunpack.c.l.b16 %v2081
        %v2180 = vpack.c.b16 %v2149, %v2148
        %v2181 = vpack.c.b16 %v2151, %v2150
        %v2182 = vpack.c.b16 %v2153, %v2152
        %v2183 = vpack.c.b16 %v2155, %v2154
        %v2184 = vpack.c.b16 %v2157, %v2156
        %v2185 = vpack.c.b16 %v2159, %v2158
        %v2186 = vpack.c.b16 %v2161, %v2160
        %v2187 = vpack.c.b16 %v2163, %v2162
        %v2188 = vpack.c.b16 %v2165, %v2164
        %v2189 = vpack.c.b16 %v2167, %v2166
        %v2190 = vpack.c.b16 %v2169, %v2168
        %v2191 = vpack.c.b16 %v2171, %v2170
        %v2192 = vpack.c.b16 %v2173, %v2172
        %v2193 = vpack.c.b16 %v2175, %v2174
        %v2194 = vpack.c.b16 %v2177, %v2176
        %v2195 = vpack.c.b16 %v2179, %v2178
        %v2197 = vsel %vm406, %v2180, 0
        %v2200 = vsel %vm406, %v2181, 0
        %v2203 = vsel %vm406, %v2182, 0
        %v2206 = vsel %vm406, %v2183, 0
        %v2209 = vsel %vm406, %v2184, 0
        %v2212 = vsel %vm406, %v2185, 0
        %v2215 = vsel %vm406, %v2186, 0
        %v2218 = vsel %vm406, %v2187, 0
        %v2221 = vsel %vm406, %v2188, 0
        %v2224 = vsel %vm406, %v2189, 0
        %v2227 = vsel %vm406, %v2190, 0
        %v2230 = vsel %vm406, %v2191, 0
        %v2233 = vsel %vm406, %v2192, 0
        %v2236 = vsel %vm406, %v2193, 0
        %v2239 = vsel %vm406, %v2194, 0
        %v2242 = vsel %vm406, %v2195, 0
        %v2245 = vsel %vm455, %v2115, 0
        %2247 = vmatprep.subr.bf16.mxu0 0
        %2248 = vmatpush1.bf16.msra.mxu0 %v2245
        %2249 = vmatprep.subr.bf16.mxu0 0
        %2250 = vmatpush1.bf16.msra.mxu0 0
        %2251 = vmatprep.subr.bf16.mxu0 0
        %2252 = vmatpush1.bf16.msra.mxu0 0
        %2253 = vmatprep.subr.bf16.mxu0 0
        %2254 = vmatpush1.bf16.msra.mxu0 0
        %2255 = vmatprep.subr.bf16.mxu0 0
        %2256 = vmatpush1.bf16.msra.mxu0 0
        %2257 = vmatprep.subr.bf16.mxu0 0
        %2258 = vmatpush1.bf16.msra.mxu0 0
        %2259 = vmatprep.subr.bf16.mxu0 0
        %2260 = vmatpush1.bf16.msra.mxu0 0
        %2261 = vmatprep.subr.bf16.mxu0 0
        %2262 = vmatpush1.bf16.msra.mxu0 0
        %2263 = vmatprep.subr.bf16.mxu0 0
        %2264 = vmatpush1.bf16.msra.mxu0 0
        %2265 = vmatprep.subr.bf16.mxu0 0
        %2266 = vmatpush1.bf16.msra.mxu0 0
        %2267 = vmatprep.subr.bf16.mxu0 0
        %2268 = vmatpush1.bf16.msra.mxu0 0
        %2269 = vmatprep.subr.bf16.mxu0 0
        %2270 = vmatpush1.bf16.msra.mxu0 0
        %2271 = vmatprep.subr.bf16.mxu0 0
        %2272 = vmatpush1.bf16.msra.mxu0 0
        %2273 = vmatprep.subr.bf16.mxu0 0
        %2274 = vmatpush1.bf16.msra.mxu0 0
        %2275 = vmatprep.subr.bf16.mxu0 0
        %2276 = vmatpush1.bf16.msra.mxu0 0
        %2277 = vmatprep.subr.bf16.mxu0 0
        %2278 = vmatpush1.bf16.msra.mxu0 0
        %2279 = vmatprep.mubr.bf16.mxu0 0
        %2280 = vmatmul.mubr.bf16.gmra.mrb[0].mxu0 %v2197
        %v2281 = vpop.f32.mrb[0].mxu0
        %v2282 = vadd.f32 0.0, %v2281
        %v2283 = vpop.f32.mrb[0].mxu0
        %v2284 = vpop.f32.mrb[0].mxu0
        %v2285 = vadd.f32 0.0, %v2284
        %v2286 = vpop.f32.mrb[0].mxu0
        %2287 = vmatprep.mubr.bf16.mxu0 0
        %2288 = vmatmul.mubr.bf16.gmra.mrb[0].mxu0 %v2200
        %v2289 = vpop.f32.mrb[0].mxu0
        %v2290 = vadd.f32 0.0, %v2289
        %v2291 = vpop.f32.mrb[0].mxu0
        %v2292 = vpop.f32.mrb[0].mxu0
        %v2293 = vadd.f32 0.0, %v2292
        %v2294 = vpop.f32.mrb[0].mxu0
        %2295 = vmatprep.mubr.bf16.mxu0 0
        %2296 = vmatmul.mubr.bf16.gmra.mrb[0].mxu0 %v2203
        %v2297 = vpop.f32.mrb[0].mxu0
        %v2298 = vadd.f32 0.0, %v2297
        %v2299 = vpop.f32.mrb[0].mxu0
        %v2300 = vpop.f32.mrb[0].mxu0
        %v2301 = vadd.f32 0.0, %v2300
        %v2302 = vpop.f32.mrb[0].mxu0
        %2303 = vmatprep.mubr.bf16.mxu0 0
        %2304 = vmatmul.mubr.bf16.gmra.mrb[0].mxu0 %v2206
        %v2305 = vpop.f32.mrb[0].mxu0
        %v2306 = vadd.f32 0.0, %v2305
        %v2307 = vpop.f32.mrb[0].mxu0
        %v2308 = vpop.f32.mrb[0].mxu0
        %v2309 = vadd.f32 0.0, %v2308
        %v2310 = vpop.f32.mrb[0].mxu0
        %2311 = vmatprep.mubr.bf16.mxu0 0
        %2312 = vmatmul.mubr.bf16.gmra.mrb[0].mxu0 %v2209
        %v2313 = vpop.f32.mrb[0].mxu0
        %v2314 = vadd.f32 0.0, %v2313
        %v2315 = vpop.f32.mrb[0].mxu0
        %v2316 = vpop.f32.mrb[0].mxu0
        %v2317 = vadd.f32 0.0, %v2316
        %v2318 = vpop.f32.mrb[0].mxu0
        %2319 = vmatprep.mubr.bf16.mxu0 0
        %2320 = vmatmul.mubr.bf16.gmra.mrb[0].mxu0 %v2212
        %v2321 = vpop.f32.mrb[0].mxu0
        %v2322 = vadd.f32 0.0, %v2321
        %v2323 = vpop.f32.mrb[0].mxu0
        %v2324 = vpop.f32.mrb[0].mxu0
        %v2325 = vadd.f32 0.0, %v2324
        %v2326 = vpop.f32.mrb[0].mxu0
        %2327 = vmatprep.mubr.bf16.mxu0 0
        %2328 = vmatmul.mubr.bf16.gmra.mrb[0].mxu0 %v2215
        %v2329 = vpop.f32.mrb[0].mxu0
        %v2330 = vadd.f32 0.0, %v2329
        %v2331 = vpop.f32.mrb[0].mxu0
        %v2332 = vpop.f32.mrb[0].mxu0
        %v2333 = vadd.f32 0.0, %v2332
        %v2334 = vpop.f32.mrb[0].mxu0
        %2335 = vmatprep.mubr.bf16.mxu0 0
        %2336 = vmatmul.mubr.bf16.gmra.mrb[0].mxu0 %v2218
        %v2337 = vpop.f32.mrb[0].mxu0
        %v2338 = vadd.f32 0.0, %v2337
        %v2339 = vpop.f32.mrb[0].mxu0
        %v2340 = vpop.f32.mrb[0].mxu0
        %v2341 = vadd.f32 0.0, %v2340
        %v2342 = vpop.f32.mrb[0].mxu0
        %2343 = vmatprep.mubr.bf16.mxu0 0
        %2344 = vmatmul.mubr.bf16.gmra.mrb[0].mxu0 %v2221
        %v2345 = vpop.f32.mrb[0].mxu0
        %v2346 = vadd.f32 0.0, %v2345
        %v2347 = vpop.f32.mrb[0].mxu0
        %v2348 = vpop.f32.mrb[0].mxu0
        %v2349 = vadd.f32 0.0, %v2348
        %v2350 = vpop.f32.mrb[0].mxu0
        %2351 = vmatprep.mubr.bf16.mxu0 0
        %2352 = vmatmul.mubr.bf16.gmra.mrb[0].mxu0 %v2224
        %v2353 = vpop.f32.mrb[0].mxu0
        %v2354 = vadd.f32 0.0, %v2353
        %v2355 = vpop.f32.mrb[0].mxu0
        %v2356 = vpop.f32.mrb[0].mxu0
        %v2357 = vadd.f32 0.0, %v2356
        %v2358 = vpop.f32.mrb[0].mxu0
        %2359 = vmatprep.mubr.bf16.mxu0 0
        %2360 = vmatmul.mubr.bf16.gmra.mrb[0].mxu0 %v2227
        %v2361 = vpop.f32.mrb[0].mxu0
        %v2362 = vadd.f32 0.0, %v2361
        %v2363 = vpop.f32.mrb[0].mxu0
        %v2364 = vpop.f32.mrb[0].mxu0
        %v2365 = vadd.f32 0.0, %v2364
        %v2366 = vpop.f32.mrb[0].mxu0
        %2367 = vmatprep.mubr.bf16.mxu0 0
        %2368 = vmatmul.mubr.bf16.gmra.mrb[0].mxu0 %v2230
        %v2369 = vpop.f32.mrb[0].mxu0
        %v2370 = vadd.f32 0.0, %v2369
        %v2371 = vpop.f32.mrb[0].mxu0
        %v2372 = vpop.f32.mrb[0].mxu0
        %v2373 = vadd.f32 0.0, %v2372
        %v2374 = vpop.f32.mrb[0].mxu0
        %2375 = vmatprep.mubr.bf16.mxu0 0
        %2376 = vmatmul.mubr.bf16.gmra.mrb[0].mxu0 %v2233
        %v2377 = vpop.f32.mrb[0].mxu0
        %v2378 = vadd.f32 0.0, %v2377
        %v2379 = vpop.f32.mrb[0].mxu0
        %v2380 = vpop.f32.mrb[0].mxu0
        %v2381 = vadd.f32 0.0, %v2380
        %v2382 = vpop.f32.mrb[0].mxu0
        %2383 = vmatprep.mubr.bf16.mxu0 0
        %2384 = vmatmul.mubr.bf16.gmra.mrb[0].mxu0 %v2236
        %v2385 = vpop.f32.mrb[0].mxu0
        %v2386 = vadd.f32 0.0, %v2385
        %v2387 = vpop.f32.mrb[0].mxu0
        %v2388 = vpop.f32.mrb[0].mxu0
        %v2389 = vadd.f32 0.0, %v2388
        %v2390 = vpop.f32.mrb[0].mxu0
        %2391 = vmatprep.mubr.bf16.mxu0 0
        %2392 = vmatmul.mubr.bf16.gmra.mrb[0].mxu0 %v2239
        %v2393 = vpop.f32.mrb[0].mxu0
        %v2394 = vadd.f32 0.0, %v2393
        %v2395 = vpop.f32.mrb[0].mxu0
        %v2396 = vpop.f32.mrb[0].mxu0
        %v2397 = vadd.f32 0.0, %v2396
        %v2398 = vpop.f32.mrb[0].mxu0
        %2399 = vmatprep.mubr.bf16.mxu0 0
        %2400 = vmatmul.mubr.bf16.gmra.mrb[0].mxu0 %v2242
        %v2401 = vpop.f32.mrb[0].mxu0
        %v2402 = vadd.f32 0.0, %v2401
        %v2403 = vpop.f32.mrb[0].mxu0
        %v2404 = vpop.f32.mrb[0].mxu0
        %v2405 = vadd.f32 0.0, %v2404
        %v2406 = vpop.f32.mrb[0].mxu0
        %2407 = vdwg.mxu0
        %v2408 = vadd.f32 %v2082, %v2282
        %v2409 = vadd.f32 %v2083, %v2285
        %v2410 = vadd.f32 %v2084, %v2290
        %v2411 = vadd.f32 %v2085, %v2293
        %v2412 = vadd.f32 %v2086, %v2298
        %v2413 = vadd.f32 %v2087, %v2301
        %v2414 = vadd.f32 %v2088, %v2306
        %v2415 = vadd.f32 %v2089, %v2309
        %v2416 = vadd.f32 %v2090, %v2314
        %v2417 = vadd.f32 %v2091, %v2317
        %v2418 = vadd.f32 %v2092, %v2322
        %v2419 = vadd.f32 %v2093, %v2325
        %v2420 = vadd.f32 %v2094, %v2330
        %v2421 = vadd.f32 %v2095, %v2333
        %v2422 = vadd.f32 %v2096, %v2338
        %v2423 = vadd.f32 %v2097, %v2341
        %v2424 = vadd.f32 %v2098, %v2346
        %v2425 = vadd.f32 %v2099, %v2349
        %v2426 = vadd.f32 %v2100, %v2354
        %v2427 = vadd.f32 %v2101, %v2357
        %v2428 = vadd.f32 %v2102, %v2362
        %v2429 = vadd.f32 %v2103, %v2365
        %v2430 = vadd.f32 %v2104, %v2370
        %v2431 = vadd.f32 %v2105, %v2373
        %v2432 = vadd.f32 %v2106, %v2378
        %v2433 = vadd.f32 %v2107, %v2381
        %v2434 = vadd.f32 %v2108, %v2386
        %v2435 = vadd.f32 %v2109, %v2389
        %v2436 = vadd.f32 %v2110, %v2394
        %v2437 = vadd.f32 %v2111, %v2397
        %v2438 = vadd.f32 %v2112, %v2402
        %v2439 = vadd.f32 %v2113, %v2405
        %2440 = vst [vmem:[#allocation2] sm:$0xff] %v2408
        %2441 = vst [vmem:[#allocation2 + $0x8] sm:$0xff] %v2409
        %2442 = vst [vmem:[#allocation2 + $0x10] sm:$0xff] %v2410
        %2443 = vst [vmem:[#allocation2 + $0x18] sm:$0xff] %v2411
        %2444 = vst [vmem:[#allocation2 + $0x20] sm:$0xff] %v2412
        %2445 = vst [vmem:[#allocation2 + $0x28] sm:$0xff] %v2413
        %2446 = vst [vmem:[#allocation2 + $0x30] sm:$0xff] %v2414
        %2447 = vst [vmem:[#allocation2 + $0x38] sm:$0xff] %v2415
        %2448 = vst [vmem:[#allocation2 + $0x40] sm:$0xff] %v2416
        %2449 = vst [vmem:[#allocation2 + $0x48] sm:$0xff] %v2417
        %2450 = vst [vmem:[#allocation2 + $0x50] sm:$0xff] %v2418
        %2451 = vst [vmem:[#allocation2 + $0x58] sm:$0xff] %v2419
        %2452 = vst [vmem:[#allocation2 + $0x60] sm:$0xff] %v2420
        %2453 = vst [vmem:[#allocation2 + $0x68] sm:$0xff] %v2421
        %2454 = vst [vmem:[#allocation2 + $0x70] sm:$0xff] %v2422
        %2455 = vst [vmem:[#allocation2 + $0x78] sm:$0xff] %v2423
        %2456 = vst [vmem:[#allocation2 + $0x80] sm:$0xff] %v2424
        %2457 = vst [vmem:[#allocation2 + $0x88] sm:$0xff] %v2425
        %2458 = vst [vmem:[#allocation2 + $0x90] sm:$0xff] %v2426
        %2459 = vst [vmem:[#allocation2 + $0x98] sm:$0xff] %v2427
        %2460 = vst [vmem:[#allocation2 + $0xa0] sm:$0xff] %v2428
        %2461 = vst [vmem:[#allocation2 + $0xa8] sm:$0xff] %v2429
        %2462 = vst [vmem:[#allocation2 + $0xb0] sm:$0xff] %v2430
        %2463 = vst [vmem:[#allocation2 + $0xb8] sm:$0xff] %v2431
        %2464 = vst [vmem:[#allocation2 + $0xc0] sm:$0xff] %v2432
        %2465 = vst [vmem:[#allocation2 + $0xc8] sm:$0xff] %v2433
        %2466 = vst [vmem:[#allocation2 + $0xd0] sm:$0xff] %v2434
        %2467 = vst [vmem:[#allocation2 + $0xd8] sm:$0xff] %v2435
        %2468 = vst [vmem:[#allocation2 + $0xe0] sm:$0xff] %v2436
        %2469 = vst [vmem:[#allocation2 + $0xe8] sm:$0xff] %v2437
        %2470 = vst [vmem:[#allocation2 + $0xf0] sm:$0xff] %v2438
        %2471 = vst [vmem:[#allocation2 + $0xf8] sm:$0xff] %v2439
        %v2472 = vld [vmem:[%s2049] sm:$0xf]
        %v2473 = vld [vmem:[%s2049 + $0x4] sm:$0xf]
        %v2474 = vld [vmem:[%s2049 + $0x8] sm:$0x1]
        %v2475 = vld [vmem:[%s2049 + $0xc] sm:$0xf]
        %v2476 = vld [vmem:[%s2049 + $0x10] sm:$0xf]
        %v2477 = vld [vmem:[%s2049 + $0x14] sm:$0x1]
        %v2478 = vld [vmem:[%s2049 + $0x18] sm:$0xf]
        %v2479 = vld [vmem:[%s2049 + $0x1c] sm:$0xf]
        %v2480 = vld [vmem:[%s2049 + $0x20] sm:$0x1]
        %v2481 = vld [vmem:[%s2049 + $0x24] sm:$0xf]
        %v2482 = vld [vmem:[%s2049 + $0x28] sm:$0xf]
        %v2483 = vld [vmem:[%s2049 + $0x2c] sm:$0x1]
        %v2484 = vld [vmem:[%s2049 + $0x30] sm:$0xf]
        %v2485 = vld [vmem:[%s2049 + $0x34] sm:$0xf]
        %v2486 = vld [vmem:[%s2049 + $0x38] sm:$0x1]
        %v2487 = vld [vmem:[%s2049 + $0x3c] sm:$0xf]
        %v2488 = vld [vmem:[%s2049 + $0x40] sm:$0xf]
        %v2489 = vld [vmem:[%s2049 + $0x44] sm:$0x1]
        %v2490 = vld [vmem:[%s2049 + $0x48] sm:$0xf]
        %v2491 = vld [vmem:[%s2049 + $0x4c] sm:$0xf]
        %v2492 = vld [vmem:[%s2049 + $0x50] sm:$0x1]
        %v2493 = vld [vmem:[%s2049 + $0x54] sm:$0xf]
        %v2494 = vld [vmem:[%s2049 + $0x58] sm:$0xf]
        %v2495 = vld [vmem:[%s2049 + $0x5c] sm:$0x1]
        %v2496 = vld [vmem:[%s2049 + $0x60] sm:$0xf]
        %v2497 = vld [vmem:[%s2049 + $0x64] sm:$0xf]
        %v2498 = vld [vmem:[%s2049 + $0x68] sm:$0x1]
        %v2499 = vld [vmem:[%s2049 + $0x6c] sm:$0xf]
        %v2500 = vld [vmem:[%s2049 + $0x70] sm:$0xf]
        %v2501 = vld [vmem:[%s2049 + $0x74] sm:$0x1]
        %v2502 = vld [vmem:[%s2049 + $0x78] sm:$0xf]
        %v2503 = vld [vmem:[%s2049 + $0x7c] sm:$0xf]
        %v2504 = vld [vmem:[%s2049 + $0x80] sm:$0x1]
        %v2505 = vld [vmem:[%s2049 + $0x84] sm:$0xf]
        %v2506 = vld [vmem:[%s2049 + $0x88] sm:$0xf]
        %v2507 = vld [vmem:[%s2049 + $0x8c] sm:$0x1]
        %v2508 = vld [vmem:[%s2049 + $0x90] sm:$0xf]
        %v2509 = vld [vmem:[%s2049 + $0x94] sm:$0xf]
        %v2510 = vld [vmem:[%s2049 + $0x98] sm:$0x1]
        %v2511 = vld [vmem:[%s2049 + $0x9c] sm:$0xf]
        %v2512 = vld [vmem:[%s2049 + $0xa0] sm:$0xf]
        %v2513 = vld [vmem:[%s2049 + $0xa4] sm:$0x1]
        %v2514 = vld [vmem:[%s2049 + $0xa8] sm:$0xf]
        %v2515 = vld [vmem:[%s2049 + $0xac] sm:$0xf]
        %v2516 = vld [vmem:[%s2049 + $0xb0] sm:$0x1]
        %v2517 = vld [vmem:[%s2049 + $0xb4] sm:$0xf]
        %v2518 = vld [vmem:[%s2049 + $0xb8] sm:$0xf]
        %v2519 = vld [vmem:[%s2049 + $0xbc] sm:$0x1]
        %v2521 = vshrl.u32 %v2472, 16
        %v2523 = vrot.slane %v2521, 4
        %v2524 = vshll.u32 %v2472, 16
        %v2526 = vrot.slane %v2524, 5
        %v2527 = vor.u32 %v2523, %v2526
        %v2528 = vrot.slane %v2527, 4
        %v2530 = vshll.u32 %v2473, 16
        %v2532 = vrot.slane %v2530, 5
        %v2533 = vsel %vm734, %v2528, %v2532
        %v2534 = vshrl.u32 %v2473, 16
        %v2536 = vrot.slane %v2534, 4
        %v2537 = vor.u32 %v2536, %v2532
        %v2538 = vrot.slane %v2537, 4
        %v2540 = vshll.u32 %v2474, 16
        %v2542 = vrot.slane %v2540, 5
        %v2543 = vsel %vm734, %v2538, %v2542
        %v2545 = vshrl.u32 %v2475, 16
        %v2547 = vrot.slane %v2545, 4
        %v2548 = vshll.u32 %v2475, 16
        %v2550 = vrot.slane %v2548, 5
        %v2551 = vor.u32 %v2547, %v2550
        %v2552 = vrot.slane %v2551, 4
        %v2554 = vshll.u32 %v2476, 16
        %v2556 = vrot.slane %v2554, 5
        %v2557 = vsel %vm734, %v2552, %v2556
        %v2558 = vshrl.u32 %v2476, 16
        %v2560 = vrot.slane %v2558, 4
        %v2561 = vor.u32 %v2560, %v2556
        %v2562 = vrot.slane %v2561, 4
        %v2564 = vshll.u32 %v2477, 16
        %v2566 = vrot.slane %v2564, 5
        %v2567 = vsel %vm734, %v2562, %v2566
        %v2569 = vshrl.u32 %v2478, 16
        %v2571 = vrot.slane %v2569, 4
        %v2572 = vshll.u32 %v2478, 16
        %v2574 = vrot.slane %v2572, 5
        %v2575 = vor.u32 %v2571, %v2574
        %v2576 = vrot.slane %v2575, 4
        %v2578 = vshll.u32 %v2479, 16
        %v2580 = vrot.slane %v2578, 5
        %v2581 = vsel %vm734, %v2576, %v2580
        %v2582 = vshrl.u32 %v2479, 16
        %v2584 = vrot.slane %v2582, 4
        %v2585 = vor.u32 %v2584, %v2580
        %v2586 = vrot.slane %v2585, 4
        %v2588 = vshll.u32 %v2480, 16
        %v2590 = vrot.slane %v2588, 5
        %v2591 = vsel %vm734, %v2586, %v2590
        %v2593 = vshrl.u32 %v2481, 16
        %v2595 = vrot.slane %v2593, 4
        %v2596 = vshll.u32 %v2481, 16
        %v2598 = vrot.slane %v2596, 5
        %v2599 = vor.u32 %v2595, %v2598
        %v2600 = vrot.slane %v2599, 4
        %v2602 = vshll.u32 %v2482, 16
        %v2604 = vrot.slane %v2602, 5
        %v2605 = vsel %vm734, %v2600, %v2604
        %v2606 = vshrl.u32 %v2482, 16
        %v2608 = vrot.slane %v2606, 4
        %v2609 = vor.u32 %v2608, %v2604
        %v2610 = vrot.slane %v2609, 4
        %v2612 = vshll.u32 %v2483, 16
        %v2614 = vrot.slane %v2612, 5
        %v2615 = vsel %vm734, %v2610, %v2614
        %v2617 = vshrl.u32 %v2484, 16
        %v2619 = vrot.slane %v2617, 4
        %v2620 = vshll.u32 %v2484, 16
        %v2622 = vrot.slane %v2620, 5
        %v2623 = vor.u32 %v2619, %v2622
        %v2624 = vrot.slane %v2623, 4
        %v2626 = vshll.u32 %v2485, 16
        %v2628 = vrot.slane %v2626, 5
        %v2629 = vsel %vm734, %v2624, %v2628
        %v2630 = vshrl.u32 %v2485, 16
        %v2632 = vrot.slane %v2630, 4
        %v2633 = vor.u32 %v2632, %v2628
        %v2634 = vrot.slane %v2633, 4
        %v2636 = vshll.u32 %v2486, 16
        %v2638 = vrot.slane %v2636, 5
        %v2639 = vsel %vm734, %v2634, %v2638
        %v2641 = vshrl.u32 %v2487, 16
        %v2643 = vrot.slane %v2641, 4
        %v2644 = vshll.u32 %v2487, 16
        %v2646 = vrot.slane %v2644, 5
        %v2647 = vor.u32 %v2643, %v2646
        %v2648 = vrot.slane %v2647, 4
        %v2650 = vshll.u32 %v2488, 16
        %v2652 = vrot.slane %v2650, 5
        %v2653 = vsel %vm734, %v2648, %v2652
        %v2654 = vshrl.u32 %v2488, 16
        %v2656 = vrot.slane %v2654, 4
        %v2657 = vor.u32 %v2656, %v2652
        %v2658 = vrot.slane %v2657, 4
        %v2660 = vshll.u32 %v2489, 16
        %v2662 = vrot.slane %v2660, 5
        %v2663 = vsel %vm734, %v2658, %v2662
        %v2665 = vshrl.u32 %v2490, 16
        %v2667 = vrot.slane %v2665, 4
        %v2668 = vshll.u32 %v2490, 16
        %v2670 = vrot.slane %v2668, 5
        %v2671 = vor.u32 %v2667, %v2670
        %v2672 = vrot.slane %v2671, 4
        %v2674 = vshll.u32 %v2491, 16
        %v2676 = vrot.slane %v2674, 5
        %v2677 = vsel %vm734, %v2672, %v2676
        %v2678 = vshrl.u32 %v2491, 16
        %v2680 = vrot.slane %v2678, 4
        %v2681 = vor.u32 %v2680, %v2676
        %v2682 = vrot.slane %v2681, 4
        %v2684 = vshll.u32 %v2492, 16
        %v2686 = vrot.slane %v2684, 5
        %v2687 = vsel %vm734, %v2682, %v2686
        %v2689 = vshrl.u32 %v2493, 16
        %v2691 = vrot.slane %v2689, 4
        %v2692 = vshll.u32 %v2493, 16
        %v2694 = vrot.slane %v2692, 5
        %v2695 = vor.u32 %v2691, %v2694
        %v2696 = vrot.slane %v2695, 4
        %v2698 = vshll.u32 %v2494, 16
        %v2700 = vrot.slane %v2698, 5
        %v2701 = vsel %vm734, %v2696, %v2700
        %v2702 = vshrl.u32 %v2494, 16
        %v2704 = vrot.slane %v2702, 4
        %v2705 = vor.u32 %v2704, %v2700
        %v2706 = vrot.slane %v2705, 4
        %v2708 = vshll.u32 %v2495, 16
        %v2710 = vrot.slane %v2708, 5
        %v2711 = vsel %vm734, %v2706, %v2710
        %v2713 = vshrl.u32 %v2496, 16
        %v2715 = vrot.slane %v2713, 4
        %v2716 = vshll.u32 %v2496, 16
        %v2718 = vrot.slane %v2716, 5
        %v2719 = vor.u32 %v2715, %v2718
        %v2720 = vrot.slane %v2719, 4
        %v2722 = vshll.u32 %v2497, 16
        %v2724 = vrot.slane %v2722, 5
        %v2725 = vsel %vm734, %v2720, %v2724
        %v2726 = vshrl.u32 %v2497, 16
        %v2728 = vrot.slane %v2726, 4
        %v2729 = vor.u32 %v2728, %v2724
        %v2730 = vrot.slane %v2729, 4
        %v2732 = vshll.u32 %v2498, 16
        %v2734 = vrot.slane %v2732, 5
        %v2735 = vsel %vm734, %v2730, %v2734
        %v2737 = vshrl.u32 %v2499, 16
        %v2739 = vrot.slane %v2737, 4
        %v2740 = vshll.u32 %v2499, 16
        %v2742 = vrot.slane %v2740, 5
        %v2743 = vor.u32 %v2739, %v2742
        %v2744 = vrot.slane %v2743, 4
        %v2746 = vshll.u32 %v2500, 16
        %v2748 = vrot.slane %v2746, 5
        %v2749 = vsel %vm734, %v2744, %v2748
        %v2750 = vshrl.u32 %v2500, 16
        %v2752 = vrot.slane %v2750, 4
        %v2753 = vor.u32 %v2752, %v2748
        %v2754 = vrot.slane %v2753, 4
        %v2756 = vshll.u32 %v2501, 16
        %v2758 = vrot.slane %v2756, 5
        %v2759 = vsel %vm734, %v2754, %v2758
        %v2761 = vshrl.u32 %v2502, 16
        %v2763 = vrot.slane %v2761, 4
        %v2764 = vshll.u32 %v2502, 16
        %v2766 = vrot.slane %v2764, 5
        %v2767 = vor.u32 %v2763, %v2766
        %v2768 = vrot.slane %v2767, 4
        %v2770 = vshll.u32 %v2503, 16
        %v2772 = vrot.slane %v2770, 5
        %v2773 = vsel %vm734, %v2768, %v2772
        %v2774 = vshrl.u32 %v2503, 16
        %v2776 = vrot.slane %v2774, 4
        %v2777 = vor.u32 %v2776, %v2772
        %v2778 = vrot.slane %v2777, 4
        %v2780 = vshll.u32 %v2504, 16
        %v2782 = vrot.slane %v2780, 5
        %v2783 = vsel %vm734, %v2778, %v2782
        %v2785 = vshrl.u32 %v2505, 16
        %v2787 = vrot.slane %v2785, 4
        %v2788 = vshll.u32 %v2505, 16
        %v2790 = vrot.slane %v2788, 5
        %v2791 = vor.u32 %v2787, %v2790
        %v2792 = vrot.slane %v2791, 4
        %v2794 = vshll.u32 %v2506, 16
        %v2796 = vrot.slane %v2794, 5
        %v2797 = vsel %vm734, %v2792, %v2796
        %v2798 = vshrl.u32 %v2506, 16
        %v2800 = vrot.slane %v2798, 4
        %v2801 = vor.u32 %v2800, %v2796
        %v2802 = vrot.slane %v2801, 4
        %v2804 = vshll.u32 %v2507, 16
        %v2806 = vrot.slane %v2804, 5
        %v2807 = vsel %vm734, %v2802, %v2806
        %v2809 = vshrl.u32 %v2508, 16
        %v2811 = vrot.slane %v2809, 4
        %v2812 = vshll.u32 %v2508, 16
        %v2814 = vrot.slane %v2812, 5
        %v2815 = vor.u32 %v2811, %v2814
        %v2816 = vrot.slane %v2815, 4
        %v2818 = vshll.u32 %v2509, 16
        %v2820 = vrot.slane %v2818, 5
        %v2821 = vsel %vm734, %v2816, %v2820
        %v2822 = vshrl.u32 %v2509, 16
        %v2824 = vrot.slane %v2822, 4
        %v2825 = vor.u32 %v2824, %v2820
        %v2826 = vrot.slane %v2825, 4
        %v2828 = vshll.u32 %v2510, 16
        %v2830 = vrot.slane %v2828, 5
        %v2831 = vsel %vm734, %v2826, %v2830
        %v2833 = vshrl.u32 %v2511, 16
        %v2835 = vrot.slane %v2833, 4
        %v2836 = vshll.u32 %v2511, 16
        %v2838 = vrot.slane %v2836, 5
        %v2839 = vor.u32 %v2835, %v2838
        %v2840 = vrot.slane %v2839, 4
        %v2842 = vshll.u32 %v2512, 16
        %v2844 = vrot.slane %v2842, 5
        %v2845 = vsel %vm734, %v2840, %v2844
        %v2846 = vshrl.u32 %v2512, 16
        %v2848 = vrot.slane %v2846, 4
        %v2849 = vor.u32 %v2848, %v2844
        %v2850 = vrot.slane %v2849, 4
        %v2852 = vshll.u32 %v2513, 16
        %v2854 = vrot.slane %v2852, 5
        %v2855 = vsel %vm734, %v2850, %v2854
        %v2857 = vshrl.u32 %v2514, 16
        %v2859 = vrot.slane %v2857, 4
        %v2860 = vshll.u32 %v2514, 16
        %v2862 = vrot.slane %v2860, 5
        %v2863 = vor.u32 %v2859, %v2862
        %v2864 = vrot.slane %v2863, 4
        %v2866 = vshll.u32 %v2515, 16
        %v2868 = vrot.slane %v2866, 5
        %v2869 = vsel %vm734, %v2864, %v2868
        %v2870 = vshrl.u32 %v2515, 16
        %v2872 = vrot.slane %v2870, 4
        %v2873 = vor.u32 %v2872, %v2868
        %v2874 = vrot.slane %v2873, 4
        %v2876 = vshll.u32 %v2516, 16
        %v2878 = vrot.slane %v2876, 5
        %v2879 = vsel %vm734, %v2874, %v2878
        %v2881 = vshrl.u32 %v2517, 16
        %v2883 = vrot.slane %v2881, 4
        %v2884 = vshll.u32 %v2517, 16
        %v2886 = vrot.slane %v2884, 5
        %v2887 = vor.u32 %v2883, %v2886
        %v2888 = vrot.slane %v2887, 4
        %v2890 = vshll.u32 %v2518, 16
        %v2892 = vrot.slane %v2890, 5
        %v2893 = vsel %vm734, %v2888, %v2892
        %v2894 = vshrl.u32 %v2518, 16
        %v2896 = vrot.slane %v2894, 4
        %v2897 = vor.u32 %v2896, %v2892
        %v2898 = vrot.slane %v2897, 4
        %v2900 = vshll.u32 %v2519, 16
        %v2902 = vrot.slane %v2900, 5
        %v2903 = vsel %vm734, %v2898, %v2902
        %v2904 = vld [vmem:[#allocation2] sm:$0xff]
        %v2905 = vld [vmem:[#allocation2 + $0x8] sm:$0xff]
        %v2906 = vld [vmem:[#allocation2 + $0x10] sm:$0xff]
        %v2907 = vld [vmem:[#allocation2 + $0x18] sm:$0xff]
        %v2908 = vld [vmem:[#allocation2 + $0x20] sm:$0xff]
        %v2909 = vld [vmem:[#allocation2 + $0x28] sm:$0xff]
        %v2910 = vld [vmem:[#allocation2 + $0x30] sm:$0xff]
        %v2911 = vld [vmem:[#allocation2 + $0x38] sm:$0xff]
        %v2912 = vld [vmem:[#allocation2 + $0x40] sm:$0xff]
        %v2913 = vld [vmem:[#allocation2 + $0x48] sm:$0xff]
        %v2914 = vld [vmem:[#allocation2 + $0x50] sm:$0xff]
        %v2915 = vld [vmem:[#allocation2 + $0x58] sm:$0xff]
        %v2916 = vld [vmem:[#allocation2 + $0x60] sm:$0xff]
        %v2917 = vld [vmem:[#allocation2 + $0x68] sm:$0xff]
        %v2918 = vld [vmem:[#allocation2 + $0x70] sm:$0xff]
        %v2919 = vld [vmem:[#allocation2 + $0x78] sm:$0xff]
        %v2920 = vld [vmem:[#allocation2 + $0x80] sm:$0xff]
        %v2921 = vld [vmem:[#allocation2 + $0x88] sm:$0xff]
        %v2922 = vld [vmem:[#allocation2 + $0x90] sm:$0xff]
        %v2923 = vld [vmem:[#allocation2 + $0x98] sm:$0xff]
        %v2924 = vld [vmem:[#allocation2 + $0xa0] sm:$0xff]
        %v2925 = vld [vmem:[#allocation2 + $0xa8] sm:$0xff]
        %v2926 = vld [vmem:[#allocation2 + $0xb0] sm:$0xff]
        %v2927 = vld [vmem:[#allocation2 + $0xb8] sm:$0xff]
        %v2928 = vld [vmem:[#allocation2 + $0xc0] sm:$0xff]
        %v2929 = vld [vmem:[#allocation2 + $0xc8] sm:$0xff]
        %v2930 = vld [vmem:[#allocation2 + $0xd0] sm:$0xff]
        %v2931 = vld [vmem:[#allocation2 + $0xd8] sm:$0xff]
        %v2932 = vld [vmem:[#allocation2 + $0xe0] sm:$0xff]
        %v2933 = vld [vmem:[#allocation2 + $0xe8] sm:$0xff]
        %v2934 = vld [vmem:[#allocation2 + $0xf0] sm:$0xff]
        %v2935 = vld [vmem:[#allocation2 + $0xf8] sm:$0xff]
        %s2936 = scalar_lea.vmem %s1, 16
        %v2937 = vld [vmem:[%s2936] sm:$0xf]
        %v2938 = vunpack.c.l.b16 %v2533
        %v2939 = vunpack.c.l.b16 %v2543
        %v2940 = vunpack.c.l.b16 %v2557
        %v2941 = vunpack.c.l.b16 %v2567
        %v2942 = vunpack.c.l.b16 %v2581
        %v2943 = vunpack.c.l.b16 %v2591
        %v2944 = vunpack.c.l.b16 %v2605
        %v2945 = vunpack.c.l.b16 %v2615
        %v2946 = vunpack.c.l.b16 %v2629
        %v2947 = vunpack.c.l.b16 %v2639
        %v2948 = vunpack.c.l.b16 %v2653
        %v2949 = vunpack.c.l.b16 %v2663
        %v2950 = vunpack.c.l.b16 %v2677
        %v2951 = vunpack.c.l.b16 %v2687
        %v2952 = vunpack.c.l.b16 %v2701
        %v2953 = vunpack.c.l.b16 %v2711
        %v2954 = vunpack.c.l.b16 %v2725
        %v2955 = vunpack.c.l.b16 %v2735
        %v2956 = vunpack.c.l.b16 %v2749
        %v2957 = vunpack.c.l.b16 %v2759
        %v2958 = vunpack.c.l.b16 %v2773
        %v2959 = vunpack.c.l.b16 %v2783
        %v2960 = vunpack.c.l.b16 %v2797
        %v2961 = vunpack.c.l.b16 %v2807
        %v2962 = vunpack.c.l.b16 %v2821
        %v2963 = vunpack.c.l.b16 %v2831
        %v2964 = vunpack.c.l.b16 %v2845
        %v2965 = vunpack.c.l.b16 %v2855
        %v2966 = vunpack.c.l.b16 %v2869
        %v2967 = vunpack.c.l.b16 %v2879
        %v2968 = vunpack.c.l.b16 %v2893
        %v2969 = vunpack.c.l.b16 %v2903
        %v2970 = vpack.c.b16 %v2939, %v2938
        %v2971 = vpack.c.b16 %v2941, %v2940
        %v2972 = vpack.c.b16 %v2943, %v2942
        %v2973 = vpack.c.b16 %v2945, %v2944
        %v2974 = vpack.c.b16 %v2947, %v2946
        %v2975 = vpack.c.b16 %v2949, %v2948
        %v2976 = vpack.c.b16 %v2951, %v2950
        %v2977 = vpack.c.b16 %v2953, %v2952
        %v2978 = vpack.c.b16 %v2955, %v2954
        %v2979 = vpack.c.b16 %v2957, %v2956
        %v2980 = vpack.c.b16 %v2959, %v2958
        %v2981 = vpack.c.b16 %v2961, %v2960
        %v2982 = vpack.c.b16 %v2963, %v2962
        %v2983 = vpack.c.b16 %v2965, %v2964
        %v2984 = vpack.c.b16 %v2967, %v2966
        %v2985 = vpack.c.b16 %v2969, %v2968
        %v2987 = vsel %vm406, %v2970, 0
        %v2990 = vsel %vm406, %v2971, 0
        %v2993 = vsel %vm406, %v2972, 0
        %v2996 = vsel %vm406, %v2973, 0
        %v2999 = vsel %vm406, %v2974, 0
        %v3002 = vsel %vm406, %v2975, 0
        %v3005 = vsel %vm406, %v2976, 0
        %v3008 = vsel %vm406, %v2977, 0
        %v3011 = vsel %vm406, %v2978, 0
        %v3014 = vsel %vm406, %v2979, 0
        %v3017 = vsel %vm406, %v2980, 0
        %v3020 = vsel %vm406, %v2981, 0
        %v3023 = vsel %vm406, %v2982, 0
        %v3026 = vsel %vm406, %v2983, 0
        %v3029 = vsel %vm406, %v2984, 0
        %v3032 = vsel %vm406, %v2985, 0
        %v3035 = vsel %vm455, %v2937, 0
        %3037 = vmatprep.subr.bf16.mxu0 0
        %3038 = vmatpush1.bf16.msra.mxu0 %v3035
        %3039 = vmatprep.subr.bf16.mxu0 0
        %3040 = vmatpush1.bf16.msra.mxu0 0
        %3041 = vmatprep.subr.bf16.mxu0 0
        %3042 = vmatpush1.bf16.msra.mxu0 0
        %3043 = vmatprep.subr.bf16.mxu0 0
        %3044 = vmatpush1.bf16.msra.mxu0 0
        %3045 = vmatprep.subr.bf16.mxu0 0
        %3046 = vmatpush1.bf16.msra.mxu0 0
        %3047 = vmatprep.subr.bf16.mxu0 0
        %3048 = vmatpush1.bf16.msra.mxu0 0
        %3049 = vmatprep.subr.bf16.mxu0 0
        %3050 = vmatpush1.bf16.msra.mxu0 0
        %3051 = vmatprep.subr.bf16.mxu0 0
        %3052 = vmatpush1.bf16.msra.mxu0 0
        %3053 = vmatprep.subr.bf16.mxu0 0
        %3054 = vmatpush1.bf16.msra.mxu0 0
        %3055 = vmatprep.subr.bf16.mxu0 0
        %3056 = vmatpush1.bf16.msra.mxu0 0
        %3057 = vmatprep.subr.bf16.mxu0 0
        %3058 = vmatpush1.bf16.msra.mxu0 0
        %3059 = vmatprep.subr.bf16.mxu0 0
        %3060 = vmatpush1.bf16.msra.mxu0 0
        %3061 = vmatprep.subr.bf16.mxu0 0
        %3062 = vmatpush1.bf16.msra.mxu0 0
        %3063 = vmatprep.subr.bf16.mxu0 0
        %3064 = vmatpush1.bf16.msra.mxu0 0
        %3065 = vmatprep.subr.bf16.mxu0 0
        %3066 = vmatpush1.bf16.msra.mxu0 0
        %3067 = vmatprep.subr.bf16.mxu0 0
        %3068 = vmatpush1.bf16.msra.mxu0 0
        %3069 = vmatprep.mubr.bf16.mxu0 0
        %3070 = vmatmul.mubr.bf16.gmra.mrb[0].mxu0 %v2987
        %v3071 = vpop.f32.mrb[0].mxu0
        %v3072 = vadd.f32 0.0, %v3071
        %v3073 = vpop.f32.mrb[0].mxu0
        %v3074 = vpop.f32.mrb[0].mxu0
        %v3075 = vadd.f32 0.0, %v3074
        %v3076 = vpop.f32.mrb[0].mxu0
        %3077 = vmatprep.mubr.bf16.mxu0 0
        %3078 = vmatmul.mubr.bf16.gmra.mrb[0].mxu0 %v2990
        %v3079 = vpop.f32.mrb[0].mxu0
        %v3080 = vadd.f32 0.0, %v3079
        %v3081 = vpop.f32.mrb[0].mxu0
        %v3082 = vpop.f32.mrb[0].mxu0
        %v3083 = vadd.f32 0.0, %v3082
        %v3084 = vpop.f32.mrb[0].mxu0
        %3085 = vmatprep.mubr.bf16.mxu0 0
        %3086 = vmatmul.mubr.bf16.gmra.mrb[0].mxu0 %v2993
        %v3087 = vpop.f32.mrb[0].mxu0
        %v3088 = vadd.f32 0.0, %v3087
        %v3089 = vpop.f32.mrb[0].mxu0
        %v3090 = vpop.f32.mrb[0].mxu0
        %v3091 = vadd.f32 0.0, %v3090
        %v3092 = vpop.f32.mrb[0].mxu0
        %3093 = vmatprep.mubr.bf16.mxu0 0
        %3094 = vmatmul.mubr.bf16.gmra.mrb[0].mxu0 %v2996
        %v3095 = vpop.f32.mrb[0].mxu0
        %v3096 = vadd.f32 0.0, %v3095
        %v3097 = vpop.f32.mrb[0].mxu0
        %v3098 = vpop.f32.mrb[0].mxu0
        %v3099 = vadd.f32 0.0, %v3098
        %v3100 = vpop.f32.mrb[0].mxu0
        %3101 = vmatprep.mubr.bf16.mxu0 0
        %3102 = vmatmul.mubr.bf16.gmra.mrb[0].mxu0 %v2999
        %v3103 = vpop.f32.mrb[0].mxu0
        %v3104 = vadd.f32 0.0, %v3103
        %v3105 = vpop.f32.mrb[0].mxu0
        %v3106 = vpop.f32.mrb[0].mxu0
        %v3107 = vadd.f32 0.0, %v3106
        %v3108 = vpop.f32.mrb[0].mxu0
        %3109 = vmatprep.mubr.bf16.mxu0 0
        %3110 = vmatmul.mubr.bf16.gmra.mrb[0].mxu0 %v3002
        %v3111 = vpop.f32.mrb[0].mxu0
        %v3112 = vadd.f32 0.0, %v3111
        %v3113 = vpop.f32.mrb[0].mxu0
        %v3114 = vpop.f32.mrb[0].mxu0
        %v3115 = vadd.f32 0.0, %v3114
        %v3116 = vpop.f32.mrb[0].mxu0
        %3117 = vmatprep.mubr.bf16.mxu0 0
        %3118 = vmatmul.mubr.bf16.gmra.mrb[0].mxu0 %v3005
        %v3119 = vpop.f32.mrb[0].mxu0
        %v3120 = vadd.f32 0.0, %v3119
        %v3121 = vpop.f32.mrb[0].mxu0
        %v3122 = vpop.f32.mrb[0].mxu0
        %v3123 = vadd.f32 0.0, %v3122
        %v3124 = vpop.f32.mrb[0].mxu0
        %3125 = vmatprep.mubr.bf16.mxu0 0
        %3126 = vmatmul.mubr.bf16.gmra.mrb[0].mxu0 %v3008
        %v3127 = vpop.f32.mrb[0].mxu0
        %v3128 = vadd.f32 0.0, %v3127
        %v3129 = vpop.f32.mrb[0].mxu0
        %v3130 = vpop.f32.mrb[0].mxu0
        %v3131 = vadd.f32 0.0, %v3130
        %v3132 = vpop.f32.mrb[0].mxu0
        %3133 = vmatprep.mubr.bf16.mxu0 0
        %3134 = vmatmul.mubr.bf16.gmra.mrb[0].mxu0 %v3011
        %v3135 = vpop.f32.mrb[0].mxu0
        %v3136 = vadd.f32 0.0, %v3135
        %v3137 = vpop.f32.mrb[0].mxu0
        %v3138 = vpop.f32.mrb[0].mxu0
        %v3139 = vadd.f32 0.0, %v3138
        %v3140 = vpop.f32.mrb[0].mxu0
        %3141 = vmatprep.mubr.bf16.mxu0 0
        %3142 = vmatmul.mubr.bf16.gmra.mrb[0].mxu0 %v3014
        %v3143 = vpop.f32.mrb[0].mxu0
        %v3144 = vadd.f32 0.0, %v3143
        %v3145 = vpop.f32.mrb[0].mxu0
        %v3146 = vpop.f32.mrb[0].mxu0
        %v3147 = vadd.f32 0.0, %v3146
        %v3148 = vpop.f32.mrb[0].mxu0
        %3149 = vmatprep.mubr.bf16.mxu0 0
        %3150 = vmatmul.mubr.bf16.gmra.mrb[0].mxu0 %v3017
        %v3151 = vpop.f32.mrb[0].mxu0
        %v3152 = vadd.f32 0.0, %v3151
        %v3153 = vpop.f32.mrb[0].mxu0
        %v3154 = vpop.f32.mrb[0].mxu0
        %v3155 = vadd.f32 0.0, %v3154
        %v3156 = vpop.f32.mrb[0].mxu0
        %3157 = vmatprep.mubr.bf16.mxu0 0
        %3158 = vmatmul.mubr.bf16.gmra.mrb[0].mxu0 %v3020
        %v3159 = vpop.f32.mrb[0].mxu0
        %v3160 = vadd.f32 0.0, %v3159
        %v3161 = vpop.f32.mrb[0].mxu0
        %v3162 = vpop.f32.mrb[0].mxu0
        %v3163 = vadd.f32 0.0, %v3162
        %v3164 = vpop.f32.mrb[0].mxu0
        %3165 = vmatprep.mubr.bf16.mxu0 0
        %3166 = vmatmul.mubr.bf16.gmra.mrb[0].mxu0 %v3023
        %v3167 = vpop.f32.mrb[0].mxu0
        %v3168 = vadd.f32 0.0, %v3167
        %v3169 = vpop.f32.mrb[0].mxu0
        %v3170 = vpop.f32.mrb[0].mxu0
        %v3171 = vadd.f32 0.0, %v3170
        %v3172 = vpop.f32.mrb[0].mxu0
        %3173 = vmatprep.mubr.bf16.mxu0 0
        %3174 = vmatmul.mubr.bf16.gmra.mrb[0].mxu0 %v3026
        %v3175 = vpop.f32.mrb[0].mxu0
        %v3176 = vadd.f32 0.0, %v3175
        %v3177 = vpop.f32.mrb[0].mxu0
        %v3178 = vpop.f32.mrb[0].mxu0
        %v3179 = vadd.f32 0.0, %v3178
        %v3180 = vpop.f32.mrb[0].mxu0
        %3181 = vmatprep.mubr.bf16.mxu0 0
        %3182 = vmatmul.mubr.bf16.gmra.mrb[0].mxu0 %v3029
        %v3183 = vpop.f32.mrb[0].mxu0
        %v3184 = vadd.f32 0.0, %v3183
        %v3185 = vpop.f32.mrb[0].mxu0
        %v3186 = vpop.f32.mrb[0].mxu0
        %v3187 = vadd.f32 0.0, %v3186
        %v3188 = vpop.f32.mrb[0].mxu0
        %3189 = vmatprep.mubr.bf16.mxu0 0
        %3190 = vmatmul.mubr.bf16.gmra.mrb[0].mxu0 %v3032
        %v3191 = vpop.f32.mrb[0].mxu0
        %v3192 = vadd.f32 0.0, %v3191
        %v3193 = vpop.f32.mrb[0].mxu0
        %v3194 = vpop.f32.mrb[0].mxu0
        %v3195 = vadd.f32 0.0, %v3194
        %v3196 = vpop.f32.mrb[0].mxu0
        %3197 = vdwg.mxu0
        %v3198 = vadd.f32 %v2904, %v3072
        %v3199 = vadd.f32 %v2905, %v3075
        %v3200 = vadd.f32 %v2906, %v3080
        %v3201 = vadd.f32 %v2907, %v3083
        %v3202 = vadd.f32 %v2908, %v3088
        %v3203 = vadd.f32 %v2909, %v3091
        %v3204 = vadd.f32 %v2910, %v3096
        %v3205 = vadd.f32 %v2911, %v3099
        %v3206 = vadd.f32 %v2912, %v3104
        %v3207 = vadd.f32 %v2913, %v3107
        %v3208 = vadd.f32 %v2914, %v3112
        %v3209 = vadd.f32 %v2915, %v3115
        %v3210 = vadd.f32 %v2916, %v3120
        %v3211 = vadd.f32 %v2917, %v3123
        %v3212 = vadd.f32 %v2918, %v3128
        %v3213 = vadd.f32 %v2919, %v3131
        %v3214 = vadd.f32 %v2920, %v3136
        %v3215 = vadd.f32 %v2921, %v3139
        %v3216 = vadd.f32 %v2922, %v3144
        %v3217 = vadd.f32 %v2923, %v3147
        %v3218 = vadd.f32 %v2924, %v3152
        %v3219 = vadd.f32 %v2925, %v3155
        %v3220 = vadd.f32 %v2926, %v3160
        %v3221 = vadd.f32 %v2927, %v3163
        %v3222 = vadd.f32 %v2928, %v3168
        %v3223 = vadd.f32 %v2929, %v3171
        %v3224 = vadd.f32 %v2930, %v3176
        %v3225 = vadd.f32 %v2931, %v3179
        %v3226 = vadd.f32 %v2932, %v3184
        %v3227 = vadd.f32 %v2933, %v3187
        %v3228 = vadd.f32 %v2934, %v3192
        %v3229 = vadd.f32 %v2935, %v3195
        %3230 = vst [vmem:[#allocation2] sm:$0xff] %v3198
        %3231 = vst [vmem:[#allocation2 + $0x8] sm:$0xff] %v3199
        %3232 = vst [vmem:[#allocation2 + $0x10] sm:$0xff] %v3200
        %3233 = vst [vmem:[#allocation2 + $0x18] sm:$0xff] %v3201
        %3234 = vst [vmem:[#allocation2 + $0x20] sm:$0xff] %v3202
        %3235 = vst [vmem:[#allocation2 + $0x28] sm:$0xff] %v3203
        %3236 = vst [vmem:[#allocation2 + $0x30] sm:$0xff] %v3204
        %3237 = vst [vmem:[#allocation2 + $0x38] sm:$0xff] %v3205
        %3238 = vst [vmem:[#allocation2 + $0x40] sm:$0xff] %v3206
        %3239 = vst [vmem:[#allocation2 + $0x48] sm:$0xff] %v3207
        %3240 = vst [vmem:[#allocation2 + $0x50] sm:$0xff] %v3208
        %3241 = vst [vmem:[#allocation2 + $0x58] sm:$0xff] %v3209
        %3242 = vst [vmem:[#allocation2 + $0x60] sm:$0xff] %v3210
        %3243 = vst [vmem:[#allocation2 + $0x68] sm:$0xff] %v3211
        %3244 = vst [vmem:[#allocation2 + $0x70] sm:$0xff] %v3212
        %3245 = vst [vmem:[#allocation2 + $0x78] sm:$0xff] %v3213
        %3246 = vst [vmem:[#allocation2 + $0x80] sm:$0xff] %v3214
        %3247 = vst [vmem:[#allocation2 + $0x88] sm:$0xff] %v3215
        %3248 = vst [vmem:[#allocation2 + $0x90] sm:$0xff] %v3216
        %3249 = vst [vmem:[#allocation2 + $0x98] sm:$0xff] %v3217
        %3250 = vst [vmem:[#allocation2 + $0xa0] sm:$0xff] %v3218
        %3251 = vst [vmem:[#allocation2 + $0xa8] sm:$0xff] %v3219
        %3252 = vst [vmem:[#allocation2 + $0xb0] sm:$0xff] %v3220
        %3253 = vst [vmem:[#allocation2 + $0xb8] sm:$0xff] %v3221
        %3254 = vst [vmem:[#allocation2 + $0xc0] sm:$0xff] %v3222
        %3255 = vst [vmem:[#allocation2 + $0xc8] sm:$0xff] %v3223
        %3256 = vst [vmem:[#allocation2 + $0xd0] sm:$0xff] %v3224
        %3257 = vst [vmem:[#allocation2 + $0xd8] sm:$0xff] %v3225
        %3258 = vst [vmem:[#allocation2 + $0xe0] sm:$0xff] %v3226
        %3259 = vst [vmem:[#allocation2 + $0xe8] sm:$0xff] %v3227
        %3260 = vst [vmem:[#allocation2 + $0xf0] sm:$0xff] %v3228
        %3261 = vst [vmem:[#allocation2 + $0xf8] sm:$0xff] %v3229
        %v3262 = vld [vmem:[%s2049] sm:$0xe]
        %v3263 = vld [vmem:[%s2049 + $0x4] sm:$0xf]
        %v3264 = vld [vmem:[%s2049 + $0x8] sm:$0x1]
        %v3265 = vld [vmem:[%s2049 + $0xc] sm:$0xe]
        %v3266 = vld [vmem:[%s2049 + $0x10] sm:$0xf]
        %v3267 = vld [vmem:[%s2049 + $0x14] sm:$0x1]
        %v3268 = vld [vmem:[%s2049 + $0x18] sm:$0xe]
        %v3269 = vld [vmem:[%s2049 + $0x1c] sm:$0xf]
        %v3270 = vld [vmem:[%s2049 + $0x20] sm:$0x1]
        %v3271 = vld [vmem:[%s2049 + $0x24] sm:$0xe]
        %v3272 = vld [vmem:[%s2049 + $0x28] sm:$0xf]
        %v3273 = vld [vmem:[%s2049 + $0x2c] sm:$0x1]
        %v3274 = vld [vmem:[%s2049 + $0x30] sm:$0xe]
        %v3275 = vld [vmem:[%s2049 + $0x34] sm:$0xf]
        %v3276 = vld [vmem:[%s2049 + $0x38] sm:$0x1]
        %v3277 = vld [vmem:[%s2049 + $0x3c] sm:$0xe]
        %v3278 = vld [vmem:[%s2049 + $0x40] sm:$0xf]
        %v3279 = vld [vmem:[%s2049 + $0x44] sm:$0x1]
        %v3280 = vld [vmem:[%s2049 + $0x48] sm:$0xe]
        %v3281 = vld [vmem:[%s2049 + $0x4c] sm:$0xf]
        %v3282 = vld [vmem:[%s2049 + $0x50] sm:$0x1]
        %v3283 = vld [vmem:[%s2049 + $0x54] sm:$0xe]
        %v3284 = vld [vmem:[%s2049 + $0x58] sm:$0xf]
        %v3285 = vld [vmem:[%s2049 + $0x5c] sm:$0x1]
        %v3286 = vld [vmem:[%s2049 + $0x60] sm:$0xe]
        %v3287 = vld [vmem:[%s2049 + $0x64] sm:$0xf]
        %v3288 = vld [vmem:[%s2049 + $0x68] sm:$0x1]
        %v3289 = vld [vmem:[%s2049 + $0x6c] sm:$0xe]
        %v3290 = vld [vmem:[%s2049 + $0x70] sm:$0xf]
        %v3291 = vld [vmem:[%s2049 + $0x74] sm:$0x1]
        %v3292 = vld [vmem:[%s2049 + $0x78] sm:$0xe]
        %v3293 = vld [vmem:[%s2049 + $0x7c] sm:$0xf]
        %v3294 = vld [vmem:[%s2049 + $0x80] sm:$0x1]
        %v3295 = vld [vmem:[%s2049 + $0x84] sm:$0xe]
        %v3296 = vld [vmem:[%s2049 + $0x88] sm:$0xf]
        %v3297 = vld [vmem:[%s2049 + $0x8c] sm:$0x1]
        %v3298 = vld [vmem:[%s2049 + $0x90] sm:$0xe]
        %v3299 = vld [vmem:[%s2049 + $0x94] sm:$0xf]
        %v3300 = vld [vmem:[%s2049 + $0x98] sm:$0x1]
        %v3301 = vld [vmem:[%s2049 + $0x9c] sm:$0xe]
        %v3302 = vld [vmem:[%s2049 + $0xa0] sm:$0xf]
        %v3303 = vld [vmem:[%s2049 + $0xa4] sm:$0x1]
        %v3304 = vld [vmem:[%s2049 + $0xa8] sm:$0xe]
        %v3305 = vld [vmem:[%s2049 + $0xac] sm:$0xf]
        %v3306 = vld [vmem:[%s2049 + $0xb0] sm:$0x1]
        %v3307 = vld [vmem:[%s2049 + $0xb4] sm:$0xe]
        %v3308 = vld [vmem:[%s2049 + $0xb8] sm:$0xf]
        %v3309 = vld [vmem:[%s2049 + $0xbc] sm:$0x1]
        %v3358 = vrot.slane %v3262, 5
        %v3359 = vrot.slane %v3358, 4
        %v3360 = vrot.slane %v3263, 5
        %v3361 = vsel %vm1575, %v3359, %v3360
        %v3362 = vrot.slane %v3360, 4
        %v3363 = vrot.slane %v3264, 5
        %v3364 = vsel %vm1575, %v3362, %v3363
        %v3365 = vrot.slane %v3265, 5
        %v3366 = vrot.slane %v3365, 4
        %v3367 = vrot.slane %v3266, 5
        %v3368 = vsel %vm1575, %v3366, %v3367
        %v3369 = vrot.slane %v3367, 4
        %v3370 = vrot.slane %v3267, 5
        %v3371 = vsel %vm1575, %v3369, %v3370
        %v3372 = vrot.slane %v3268, 5
        %v3373 = vrot.slane %v3372, 4
        %v3374 = vrot.slane %v3269, 5
        %v3375 = vsel %vm1575, %v3373, %v3374
        %v3376 = vrot.slane %v3374, 4
        %v3377 = vrot.slane %v3270, 5
        %v3378 = vsel %vm1575, %v3376, %v3377
        %v3379 = vrot.slane %v3271, 5
        %v3380 = vrot.slane %v3379, 4
        %v3381 = vrot.slane %v3272, 5
        %v3382 = vsel %vm1575, %v3380, %v3381
        %v3383 = vrot.slane %v3381, 4
        %v3384 = vrot.slane %v3273, 5
        %v3385 = vsel %vm1575, %v3383, %v3384
        %v3386 = vrot.slane %v3274, 5
        %v3387 = vrot.slane %v3386, 4
        %v3388 = vrot.slane %v3275, 5
        %v3389 = vsel %vm1575, %v3387, %v3388
        %v3390 = vrot.slane %v3388, 4
        %v3391 = vrot.slane %v3276, 5
        %v3392 = vsel %vm1575, %v3390, %v3391
        %v3393 = vrot.slane %v3277, 5
        %v3394 = vrot.slane %v3393, 4
        %v3395 = vrot.slane %v3278, 5
        %v3396 = vsel %vm1575, %v3394, %v3395
        %v3397 = vrot.slane %v3395, 4
        %v3398 = vrot.slane %v3279, 5
        %v3399 = vsel %vm1575, %v3397, %v3398
        %v3400 = vrot.slane %v3280, 5
        %v3401 = vrot.slane %v3400, 4
        %v3402 = vrot.slane %v3281, 5
        %v3403 = vsel %vm1575, %v3401, %v3402
        %v3404 = vrot.slane %v3402, 4
        %v3405 = vrot.slane %v3282, 5
        %v3406 = vsel %vm1575, %v3404, %v3405
        %v3407 = vrot.slane %v3283, 5
        %v3408 = vrot.slane %v3407, 4
        %v3409 = vrot.slane %v3284, 5
        %v3410 = vsel %vm1575, %v3408, %v3409
        %v3411 = vrot.slane %v3409, 4
        %v3412 = vrot.slane %v3285, 5
        %v3413 = vsel %vm1575, %v3411, %v3412
        %v3414 = vrot.slane %v3286, 5
        %v3415 = vrot.slane %v3414, 4
        %v3416 = vrot.slane %v3287, 5
        %v3417 = vsel %vm1575, %v3415, %v3416
        %v3418 = vrot.slane %v3416, 4
        %v3419 = vrot.slane %v3288, 5
        %v3420 = vsel %vm1575, %v3418, %v3419
        %v3421 = vrot.slane %v3289, 5
        %v3422 = vrot.slane %v3421, 4
        %v3423 = vrot.slane %v3290, 5
        %v3424 = vsel %vm1575, %v3422, %v3423
        %v3425 = vrot.slane %v3423, 4
        %v3426 = vrot.slane %v3291, 5
        %v3427 = vsel %vm1575, %v3425, %v3426
        %v3428 = vrot.slane %v3292, 5
        %v3429 = vrot.slane %v3428, 4
        %v3430 = vrot.slane %v3293, 5
        %v3431 = vsel %vm1575, %v3429, %v3430
        %v3432 = vrot.slane %v3430, 4
        %v3433 = vrot.slane %v3294, 5
        %v3434 = vsel %vm1575, %v3432, %v3433
        %v3435 = vrot.slane %v3295, 5
        %v3436 = vrot.slane %v3435, 4
        %v3437 = vrot.slane %v3296, 5
        %v3438 = vsel %vm1575, %v3436, %v3437
        %v3439 = vrot.slane %v3437, 4
        %v3440 = vrot.slane %v3297, 5
        %v3441 = vsel %vm1575, %v3439, %v3440
        %v3442 = vrot.slane %v3298, 5
        %v3443 = vrot.slane %v3442, 4
        %v3444 = vrot.slane %v3299, 5
        %v3445 = vsel %vm1575, %v3443, %v3444
        %v3446 = vrot.slane %v3444, 4
        %v3447 = vrot.slane %v3300, 5
        %v3448 = vsel %vm1575, %v3446, %v3447
        %v3449 = vrot.slane %v3301, 5
        %v3450 = vrot.slane %v3449, 4
        %v3451 = vrot.slane %v3302, 5
        %v3452 = vsel %vm1575, %v3450, %v3451
        %v3453 = vrot.slane %v3451, 4
        %v3454 = vrot.slane %v3303, 5
        %v3455 = vsel %vm1575, %v3453, %v3454
        %v3456 = vrot.slane %v3304, 5
        %v3457 = vrot.slane %v3456, 4
        %v3458 = vrot.slane %v3305, 5
        %v3459 = vsel %vm1575, %v3457, %v3458
        %v3460 = vrot.slane %v3458, 4
        %v3461 = vrot.slane %v3306, 5
        %v3462 = vsel %vm1575, %v3460, %v3461
        %v3463 = vrot.slane %v3307, 5
        %v3464 = vrot.slane %v3463, 4
        %v3465 = vrot.slane %v3308, 5
        %v3466 = vsel %vm1575, %v3464, %v3465
        %v3467 = vrot.slane %v3465, 4
        %v3468 = vrot.slane %v3309, 5
        %v3469 = vsel %vm1575, %v3467, %v3468
        %v3470 = vld [vmem:[#allocation2] sm:$0xff]
        %v3471 = vld [vmem:[#allocation2 + $0x8] sm:$0xff]
        %v3472 = vld [vmem:[#allocation2 + $0x10] sm:$0xff]
        %v3473 = vld [vmem:[#allocation2 + $0x18] sm:$0xff]
        %v3474 = vld [vmem:[#allocation2 + $0x20] sm:$0xff]
        %v3475 = vld [vmem:[#allocation2 + $0x28] sm:$0xff]
        %v3476 = vld [vmem:[#allocation2 + $0x30] sm:$0xff]
        %v3477 = vld [vmem:[#allocation2 + $0x38] sm:$0xff]
        %v3478 = vld [vmem:[#allocation2 + $0x40] sm:$0xff]
        %v3479 = vld [vmem:[#allocation2 + $0x48] sm:$0xff]
        %v3480 = vld [vmem:[#allocation2 + $0x50] sm:$0xff]
        %v3481 = vld [vmem:[#allocation2 + $0x58] sm:$0xff]
        %v3482 = vld [vmem:[#allocation2 + $0x60] sm:$0xff]
        %v3483 = vld [vmem:[#allocation2 + $0x68] sm:$0xff]
        %v3484 = vld [vmem:[#allocation2 + $0x70] sm:$0xff]
        %v3485 = vld [vmem:[#allocation2 + $0x78] sm:$0xff]
        %v3486 = vld [vmem:[#allocation2 + $0x80] sm:$0xff]
        %v3487 = vld [vmem:[#allocation2 + $0x88] sm:$0xff]
        %v3488 = vld [vmem:[#allocation2 + $0x90] sm:$0xff]
        %v3489 = vld [vmem:[#allocation2 + $0x98] sm:$0xff]
        %v3490 = vld [vmem:[#allocation2 + $0xa0] sm:$0xff]
        %v3491 = vld [vmem:[#allocation2 + $0xa8] sm:$0xff]
        %v3492 = vld [vmem:[#allocation2 + $0xb0] sm:$0xff]
        %v3493 = vld [vmem:[#allocation2 + $0xb8] sm:$0xff]
        %v3494 = vld [vmem:[#allocation2 + $0xc0] sm:$0xff]
        %v3495 = vld [vmem:[#allocation2 + $0xc8] sm:$0xff]
        %v3496 = vld [vmem:[#allocation2 + $0xd0] sm:$0xff]
        %v3497 = vld [vmem:[#allocation2 + $0xd8] sm:$0xff]
        %v3498 = vld [vmem:[#allocation2 + $0xe0] sm:$0xff]
        %v3499 = vld [vmem:[#allocation2 + $0xe8] sm:$0xff]
        %v3500 = vld [vmem:[#allocation2 + $0xf0] sm:$0xff]
        %v3501 = vld [vmem:[#allocation2 + $0xf8] sm:$0xff]
        %s3502 = scalar_lea.vmem %s1, 20
        %v3503 = vld [vmem:[%s3502] sm:$0xf]
        %v3504 = vunpack.c.l.b16 %v3361
        %v3505 = vunpack.c.l.b16 %v3364
        %v3506 = vunpack.c.l.b16 %v3368
        %v3507 = vunpack.c.l.b16 %v3371
        %v3508 = vunpack.c.l.b16 %v3375
        %v3509 = vunpack.c.l.b16 %v3378
        %v3510 = vunpack.c.l.b16 %v3382
        %v3511 = vunpack.c.l.b16 %v3385
        %v3512 = vunpack.c.l.b16 %v3389
        %v3513 = vunpack.c.l.b16 %v3392
        %v3514 = vunpack.c.l.b16 %v3396
        %v3515 = vunpack.c.l.b16 %v3399
        %v3516 = vunpack.c.l.b16 %v3403
        %v3517 = vunpack.c.l.b16 %v3406
        %v3518 = vunpack.c.l.b16 %v3410
        %v3519 = vunpack.c.l.b16 %v3413
        %v3520 = vunpack.c.l.b16 %v3417
        %v3521 = vunpack.c.l.b16 %v3420
        %v3522 = vunpack.c.l.b16 %v3424
        %v3523 = vunpack.c.l.b16 %v3427
        %v3524 = vunpack.c.l.b16 %v3431
        %v3525 = vunpack.c.l.b16 %v3434
        %v3526 = vunpack.c.l.b16 %v3438
        %v3527 = vunpack.c.l.b16 %v3441
        %v3528 = vunpack.c.l.b16 %v3445
        %v3529 = vunpack.c.l.b16 %v3448
        %v3530 = vunpack.c.l.b16 %v3452
        %v3531 = vunpack.c.l.b16 %v3455
        %v3532 = vunpack.c.l.b16 %v3459
        %v3533 = vunpack.c.l.b16 %v3462
        %v3534 = vunpack.c.l.b16 %v3466
        %v3535 = vunpack.c.l.b16 %v3469
        %v3536 = vpack.c.b16 %v3505, %v3504
        %v3537 = vpack.c.b16 %v3507, %v3506
        %v3538 = vpack.c.b16 %v3509, %v3508
        %v3539 = vpack.c.b16 %v3511, %v3510
        %v3540 = vpack.c.b16 %v3513, %v3512
        %v3541 = vpack.c.b16 %v3515, %v3514
        %v3542 = vpack.c.b16 %v3517, %v3516
        %v3543 = vpack.c.b16 %v3519, %v3518
        %v3544 = vpack.c.b16 %v3521, %v3520
        %v3545 = vpack.c.b16 %v3523, %v3522
        %v3546 = vpack.c.b16 %v3525, %v3524
        %v3547 = vpack.c.b16 %v3527, %v3526
        %v3548 = vpack.c.b16 %v3529, %v3528
        %v3549 = vpack.c.b16 %v3531, %v3530
        %v3550 = vpack.c.b16 %v3533, %v3532
        %v3551 = vpack.c.b16 %v3535, %v3534
        %v3553 = vsel %vm406, %v3536, 0
        %v3556 = vsel %vm406, %v3537, 0
        %v3559 = vsel %vm406, %v3538, 0
        %v3562 = vsel %vm406, %v3539, 0
        %v3565 = vsel %vm406, %v3540, 0
        %v3568 = vsel %vm406, %v3541, 0
        %v3571 = vsel %vm406, %v3542, 0
        %v3574 = vsel %vm406, %v3543, 0
        %v3577 = vsel %vm406, %v3544, 0
        %v3580 = vsel %vm406, %v3545, 0
        %v3583 = vsel %vm406, %v3546, 0
        %v3586 = vsel %vm406, %v3547, 0
        %v3589 = vsel %vm406, %v3548, 0
        %v3592 = vsel %vm406, %v3549, 0
        %v3595 = vsel %vm406, %v3550, 0
        %v3598 = vsel %vm406, %v3551, 0
        %v3601 = vsel %vm455, %v3503, 0
        %3603 = vmatprep.subr.bf16.mxu0 0
        %3604 = vmatpush1.bf16.msra.mxu0 %v3601
        %3605 = vmatprep.subr.bf16.mxu0 0
        %3606 = vmatpush1.bf16.msra.mxu0 0
        %3607 = vmatprep.subr.bf16.mxu0 0
        %3608 = vmatpush1.bf16.msra.mxu0 0
        %3609 = vmatprep.subr.bf16.mxu0 0
        %3610 = vmatpush1.bf16.msra.mxu0 0
        %3611 = vmatprep.subr.bf16.mxu0 0
        %3612 = vmatpush1.bf16.msra.mxu0 0
        %3613 = vmatprep.subr.bf16.mxu0 0
        %3614 = vmatpush1.bf16.msra.mxu0 0
        %3615 = vmatprep.subr.bf16.mxu0 0
        %3616 = vmatpush1.bf16.msra.mxu0 0
        %3617 = vmatprep.subr.bf16.mxu0 0
        %3618 = vmatpush1.bf16.msra.mxu0 0
        %3619 = vmatprep.subr.bf16.mxu0 0
        %3620 = vmatpush1.bf16.msra.mxu0 0
        %3621 = vmatprep.subr.bf16.mxu0 0
        %3622 = vmatpush1.bf16.msra.mxu0 0
        %3623 = vmatprep.subr.bf16.mxu0 0
        %3624 = vmatpush1.bf16.msra.mxu0 0
        %3625 = vmatprep.subr.bf16.mxu0 0
        %3626 = vmatpush1.bf16.msra.mxu0 0
        %3627 = vmatprep.subr.bf16.mxu0 0
        %3628 = vmatpush1.bf16.msra.mxu0 0
        %3629 = vmatprep.subr.bf16.mxu0 0
        %3630 = vmatpush1.bf16.msra.mxu0 0
        %3631 = vmatprep.subr.bf16.mxu0 0
        %3632 = vmatpush1.bf16.msra.mxu0 0
        %3633 = vmatprep.subr.bf16.mxu0 0
        %3634 = vmatpush1.bf16.msra.mxu0 0
        %3635 = vmatprep.mubr.bf16.mxu0 0
        %3636 = vmatmul.mubr.bf16.gmra.mrb[0].mxu0 %v3553
        %v3637 = vpop.f32.mrb[0].mxu0
        %v3638 = vadd.f32 0.0, %v3637
        %v3639 = vpop.f32.mrb[0].mxu0
        %v3640 = vpop.f32.mrb[0].mxu0
        %v3641 = vadd.f32 0.0, %v3640
        %v3642 = vpop.f32.mrb[0].mxu0
        %3643 = vmatprep.mubr.bf16.mxu0 0
        %3644 = vmatmul.mubr.bf16.gmra.mrb[0].mxu0 %v3556
        %v3645 = vpop.f32.mrb[0].mxu0
        %v3646 = vadd.f32 0.0, %v3645
        %v3647 = vpop.f32.mrb[0].mxu0
        %v3648 = vpop.f32.mrb[0].mxu0
        %v3649 = vadd.f32 0.0, %v3648
        %v3650 = vpop.f32.mrb[0].mxu0
        %3651 = vmatprep.mubr.bf16.mxu0 0
        %3652 = vmatmul.mubr.bf16.gmra.mrb[0].mxu0 %v3559
        %v3653 = vpop.f32.mrb[0].mxu0
        %v3654 = vadd.f32 0.0, %v3653
        %v3655 = vpop.f32.mrb[0].mxu0
        %v3656 = vpop.f32.mrb[0].mxu0
        %v3657 = vadd.f32 0.0, %v3656
        %v3658 = vpop.f32.mrb[0].mxu0
        %3659 = vmatprep.mubr.bf16.mxu0 0
        %3660 = vmatmul.mubr.bf16.gmra.mrb[0].mxu0 %v3562
        %v3661 = vpop.f32.mrb[0].mxu0
        %v3662 = vadd.f32 0.0, %v3661
        %v3663 = vpop.f32.mrb[0].mxu0
        %v3664 = vpop.f32.mrb[0].mxu0
        %v3665 = vadd.f32 0.0, %v3664
        %v3666 = vpop.f32.mrb[0].mxu0
        %3667 = vmatprep.mubr.bf16.mxu0 0
        %3668 = vmatmul.mubr.bf16.gmra.mrb[0].mxu0 %v3565
        %v3669 = vpop.f32.mrb[0].mxu0
        %v3670 = vadd.f32 0.0, %v3669
        %v3671 = vpop.f32.mrb[0].mxu0
        %v3672 = vpop.f32.mrb[0].mxu0
        %v3673 = vadd.f32 0.0, %v3672
        %v3674 = vpop.f32.mrb[0].mxu0
        %3675 = vmatprep.mubr.bf16.mxu0 0
        %3676 = vmatmul.mubr.bf16.gmra.mrb[0].mxu0 %v3568
        %v3677 = vpop.f32.mrb[0].mxu0
        %v3678 = vadd.f32 0.0, %v3677
        %v3679 = vpop.f32.mrb[0].mxu0
        %v3680 = vpop.f32.mrb[0].mxu0
        %v3681 = vadd.f32 0.0, %v3680
        %v3682 = vpop.f32.mrb[0].mxu0
        %3683 = vmatprep.mubr.bf16.mxu0 0
        %3684 = vmatmul.mubr.bf16.gmra.mrb[0].mxu0 %v3571
        %v3685 = vpop.f32.mrb[0].mxu0
        %v3686 = vadd.f32 0.0, %v3685
        %v3687 = vpop.f32.mrb[0].mxu0
        %v3688 = vpop.f32.mrb[0].mxu0
        %v3689 = vadd.f32 0.0, %v3688
        %v3690 = vpop.f32.mrb[0].mxu0
        %3691 = vmatprep.mubr.bf16.mxu0 0
        %3692 = vmatmul.mubr.bf16.gmra.mrb[0].mxu0 %v3574
        %v3693 = vpop.f32.mrb[0].mxu0
        %v3694 = vadd.f32 0.0, %v3693
        %v3695 = vpop.f32.mrb[0].mxu0
        %v3696 = vpop.f32.mrb[0].mxu0
        %v3697 = vadd.f32 0.0, %v3696
        %v3698 = vpop.f32.mrb[0].mxu0
        %3699 = vmatprep.mubr.bf16.mxu0 0
        %3700 = vmatmul.mubr.bf16.gmra.mrb[0].mxu0 %v3577
        %v3701 = vpop.f32.mrb[0].mxu0
        %v3702 = vadd.f32 0.0, %v3701
        %v3703 = vpop.f32.mrb[0].mxu0
        %v3704 = vpop.f32.mrb[0].mxu0
        %v3705 = vadd.f32 0.0, %v3704
        %v3706 = vpop.f32.mrb[0].mxu0
        %3707 = vmatprep.mubr.bf16.mxu0 0
        %3708 = vmatmul.mubr.bf16.gmra.mrb[0].mxu0 %v3580
        %v3709 = vpop.f32.mrb[0].mxu0
        %v3710 = vadd.f32 0.0, %v3709
        %v3711 = vpop.f32.mrb[0].mxu0
        %v3712 = vpop.f32.mrb[0].mxu0
        %v3713 = vadd.f32 0.0, %v3712
        %v3714 = vpop.f32.mrb[0].mxu0
        %3715 = vmatprep.mubr.bf16.mxu0 0
        %3716 = vmatmul.mubr.bf16.gmra.mrb[0].mxu0 %v3583
        %v3717 = vpop.f32.mrb[0].mxu0
        %v3718 = vadd.f32 0.0, %v3717
        %v3719 = vpop.f32.mrb[0].mxu0
        %v3720 = vpop.f32.mrb[0].mxu0
        %v3721 = vadd.f32 0.0, %v3720
        %v3722 = vpop.f32.mrb[0].mxu0
        %3723 = vmatprep.mubr.bf16.mxu0 0
        %3724 = vmatmul.mubr.bf16.gmra.mrb[0].mxu0 %v3586
        %v3725 = vpop.f32.mrb[0].mxu0
        %v3726 = vadd.f32 0.0, %v3725
        %v3727 = vpop.f32.mrb[0].mxu0
        %v3728 = vpop.f32.mrb[0].mxu0
        %v3729 = vadd.f32 0.0, %v3728
        %v3730 = vpop.f32.mrb[0].mxu0
        %3731 = vmatprep.mubr.bf16.mxu0 0
        %3732 = vmatmul.mubr.bf16.gmra.mrb[0].mxu0 %v3589
        %v3733 = vpop.f32.mrb[0].mxu0
        %v3734 = vadd.f32 0.0, %v3733
        %v3735 = vpop.f32.mrb[0].mxu0
        %v3736 = vpop.f32.mrb[0].mxu0
        %v3737 = vadd.f32 0.0, %v3736
        %v3738 = vpop.f32.mrb[0].mxu0
        %3739 = vmatprep.mubr.bf16.mxu0 0
        %3740 = vmatmul.mubr.bf16.gmra.mrb[0].mxu0 %v3592
        %v3741 = vpop.f32.mrb[0].mxu0
        %v3742 = vadd.f32 0.0, %v3741
        %v3743 = vpop.f32.mrb[0].mxu0
        %v3744 = vpop.f32.mrb[0].mxu0
        %v3745 = vadd.f32 0.0, %v3744
        %v3746 = vpop.f32.mrb[0].mxu0
        %3747 = vmatprep.mubr.bf16.mxu0 0
        %3748 = vmatmul.mubr.bf16.gmra.mrb[0].mxu0 %v3595
        %v3749 = vpop.f32.mrb[0].mxu0
        %v3750 = vadd.f32 0.0, %v3749
        %v3751 = vpop.f32.mrb[0].mxu0
        %v3752 = vpop.f32.mrb[0].mxu0
        %v3753 = vadd.f32 0.0, %v3752
        %v3754 = vpop.f32.mrb[0].mxu0
        %3755 = vmatprep.mubr.bf16.mxu0 0
        %3756 = vmatmul.mubr.bf16.gmra.mrb[0].mxu0 %v3598
        %v3757 = vpop.f32.mrb[0].mxu0
        %v3758 = vadd.f32 0.0, %v3757
        %v3759 = vpop.f32.mrb[0].mxu0
        %v3760 = vpop.f32.mrb[0].mxu0
        %v3761 = vadd.f32 0.0, %v3760
        %v3762 = vpop.f32.mrb[0].mxu0
        %3763 = vdwg.mxu0
        %v3764 = vadd.f32 %v3470, %v3638
        %v3765 = vadd.f32 %v3471, %v3641
        %v3766 = vadd.f32 %v3472, %v3646
        %v3767 = vadd.f32 %v3473, %v3649
        %v3768 = vadd.f32 %v3474, %v3654
        %v3769 = vadd.f32 %v3475, %v3657
        %v3770 = vadd.f32 %v3476, %v3662
        %v3771 = vadd.f32 %v3477, %v3665
        %v3772 = vadd.f32 %v3478, %v3670
        %v3773 = vadd.f32 %v3479, %v3673
        %v3774 = vadd.f32 %v3480, %v3678
        %v3775 = vadd.f32 %v3481, %v3681
        %v3776 = vadd.f32 %v3482, %v3686
        %v3777 = vadd.f32 %v3483, %v3689
        %v3778 = vadd.f32 %v3484, %v3694
        %v3779 = vadd.f32 %v3485, %v3697
        %v3780 = vadd.f32 %v3486, %v3702
        %v3781 = vadd.f32 %v3487, %v3705
        %v3782 = vadd.f32 %v3488, %v3710
        %v3783 = vadd.f32 %v3489, %v3713
        %v3784 = vadd.f32 %v3490, %v3718
        %v3785 = vadd.f32 %v3491, %v3721
        %v3786 = vadd.f32 %v3492, %v3726
        %v3787 = vadd.f32 %v3493, %v3729
        %v3788 = vadd.f32 %v3494, %v3734
        %v3789 = vadd.f32 %v3495, %v3737
        %v3790 = vadd.f32 %v3496, %v3742
        %v3791 = vadd.f32 %v3497, %v3745
        %v3792 = vadd.f32 %v3498, %v3750
        %v3793 = vadd.f32 %v3499, %v3753
        %v3794 = vadd.f32 %v3500, %v3758
        %v3795 = vadd.f32 %v3501, %v3761
        %3796 = vst [vmem:[#allocation2] sm:$0xff] %v3764
        %3797 = vst [vmem:[#allocation2 + $0x8] sm:$0xff] %v3765
        %3798 = vst [vmem:[#allocation2 + $0x10] sm:$0xff] %v3766
        %3799 = vst [vmem:[#allocation2 + $0x18] sm:$0xff] %v3767
        %3800 = vst [vmem:[#allocation2 + $0x20] sm:$0xff] %v3768
        %3801 = vst [vmem:[#allocation2 + $0x28] sm:$0xff] %v3769
        %3802 = vst [vmem:[#allocation2 + $0x30] sm:$0xff] %v3770
        %3803 = vst [vmem:[#allocation2 + $0x38] sm:$0xff] %v3771
        %3804 = vst [vmem:[#allocation2 + $0x40] sm:$0xff] %v3772
        %3805 = vst [vmem:[#allocation2 + $0x48] sm:$0xff] %v3773
        %3806 = vst [vmem:[#allocation2 + $0x50] sm:$0xff] %v3774
        %3807 = vst [vmem:[#allocation2 + $0x58] sm:$0xff] %v3775
        %3808 = vst [vmem:[#allocation2 + $0x60] sm:$0xff] %v3776
        %3809 = vst [vmem:[#allocation2 + $0x68] sm:$0xff] %v3777
        %3810 = vst [vmem:[#allocation2 + $0x70] sm:$0xff] %v3778
        %3811 = vst [vmem:[#allocation2 + $0x78] sm:$0xff] %v3779
        %3812 = vst [vmem:[#allocation2 + $0x80] sm:$0xff] %v3780
        %3813 = vst [vmem:[#allocation2 + $0x88] sm:$0xff] %v3781
        %3814 = vst [vmem:[#allocation2 + $0x90] sm:$0xff] %v3782
        %3815 = vst [vmem:[#allocation2 + $0x98] sm:$0xff] %v3783
        %3816 = vst [vmem:[#allocation2 + $0xa0] sm:$0xff] %v3784
        %3817 = vst [vmem:[#allocation2 + $0xa8] sm:$0xff] %v3785
        %3818 = vst [vmem:[#allocation2 + $0xb0] sm:$0xff] %v3786
        %3819 = vst [vmem:[#allocation2 + $0xb8] sm:$0xff] %v3787
        %3820 = vst [vmem:[#allocation2 + $0xc0] sm:$0xff] %v3788
        %3821 = vst [vmem:[#allocation2 + $0xc8] sm:$0xff] %v3789
        %3822 = vst [vmem:[#allocation2 + $0xd0] sm:$0xff] %v3790
        %3823 = vst [vmem:[#allocation2 + $0xd8] sm:$0xff] %v3791
        %3824 = vst [vmem:[#allocation2 + $0xe0] sm:$0xff] %v3792
        %3825 = vst [vmem:[#allocation2 + $0xe8] sm:$0xff] %v3793
        %3826 = vst [vmem:[#allocation2 + $0xf0] sm:$0xff] %v3794
        %3827 = vst [vmem:[#allocation2 + $0xf8] sm:$0xff] %v3795
        %s3828 = sadd.s32 %s225, 2
        %s3829 = smul.u32 %s3828, 3
        %s3830 = smul.addr %s3829, 4
        %s3831 = scalar_lea.vmem %s222, %s3830
        %v3832 = vld [vmem:[%s3831] sm:$0xf]
        %v3833 = vld [vmem:[%s3831 + $0x4] sm:$0xf]
        %v3834 = vld [vmem:[%s3831 + $0xc] sm:$0xf]
        %v3835 = vld [vmem:[%s3831 + $0x10] sm:$0xf]
        %v3836 = vld [vmem:[%s3831 + $0x18] sm:$0xf]
        %v3837 = vld [vmem:[%s3831 + $0x1c] sm:$0xf]
        %v3838 = vld [vmem:[%s3831 + $0x24] sm:$0xf]
        %v3839 = vld [vmem:[%s3831 + $0x28] sm:$0xf]
        %v3840 = vld [vmem:[%s3831 + $0x30] sm:$0xf]
        %v3841 = vld [vmem:[%s3831 + $0x34] sm:$0xf]
        %v3842 = vld [vmem:[%s3831 + $0x3c] sm:$0xf]
        %v3843 = vld [vmem:[%s3831 + $0x40] sm:$0xf]
        %v3844 = vld [vmem:[%s3831 + $0x48] sm:$0xf]
        %v3845 = vld [vmem:[%s3831 + $0x4c] sm:$0xf]
        %v3846 = vld [vmem:[%s3831 + $0x54] sm:$0xf]
        %v3847 = vld [vmem:[%s3831 + $0x58] sm:$0xf]
        %v3848 = vld [vmem:[%s3831 + $0x60] sm:$0xf]
        %v3849 = vld [vmem:[%s3831 + $0x64] sm:$0xf]
        %v3850 = vld [vmem:[%s3831 + $0x6c] sm:$0xf]
        %v3851 = vld [vmem:[%s3831 + $0x70] sm:$0xf]
        %v3852 = vld [vmem:[%s3831 + $0x78] sm:$0xf]
        %v3853 = vld [vmem:[%s3831 + $0x7c] sm:$0xf]
        %v3854 = vld [vmem:[%s3831 + $0x84] sm:$0xf]
        %v3855 = vld [vmem:[%s3831 + $0x88] sm:$0xf]
        %v3856 = vld [vmem:[%s3831 + $0x90] sm:$0xf]
        %v3857 = vld [vmem:[%s3831 + $0x94] sm:$0xf]
        %v3858 = vld [vmem:[%s3831 + $0x9c] sm:$0xf]
        %v3859 = vld [vmem:[%s3831 + $0xa0] sm:$0xf]
        %v3860 = vld [vmem:[%s3831 + $0xa8] sm:$0xf]
        %v3861 = vld [vmem:[%s3831 + $0xac] sm:$0xf]
        %v3862 = vld [vmem:[%s3831 + $0xb4] sm:$0xf]
        %v3863 = vld [vmem:[%s3831 + $0xb8] sm:$0xf]
        %v3864 = vld [vmem:[#allocation2] sm:$0xff]
        %v3865 = vld [vmem:[#allocation2 + $0x8] sm:$0xff]
        %v3866 = vld [vmem:[#allocation2 + $0x10] sm:$0xff]
        %v3867 = vld [vmem:[#allocation2 + $0x18] sm:$0xff]
        %v3868 = vld [vmem:[#allocation2 + $0x20] sm:$0xff]
        %v3869 = vld [vmem:[#allocation2 + $0x28] sm:$0xff]
        %v3870 = vld [vmem:[#allocation2 + $0x30] sm:$0xff]
        %v3871 = vld [vmem:[#allocation2 + $0x38] sm:$0xff]
        %v3872 = vld [vmem:[#allocation2 + $0x40] sm:$0xff]
        %v3873 = vld [vmem:[#allocation2 + $0x48] sm:$0xff]
        %v3874 = vld [vmem:[#allocation2 + $0x50] sm:$0xff]
        %v3875 = vld [vmem:[#allocation2 + $0x58] sm:$0xff]
        %v3876 = vld [vmem:[#allocation2 + $0x60] sm:$0xff]
        %v3877 = vld [vmem:[#allocation2 + $0x68] sm:$0xff]
        %v3878 = vld [vmem:[#allocation2 + $0x70] sm:$0xff]
        %v3879 = vld [vmem:[#allocation2 + $0x78] sm:$0xff]
        %v3880 = vld [vmem:[#allocation2 + $0x80] sm:$0xff]
        %v3881 = vld [vmem:[#allocation2 + $0x88] sm:$0xff]
        %v3882 = vld [vmem:[#allocation2 + $0x90] sm:$0xff]
        %v3883 = vld [vmem:[#allocation2 + $0x98] sm:$0xff]
        %v3884 = vld [vmem:[#allocation2 + $0xa0] sm:$0xff]
        %v3885 = vld [vmem:[#allocation2 + $0xa8] sm:$0xff]
        %v3886 = vld [vmem:[#allocation2 + $0xb0] sm:$0xff]
        %v3887 = vld [vmem:[#allocation2 + $0xb8] sm:$0xff]
        %v3888 = vld [vmem:[#allocation2 + $0xc0] sm:$0xff]
        %v3889 = vld [vmem:[#allocation2 + $0xc8] sm:$0xff]
        %v3890 = vld [vmem:[#allocation2 + $0xd0] sm:$0xff]
        %v3891 = vld [vmem:[#allocation2 + $0xd8] sm:$0xff]
        %v3892 = vld [vmem:[#allocation2 + $0xe0] sm:$0xff]
        %v3893 = vld [vmem:[#allocation2 + $0xe8] sm:$0xff]
        %v3894 = vld [vmem:[#allocation2 + $0xf0] sm:$0xff]
        %v3895 = vld [vmem:[#allocation2 + $0xf8] sm:$0xff]
        %s3896 = scalar_lea.vmem %s1, 24
        %v3897 = vld [vmem:[%s3896] sm:$0xf]
        %v3930 = vunpack.c.l.b16 %v3832
        %v3931 = vunpack.c.l.b16 %v3833
        %v3932 = vunpack.c.l.b16 %v3834
        %v3933 = vunpack.c.l.b16 %v3835
        %v3934 = vunpack.c.l.b16 %v3836
        %v3935 = vunpack.c.l.b16 %v3837
        %v3936 = vunpack.c.l.b16 %v3838
        %v3937 = vunpack.c.l.b16 %v3839
        %v3938 = vunpack.c.l.b16 %v3840
        %v3939 = vunpack.c.l.b16 %v3841
        %v3940 = vunpack.c.l.b16 %v3842
        %v3941 = vunpack.c.l.b16 %v3843
        %v3942 = vunpack.c.l.b16 %v3844
        %v3943 = vunpack.c.l.b16 %v3845
        %v3944 = vunpack.c.l.b16 %v3846
        %v3945 = vunpack.c.l.b16 %v3847
        %v3946 = vunpack.c.l.b16 %v3848
        %v3947 = vunpack.c.l.b16 %v3849
        %v3948 = vunpack.c.l.b16 %v3850
        %v3949 = vunpack.c.l.b16 %v3851
        %v3950 = vunpack.c.l.b16 %v3852
        %v3951 = vunpack.c.l.b16 %v3853
        %v3952 = vunpack.c.l.b16 %v3854
        %v3953 = vunpack.c.l.b16 %v3855
        %v3954 = vunpack.c.l.b16 %v3856
        %v3955 = vunpack.c.l.b16 %v3857
        %v3956 = vunpack.c.l.b16 %v3858
        %v3957 = vunpack.c.l.b16 %v3859
        %v3958 = vunpack.c.l.b16 %v3860
        %v3959 = vunpack.c.l.b16 %v3861
        %v3960 = vunpack.c.l.b16 %v3862
        %v3961 = vunpack.c.l.b16 %v3863
        %v3962 = vpack.c.b16 %v3931, %v3930
        %v3963 = vpack.c.b16 %v3933, %v3932
        %v3964 = vpack.c.b16 %v3935, %v3934
        %v3965 = vpack.c.b16 %v3937, %v3936
        %v3966 = vpack.c.b16 %v3939, %v3938
        %v3967 = vpack.c.b16 %v3941, %v3940
        %v3968 = vpack.c.b16 %v3943, %v3942
        %v3969 = vpack.c.b16 %v3945, %v3944
        %v3970 = vpack.c.b16 %v3947, %v3946
        %v3971 = vpack.c.b16 %v3949, %v3948
        %v3972 = vpack.c.b16 %v3951, %v3950
        %v3973 = vpack.c.b16 %v3953, %v3952
        %v3974 = vpack.c.b16 %v3955, %v3954
        %v3975 = vpack.c.b16 %v3957, %v3956
        %v3976 = vpack.c.b16 %v3959, %v3958
        %v3977 = vpack.c.b16 %v3961, %v3960
        %v3979 = vsel %vm406, %v3962, 0
        %v3982 = vsel %vm406, %v3963, 0
        %v3985 = vsel %vm406, %v3964, 0
        %v3988 = vsel %vm406, %v3965, 0
        %v3991 = vsel %vm406, %v3966, 0
        %v3994 = vsel %vm406, %v3967, 0
        %v3997 = vsel %vm406, %v3968, 0
        %v4000 = vsel %vm406, %v3969, 0
        %v4003 = vsel %vm406, %v3970, 0
        %v4006 = vsel %vm406, %v3971, 0
        %v4009 = vsel %vm406, %v3972, 0
        %v4012 = vsel %vm406, %v3973, 0
        %v4015 = vsel %vm406, %v3974, 0
        %v4018 = vsel %vm406, %v3975, 0
        %v4021 = vsel %vm406, %v3976, 0
        %v4024 = vsel %vm406, %v3977, 0
        %v4027 = vsel %vm455, %v3897, 0
        %4029 = vmatprep.subr.bf16.mxu0 0
        %4030 = vmatpush1.bf16.msra.mxu0 %v4027
        %4031 = vmatprep.subr.bf16.mxu0 0
        %4032 = vmatpush1.bf16.msra.mxu0 0
        %4033 = vmatprep.subr.bf16.mxu0 0
        %4034 = vmatpush1.bf16.msra.mxu0 0
        %4035 = vmatprep.subr.bf16.mxu0 0
        %4036 = vmatpush1.bf16.msra.mxu0 0
        %4037 = vmatprep.subr.bf16.mxu0 0
        %4038 = vmatpush1.bf16.msra.mxu0 0
        %4039 = vmatprep.subr.bf16.mxu0 0
        %4040 = vmatpush1.bf16.msra.mxu0 0
        %4041 = vmatprep.subr.bf16.mxu0 0
        %4042 = vmatpush1.bf16.msra.mxu0 0
        %4043 = vmatprep.subr.bf16.mxu0 0
        %4044 = vmatpush1.bf16.msra.mxu0 0
        %4045 = vmatprep.subr.bf16.mxu0 0
        %4046 = vmatpush1.bf16.msra.mxu0 0
        %4047 = vmatprep.subr.bf16.mxu0 0
        %4048 = vmatpush1.bf16.msra.mxu0 0
        %4049 = vmatprep.subr.bf16.mxu0 0
        %4050 = vmatpush1.bf16.msra.mxu0 0
        %4051 = vmatprep.subr.bf16.mxu0 0
        %4052 = vmatpush1.bf16.msra.mxu0 0
        %4053 = vmatprep.subr.bf16.mxu0 0
        %4054 = vmatpush1.bf16.msra.mxu0 0
        %4055 = vmatprep.subr.bf16.mxu0 0
        %4056 = vmatpush1.bf16.msra.mxu0 0
        %4057 = vmatprep.subr.bf16.mxu0 0
        %4058 = vmatpush1.bf16.msra.mxu0 0
        %4059 = vmatprep.subr.bf16.mxu0 0
        %4060 = vmatpush1.bf16.msra.mxu0 0
        %4061 = vmatprep.mubr.bf16.mxu0 0
        %4062 = vmatmul.mubr.bf16.gmra.mrb[0].mxu0 %v3979
        %v4063 = vpop.f32.mrb[0].mxu0
        %v4064 = vadd.f32 0.0, %v4063
        %v4065 = vpop.f32.mrb[0].mxu0
        %v4066 = vpop.f32.mrb[0].mxu0
        %v4067 = vadd.f32 0.0, %v4066
        %v4068 = vpop.f32.mrb[0].mxu0
        %4069 = vmatprep.mubr.bf16.mxu0 0
        %4070 = vmatmul.mubr.bf16.gmra.mrb[0].mxu0 %v3982
        %v4071 = vpop.f32.mrb[0].mxu0
        %v4072 = vadd.f32 0.0, %v4071
        %v4073 = vpop.f32.mrb[0].mxu0
        %v4074 = vpop.f32.mrb[0].mxu0
        %v4075 = vadd.f32 0.0, %v4074
        %v4076 = vpop.f32.mrb[0].mxu0
        %4077 = vmatprep.mubr.bf16.mxu0 0
        %4078 = vmatmul.mubr.bf16.gmra.mrb[0].mxu0 %v3985
        %v4079 = vpop.f32.mrb[0].mxu0
        %v4080 = vadd.f32 0.0, %v4079
        %v4081 = vpop.f32.mrb[0].mxu0
        %v4082 = vpop.f32.mrb[0].mxu0
        %v4083 = vadd.f32 0.0, %v4082
        %v4084 = vpop.f32.mrb[0].mxu0
        %4085 = vmatprep.mubr.bf16.mxu0 0
        %4086 = vmatmul.mubr.bf16.gmra.mrb[0].mxu0 %v3988
        %v4087 = vpop.f32.mrb[0].mxu0
        %v4088 = vadd.f32 0.0, %v4087
        %v4089 = vpop.f32.mrb[0].mxu0
        %v4090 = vpop.f32.mrb[0].mxu0
        %v4091 = vadd.f32 0.0, %v4090
        %v4092 = vpop.f32.mrb[0].mxu0
        %4093 = vmatprep.mubr.bf16.mxu0 0
        %4094 = vmatmul.mubr.bf16.gmra.mrb[0].mxu0 %v3991
        %v4095 = vpop.f32.mrb[0].mxu0
        %v4096 = vadd.f32 0.0, %v4095
        %v4097 = vpop.f32.mrb[0].mxu0
        %v4098 = vpop.f32.mrb[0].mxu0
        %v4099 = vadd.f32 0.0, %v4098
        %v4100 = vpop.f32.mrb[0].mxu0
        %4101 = vmatprep.mubr.bf16.mxu0 0
        %4102 = vmatmul.mubr.bf16.gmra.mrb[0].mxu0 %v3994
        %v4103 = vpop.f32.mrb[0].mxu0
        %v4104 = vadd.f32 0.0, %v4103
        %v4105 = vpop.f32.mrb[0].mxu0
        %v4106 = vpop.f32.mrb[0].mxu0
        %v4107 = vadd.f32 0.0, %v4106
        %v4108 = vpop.f32.mrb[0].mxu0
        %4109 = vmatprep.mubr.bf16.mxu0 0
        %4110 = vmatmul.mubr.bf16.gmra.mrb[0].mxu0 %v3997
        %v4111 = vpop.f32.mrb[0].mxu0
        %v4112 = vadd.f32 0.0, %v4111
        %v4113 = vpop.f32.mrb[0].mxu0
        %v4114 = vpop.f32.mrb[0].mxu0
        %v4115 = vadd.f32 0.0, %v4114
        %v4116 = vpop.f32.mrb[0].mxu0
        %4117 = vmatprep.mubr.bf16.mxu0 0
        %4118 = vmatmul.mubr.bf16.gmra.mrb[0].mxu0 %v4000
        %v4119 = vpop.f32.mrb[0].mxu0
        %v4120 = vadd.f32 0.0, %v4119
        %v4121 = vpop.f32.mrb[0].mxu0
        %v4122 = vpop.f32.mrb[0].mxu0
        %v4123 = vadd.f32 0.0, %v4122
        %v4124 = vpop.f32.mrb[0].mxu0
        %4125 = vmatprep.mubr.bf16.mxu0 0
        %4126 = vmatmul.mubr.bf16.gmra.mrb[0].mxu0 %v4003
        %v4127 = vpop.f32.mrb[0].mxu0
        %v4128 = vadd.f32 0.0, %v4127
        %v4129 = vpop.f32.mrb[0].mxu0
        %v4130 = vpop.f32.mrb[0].mxu0
        %v4131 = vadd.f32 0.0, %v4130
        %v4132 = vpop.f32.mrb[0].mxu0
        %4133 = vmatprep.mubr.bf16.mxu0 0
        %4134 = vmatmul.mubr.bf16.gmra.mrb[0].mxu0 %v4006
        %v4135 = vpop.f32.mrb[0].mxu0
        %v4136 = vadd.f32 0.0, %v4135
        %v4137 = vpop.f32.mrb[0].mxu0
        %v4138 = vpop.f32.mrb[0].mxu0
        %v4139 = vadd.f32 0.0, %v4138
        %v4140 = vpop.f32.mrb[0].mxu0
        %4141 = vmatprep.mubr.bf16.mxu0 0
        %4142 = vmatmul.mubr.bf16.gmra.mrb[0].mxu0 %v4009
        %v4143 = vpop.f32.mrb[0].mxu0
        %v4144 = vadd.f32 0.0, %v4143
        %v4145 = vpop.f32.mrb[0].mxu0
        %v4146 = vpop.f32.mrb[0].mxu0
        %v4147 = vadd.f32 0.0, %v4146
        %v4148 = vpop.f32.mrb[0].mxu0
        %4149 = vmatprep.mubr.bf16.mxu0 0
        %4150 = vmatmul.mubr.bf16.gmra.mrb[0].mxu0 %v4012
        %v4151 = vpop.f32.mrb[0].mxu0
        %v4152 = vadd.f32 0.0, %v4151
        %v4153 = vpop.f32.mrb[0].mxu0
        %v4154 = vpop.f32.mrb[0].mxu0
        %v4155 = vadd.f32 0.0, %v4154
        %v4156 = vpop.f32.mrb[0].mxu0
        %4157 = vmatprep.mubr.bf16.mxu0 0
        %4158 = vmatmul.mubr.bf16.gmra.mrb[0].mxu0 %v4015
        %v4159 = vpop.f32.mrb[0].mxu0
        %v4160 = vadd.f32 0.0, %v4159
        %v4161 = vpop.f32.mrb[0].mxu0
        %v4162 = vpop.f32.mrb[0].mxu0
        %v4163 = vadd.f32 0.0, %v4162
        %v4164 = vpop.f32.mrb[0].mxu0
        %4165 = vmatprep.mubr.bf16.mxu0 0
        %4166 = vmatmul.mubr.bf16.gmra.mrb[0].mxu0 %v4018
        %v4167 = vpop.f32.mrb[0].mxu0
        %v4168 = vadd.f32 0.0, %v4167
        %v4169 = vpop.f32.mrb[0].mxu0
        %v4170 = vpop.f32.mrb[0].mxu0
        %v4171 = vadd.f32 0.0, %v4170
        %v4172 = vpop.f32.mrb[0].mxu0
        %4173 = vmatprep.mubr.bf16.mxu0 0
        %4174 = vmatmul.mubr.bf16.gmra.mrb[0].mxu0 %v4021
        %v4175 = vpop.f32.mrb[0].mxu0
        %v4176 = vadd.f32 0.0, %v4175
        %v4177 = vpop.f32.mrb[0].mxu0
        %v4178 = vpop.f32.mrb[0].mxu0
        %v4179 = vadd.f32 0.0, %v4178
        %v4180 = vpop.f32.mrb[0].mxu0
        %4181 = vmatprep.mubr.bf16.mxu0 0
        %4182 = vmatmul.mubr.bf16.gmra.mrb[0].mxu0 %v4024
        %v4183 = vpop.f32.mrb[0].mxu0
        %v4184 = vadd.f32 0.0, %v4183
        %v4185 = vpop.f32.mrb[0].mxu0
        %v4186 = vpop.f32.mrb[0].mxu0
        %v4187 = vadd.f32 0.0, %v4186
        %v4188 = vpop.f32.mrb[0].mxu0
        %4189 = vdwg.mxu0
        %v4190 = vadd.f32 %v3864, %v4064
        %v4191 = vadd.f32 %v3865, %v4067
        %v4192 = vadd.f32 %v3866, %v4072
        %v4193 = vadd.f32 %v3867, %v4075
        %v4194 = vadd.f32 %v3868, %v4080
        %v4195 = vadd.f32 %v3869, %v4083
        %v4196 = vadd.f32 %v3870, %v4088
        %v4197 = vadd.f32 %v3871, %v4091
        %v4198 = vadd.f32 %v3872, %v4096
        %v4199 = vadd.f32 %v3873, %v4099
        %v4200 = vadd.f32 %v3874, %v4104
        %v4201 = vadd.f32 %v3875, %v4107
        %v4202 = vadd.f32 %v3876, %v4112
        %v4203 = vadd.f32 %v3877, %v4115
        %v4204 = vadd.f32 %v3878, %v4120
        %v4205 = vadd.f32 %v3879, %v4123
        %v4206 = vadd.f32 %v3880, %v4128
        %v4207 = vadd.f32 %v3881, %v4131
        %v4208 = vadd.f32 %v3882, %v4136
        %v4209 = vadd.f32 %v3883, %v4139
        %v4210 = vadd.f32 %v3884, %v4144
        %v4211 = vadd.f32 %v3885, %v4147
        %v4212 = vadd.f32 %v3886, %v4152
        %v4213 = vadd.f32 %v3887, %v4155
        %v4214 = vadd.f32 %v3888, %v4160
        %v4215 = vadd.f32 %v3889, %v4163
        %v4216 = vadd.f32 %v3890, %v4168
        %v4217 = vadd.f32 %v3891, %v4171
        %v4218 = vadd.f32 %v3892, %v4176
        %v4219 = vadd.f32 %v3893, %v4179
        %v4220 = vadd.f32 %v3894, %v4184
        %v4221 = vadd.f32 %v3895, %v4187
        %4222 = vst [vmem:[#allocation2] sm:$0xff] %v4190
        %4223 = vst [vmem:[#allocation2 + $0x8] sm:$0xff] %v4191
        %4224 = vst [vmem:[#allocation2 + $0x10] sm:$0xff] %v4192
        %4225 = vst [vmem:[#allocation2 + $0x18] sm:$0xff] %v4193
        %4226 = vst [vmem:[#allocation2 + $0x20] sm:$0xff] %v4194
        %4227 = vst [vmem:[#allocation2 + $0x28] sm:$0xff] %v4195
        %4228 = vst [vmem:[#allocation2 + $0x30] sm:$0xff] %v4196
        %4229 = vst [vmem:[#allocation2 + $0x38] sm:$0xff] %v4197
        %4230 = vst [vmem:[#allocation2 + $0x40] sm:$0xff] %v4198
        %4231 = vst [vmem:[#allocation2 + $0x48] sm:$0xff] %v4199
        %4232 = vst [vmem:[#allocation2 + $0x50] sm:$0xff] %v4200
        %4233 = vst [vmem:[#allocation2 + $0x58] sm:$0xff] %v4201
        %4234 = vst [vmem:[#allocation2 + $0x60] sm:$0xff] %v4202
        %4235 = vst [vmem:[#allocation2 + $0x68] sm:$0xff] %v4203
        %4236 = vst [vmem:[#allocation2 + $0x70] sm:$0xff] %v4204
        %4237 = vst [vmem:[#allocation2 + $0x78] sm:$0xff] %v4205
        %4238 = vst [vmem:[#allocation2 + $0x80] sm:$0xff] %v4206
        %4239 = vst [vmem:[#allocation2 + $0x88] sm:$0xff] %v4207
        %4240 = vst [vmem:[#allocation2 + $0x90] sm:$0xff] %v4208
        %4241 = vst [vmem:[#allocation2 + $0x98] sm:$0xff] %v4209
        %4242 = vst [vmem:[#allocation2 + $0xa0] sm:$0xff] %v4210
        %4243 = vst [vmem:[#allocation2 + $0xa8] sm:$0xff] %v4211
        %4244 = vst [vmem:[#allocation2 + $0xb0] sm:$0xff] %v4212
        %4245 = vst [vmem:[#allocation2 + $0xb8] sm:$0xff] %v4213
        %4246 = vst [vmem:[#allocation2 + $0xc0] sm:$0xff] %v4214
        %4247 = vst [vmem:[#allocation2 + $0xc8] sm:$0xff] %v4215
        %4248 = vst [vmem:[#allocation2 + $0xd0] sm:$0xff] %v4216
        %4249 = vst [vmem:[#allocation2 + $0xd8] sm:$0xff] %v4217
        %4250 = vst [vmem:[#allocation2 + $0xe0] sm:$0xff] %v4218
        %4251 = vst [vmem:[#allocation2 + $0xe8] sm:$0xff] %v4219
        %4252 = vst [vmem:[#allocation2 + $0xf0] sm:$0xff] %v4220
        %4253 = vst [vmem:[#allocation2 + $0xf8] sm:$0xff] %v4221
        %v4254 = vld [vmem:[%s3831] sm:$0xf]
        %v4255 = vld [vmem:[%s3831 + $0x4] sm:$0xf]
        %v4256 = vld [vmem:[%s3831 + $0x8] sm:$0x1]
        %v4257 = vld [vmem:[%s3831 + $0xc] sm:$0xf]
        %v4258 = vld [vmem:[%s3831 + $0x10] sm:$0xf]
        %v4259 = vld [vmem:[%s3831 + $0x14] sm:$0x1]
        %v4260 = vld [vmem:[%s3831 + $0x18] sm:$0xf]
        %v4261 = vld [vmem:[%s3831 + $0x1c] sm:$0xf]
        %v4262 = vld [vmem:[%s3831 + $0x20] sm:$0x1]
        %v4263 = vld [vmem:[%s3831 + $0x24] sm:$0xf]
        %v4264 = vld [vmem:[%s3831 + $0x28] sm:$0xf]
        %v4265 = vld [vmem:[%s3831 + $0x2c] sm:$0x1]
        %v4266 = vld [vmem:[%s3831 + $0x30] sm:$0xf]
        %v4267 = vld [vmem:[%s3831 + $0x34] sm:$0xf]
        %v4268 = vld [vmem:[%s3831 + $0x38] sm:$0x1]
        %v4269 = vld [vmem:[%s3831 + $0x3c] sm:$0xf]
        %v4270 = vld [vmem:[%s3831 + $0x40] sm:$0xf]
        %v4271 = vld [vmem:[%s3831 + $0x44] sm:$0x1]
        %v4272 = vld [vmem:[%s3831 + $0x48] sm:$0xf]
        %v4273 = vld [vmem:[%s3831 + $0x4c] sm:$0xf]
        %v4274 = vld [vmem:[%s3831 + $0x50] sm:$0x1]
        %v4275 = vld [vmem:[%s3831 + $0x54] sm:$0xf]
        %v4276 = vld [vmem:[%s3831 + $0x58] sm:$0xf]
        %v4277 = vld [vmem:[%s3831 + $0x5c] sm:$0x1]
        %v4278 = vld [vmem:[%s3831 + $0x60] sm:$0xf]
        %v4279 = vld [vmem:[%s3831 + $0x64] sm:$0xf]
        %v4280 = vld [vmem:[%s3831 + $0x68] sm:$0x1]
        %v4281 = vld [vmem:[%s3831 + $0x6c] sm:$0xf]
        %v4282 = vld [vmem:[%s3831 + $0x70] sm:$0xf]
        %v4283 = vld [vmem:[%s3831 + $0x74] sm:$0x1]
        %v4284 = vld [vmem:[%s3831 + $0x78] sm:$0xf]
        %v4285 = vld [vmem:[%s3831 + $0x7c] sm:$0xf]
        %v4286 = vld [vmem:[%s3831 + $0x80] sm:$0x1]
        %v4287 = vld [vmem:[%s3831 + $0x84] sm:$0xf]
        %v4288 = vld [vmem:[%s3831 + $0x88] sm:$0xf]
        %v4289 = vld [vmem:[%s3831 + $0x8c] sm:$0x1]
        %v4290 = vld [vmem:[%s3831 + $0x90] sm:$0xf]
        %v4291 = vld [vmem:[%s3831 + $0x94] sm:$0xf]
        %v4292 = vld [vmem:[%s3831 + $0x98] sm:$0x1]
        %v4293 = vld [vmem:[%s3831 + $0x9c] sm:$0xf]
        %v4294 = vld [vmem:[%s3831 + $0xa0] sm:$0xf]
        %v4295 = vld [vmem:[%s3831 + $0xa4] sm:$0x1]
        %v4296 = vld [vmem:[%s3831 + $0xa8] sm:$0xf]
        %v4297 = vld [vmem:[%s3831 + $0xac] sm:$0xf]
        %v4298 = vld [vmem:[%s3831 + $0xb0] sm:$0x1]
        %v4299 = vld [vmem:[%s3831 + $0xb4] sm:$0xf]
        %v4300 = vld [vmem:[%s3831 + $0xb8] sm:$0xf]
        %v4301 = vld [vmem:[%s3831 + $0xbc] sm:$0x1]
        %v4303 = vshrl.u32 %v4254, 16
        %v4305 = vrot.slane %v4303, 4
        %v4306 = vshll.u32 %v4254, 16
        %v4308 = vrot.slane %v4306, 5
        %v4309 = vor.u32 %v4305, %v4308
        %v4310 = vrot.slane %v4309, 4
        %v4312 = vshll.u32 %v4255, 16
        %v4314 = vrot.slane %v4312, 5
        %v4315 = vsel %vm734, %v4310, %v4314
        %v4316 = vshrl.u32 %v4255, 16
        %v4318 = vrot.slane %v4316, 4
        %v4319 = vor.u32 %v4318, %v4314
        %v4320 = vrot.slane %v4319, 4
        %v4322 = vshll.u32 %v4256, 16
        %v4324 = vrot.slane %v4322, 5
        %v4325 = vsel %vm734, %v4320, %v4324
        %v4327 = vshrl.u32 %v4257, 16
        %v4329 = vrot.slane %v4327, 4
        %v4330 = vshll.u32 %v4257, 16
        %v4332 = vrot.slane %v4330, 5
        %v4333 = vor.u32 %v4329, %v4332
        %v4334 = vrot.slane %v4333, 4
        %v4336 = vshll.u32 %v4258, 16
        %v4338 = vrot.slane %v4336, 5
        %v4339 = vsel %vm734, %v4334, %v4338
        %v4340 = vshrl.u32 %v4258, 16
        %v4342 = vrot.slane %v4340, 4
        %v4343 = vor.u32 %v4342, %v4338
        %v4344 = vrot.slane %v4343, 4
        %v4346 = vshll.u32 %v4259, 16
        %v4348 = vrot.slane %v4346, 5
        %v4349 = vsel %vm734, %v4344, %v4348
        %v4351 = vshrl.u32 %v4260, 16
        %v4353 = vrot.slane %v4351, 4
        %v4354 = vshll.u32 %v4260, 16
        %v4356 = vrot.slane %v4354, 5
        %v4357 = vor.u32 %v4353, %v4356
        %v4358 = vrot.slane %v4357, 4
        %v4360 = vshll.u32 %v4261, 16
        %v4362 = vrot.slane %v4360, 5
        %v4363 = vsel %vm734, %v4358, %v4362
        %v4364 = vshrl.u32 %v4261, 16
        %v4366 = vrot.slane %v4364, 4
        %v4367 = vor.u32 %v4366, %v4362
        %v4368 = vrot.slane %v4367, 4
        %v4370 = vshll.u32 %v4262, 16
        %v4372 = vrot.slane %v4370, 5
        %v4373 = vsel %vm734, %v4368, %v4372
        %v4375 = vshrl.u32 %v4263, 16
        %v4377 = vrot.slane %v4375, 4
        %v4378 = vshll.u32 %v4263, 16
        %v4380 = vrot.slane %v4378, 5
        %v4381 = vor.u32 %v4377, %v4380
        %v4382 = vrot.slane %v4381, 4
        %v4384 = vshll.u32 %v4264, 16
        %v4386 = vrot.slane %v4384, 5
        %v4387 = vsel %vm734, %v4382, %v4386
        %v4388 = vshrl.u32 %v4264, 16
        %v4390 = vrot.slane %v4388, 4
        %v4391 = vor.u32 %v4390, %v4386
        %v4392 = vrot.slane %v4391, 4
        %v4394 = vshll.u32 %v4265, 16
        %v4396 = vrot.slane %v4394, 5
        %v4397 = vsel %vm734, %v4392, %v4396
        %v4399 = vshrl.u32 %v4266, 16
        %v4401 = vrot.slane %v4399, 4
        %v4402 = vshll.u32 %v4266, 16
        %v4404 = vrot.slane %v4402, 5
        %v4405 = vor.u32 %v4401, %v4404
        %v4406 = vrot.slane %v4405, 4
        %v4408 = vshll.u32 %v4267, 16
        %v4410 = vrot.slane %v4408, 5
        %v4411 = vsel %vm734, %v4406, %v4410
        %v4412 = vshrl.u32 %v4267, 16
        %v4414 = vrot.slane %v4412, 4
        %v4415 = vor.u32 %v4414, %v4410
        %v4416 = vrot.slane %v4415, 4
        %v4418 = vshll.u32 %v4268, 16
        %v4420 = vrot.slane %v4418, 5
        %v4421 = vsel %vm734, %v4416, %v4420
        %v4423 = vshrl.u32 %v4269, 16
        %v4425 = vrot.slane %v4423, 4
        %v4426 = vshll.u32 %v4269, 16
        %v4428 = vrot.slane %v4426, 5
        %v4429 = vor.u32 %v4425, %v4428
        %v4430 = vrot.slane %v4429, 4
        %v4432 = vshll.u32 %v4270, 16
        %v4434 = vrot.slane %v4432, 5
        %v4435 = vsel %vm734, %v4430, %v4434
        %v4436 = vshrl.u32 %v4270, 16
        %v4438 = vrot.slane %v4436, 4
        %v4439 = vor.u32 %v4438, %v4434
        %v4440 = vrot.slane %v4439, 4
        %v4442 = vshll.u32 %v4271, 16
        %v4444 = vrot.slane %v4442, 5
        %v4445 = vsel %vm734, %v4440, %v4444
        %v4447 = vshrl.u32 %v4272, 16
        %v4449 = vrot.slane %v4447, 4
        %v4450 = vshll.u32 %v4272, 16
        %v4452 = vrot.slane %v4450, 5
        %v4453 = vor.u32 %v4449, %v4452
        %v4454 = vrot.slane %v4453, 4
        %v4456 = vshll.u32 %v4273, 16
        %v4458 = vrot.slane %v4456, 5
        %v4459 = vsel %vm734, %v4454, %v4458
        %v4460 = vshrl.u32 %v4273, 16
        %v4462 = vrot.slane %v4460, 4
        %v4463 = vor.u32 %v4462, %v4458
        %v4464 = vrot.slane %v4463, 4
        %v4466 = vshll.u32 %v4274, 16
        %v4468 = vrot.slane %v4466, 5
        %v4469 = vsel %vm734, %v4464, %v4468
        %v4471 = vshrl.u32 %v4275, 16
        %v4473 = vrot.slane %v4471, 4
        %v4474 = vshll.u32 %v4275, 16
        %v4476 = vrot.slane %v4474, 5
        %v4477 = vor.u32 %v4473, %v4476
        %v4478 = vrot.slane %v4477, 4
        %v4480 = vshll.u32 %v4276, 16
        %v4482 = vrot.slane %v4480, 5
        %v4483 = vsel %vm734, %v4478, %v4482
        %v4484 = vshrl.u32 %v4276, 16
        %v4486 = vrot.slane %v4484, 4
        %v4487 = vor.u32 %v4486, %v4482
        %v4488 = vrot.slane %v4487, 4
        %v4490 = vshll.u32 %v4277, 16
        %v4492 = vrot.slane %v4490, 5
        %v4493 = vsel %vm734, %v4488, %v4492
        %v4495 = vshrl.u32 %v4278, 16
        %v4497 = vrot.slane %v4495, 4
        %v4498 = vshll.u32 %v4278, 16
        %v4500 = vrot.slane %v4498, 5
        %v4501 = vor.u32 %v4497, %v4500
        %v4502 = vrot.slane %v4501, 4
        %v4504 = vshll.u32 %v4279, 16
        %v4506 = vrot.slane %v4504, 5
        %v4507 = vsel %vm734, %v4502, %v4506
        %v4508 = vshrl.u32 %v4279, 16
        %v4510 = vrot.slane %v4508, 4
        %v4511 = vor.u32 %v4510, %v4506
        %v4512 = vrot.slane %v4511, 4
        %v4514 = vshll.u32 %v4280, 16
        %v4516 = vrot.slane %v4514, 5
        %v4517 = vsel %vm734, %v4512, %v4516
        %v4519 = vshrl.u32 %v4281, 16
        %v4521 = vrot.slane %v4519, 4
        %v4522 = vshll.u32 %v4281, 16
        %v4524 = vrot.slane %v4522, 5
        %v4525 = vor.u32 %v4521, %v4524
        %v4526 = vrot.slane %v4525, 4
        %v4528 = vshll.u32 %v4282, 16
        %v4530 = vrot.slane %v4528, 5
        %v4531 = vsel %vm734, %v4526, %v4530
        %v4532 = vshrl.u32 %v4282, 16
        %v4534 = vrot.slane %v4532, 4
        %v4535 = vor.u32 %v4534, %v4530
        %v4536 = vrot.slane %v4535, 4
        %v4538 = vshll.u32 %v4283, 16
        %v4540 = vrot.slane %v4538, 5
        %v4541 = vsel %vm734, %v4536, %v4540
        %v4543 = vshrl.u32 %v4284, 16
        %v4545 = vrot.slane %v4543, 4
        %v4546 = vshll.u32 %v4284, 16
        %v4548 = vrot.slane %v4546, 5
        %v4549 = vor.u32 %v4545, %v4548
        %v4550 = vrot.slane %v4549, 4
        %v4552 = vshll.u32 %v4285, 16
        %v4554 = vrot.slane %v4552, 5
        %v4555 = vsel %vm734, %v4550, %v4554
        %v4556 = vshrl.u32 %v4285, 16
        %v4558 = vrot.slane %v4556, 4
        %v4559 = vor.u32 %v4558, %v4554
        %v4560 = vrot.slane %v4559, 4
        %v4562 = vshll.u32 %v4286, 16
        %v4564 = vrot.slane %v4562, 5
        %v4565 = vsel %vm734, %v4560, %v4564
        %v4567 = vshrl.u32 %v4287, 16
        %v4569 = vrot.slane %v4567, 4
        %v4570 = vshll.u32 %v4287, 16
        %v4572 = vrot.slane %v4570, 5
        %v4573 = vor.u32 %v4569, %v4572
        %v4574 = vrot.slane %v4573, 4
        %v4576 = vshll.u32 %v4288, 16
        %v4578 = vrot.slane %v4576, 5
        %v4579 = vsel %vm734, %v4574, %v4578
        %v4580 = vshrl.u32 %v4288, 16
        %v4582 = vrot.slane %v4580, 4
        %v4583 = vor.u32 %v4582, %v4578
        %v4584 = vrot.slane %v4583, 4
        %v4586 = vshll.u32 %v4289, 16
        %v4588 = vrot.slane %v4586, 5
        %v4589 = vsel %vm734, %v4584, %v4588
        %v4591 = vshrl.u32 %v4290, 16
        %v4593 = vrot.slane %v4591, 4
        %v4594 = vshll.u32 %v4290, 16
        %v4596 = vrot.slane %v4594, 5
        %v4597 = vor.u32 %v4593, %v4596
        %v4598 = vrot.slane %v4597, 4
        %v4600 = vshll.u32 %v4291, 16
        %v4602 = vrot.slane %v4600, 5
        %v4603 = vsel %vm734, %v4598, %v4602
        %v4604 = vshrl.u32 %v4291, 16
        %v4606 = vrot.slane %v4604, 4
        %v4607 = vor.u32 %v4606, %v4602
        %v4608 = vrot.slane %v4607, 4
        %v4610 = vshll.u32 %v4292, 16
        %v4612 = vrot.slane %v4610, 5
        %v4613 = vsel %vm734, %v4608, %v4612
        %v4615 = vshrl.u32 %v4293, 16
        %v4617 = vrot.slane %v4615, 4
        %v4618 = vshll.u32 %v4293, 16
        %v4620 = vrot.slane %v4618, 5
        %v4621 = vor.u32 %v4617, %v4620
        %v4622 = vrot.slane %v4621, 4
        %v4624 = vshll.u32 %v4294, 16
        %v4626 = vrot.slane %v4624, 5
        %v4627 = vsel %vm734, %v4622, %v4626
        %v4628 = vshrl.u32 %v4294, 16
        %v4630 = vrot.slane %v4628, 4
        %v4631 = vor.u32 %v4630, %v4626
        %v4632 = vrot.slane %v4631, 4
        %v4634 = vshll.u32 %v4295, 16
        %v4636 = vrot.slane %v4634, 5
        %v4637 = vsel %vm734, %v4632, %v4636
        %v4639 = vshrl.u32 %v4296, 16
        %v4641 = vrot.slane %v4639, 4
        %v4642 = vshll.u32 %v4296, 16
        %v4644 = vrot.slane %v4642, 5
        %v4645 = vor.u32 %v4641, %v4644
        %v4646 = vrot.slane %v4645, 4
        %v4648 = vshll.u32 %v4297, 16
        %v4650 = vrot.slane %v4648, 5
        %v4651 = vsel %vm734, %v4646, %v4650
        %v4652 = vshrl.u32 %v4297, 16
        %v4654 = vrot.slane %v4652, 4
        %v4655 = vor.u32 %v4654, %v4650
        %v4656 = vrot.slane %v4655, 4
        %v4658 = vshll.u32 %v4298, 16
        %v4660 = vrot.slane %v4658, 5
        %v4661 = vsel %vm734, %v4656, %v4660
        %v4663 = vshrl.u32 %v4299, 16
        %v4665 = vrot.slane %v4663, 4
        %v4666 = vshll.u32 %v4299, 16
        %v4668 = vrot.slane %v4666, 5
        %v4669 = vor.u32 %v4665, %v4668
        %v4670 = vrot.slane %v4669, 4
        %v4672 = vshll.u32 %v4300, 16
        %v4674 = vrot.slane %v4672, 5
        %v4675 = vsel %vm734, %v4670, %v4674
        %v4676 = vshrl.u32 %v4300, 16
        %v4678 = vrot.slane %v4676, 4
        %v4679 = vor.u32 %v4678, %v4674
        %v4680 = vrot.slane %v4679, 4
        %v4682 = vshll.u32 %v4301, 16
        %v4684 = vrot.slane %v4682, 5
        %v4685 = vsel %vm734, %v4680, %v4684
        %v4686 = vld [vmem:[#allocation2] sm:$0xff]
        %v4687 = vld [vmem:[#allocation2 + $0x8] sm:$0xff]
        %v4688 = vld [vmem:[#allocation2 + $0x10] sm:$0xff]
        %v4689 = vld [vmem:[#allocation2 + $0x18] sm:$0xff]
        %v4690 = vld [vmem:[#allocation2 + $0x20] sm:$0xff]
        %v4691 = vld [vmem:[#allocation2 + $0x28] sm:$0xff]
        %v4692 = vld [vmem:[#allocation2 + $0x30] sm:$0xff]
        %v4693 = vld [vmem:[#allocation2 + $0x38] sm:$0xff]
        %v4694 = vld [vmem:[#allocation2 + $0x40] sm:$0xff]
        %v4695 = vld [vmem:[#allocation2 + $0x48] sm:$0xff]
        %v4696 = vld [vmem:[#allocation2 + $0x50] sm:$0xff]
        %v4697 = vld [vmem:[#allocation2 + $0x58] sm:$0xff]
        %v4698 = vld [vmem:[#allocation2 + $0x60] sm:$0xff]
        %v4699 = vld [vmem:[#allocation2 + $0x68] sm:$0xff]
        %v4700 = vld [vmem:[#allocation2 + $0x70] sm:$0xff]
        %v4701 = vld [vmem:[#allocation2 + $0x78] sm:$0xff]
        %v4702 = vld [vmem:[#allocation2 + $0x80] sm:$0xff]
        %v4703 = vld [vmem:[#allocation2 + $0x88] sm:$0xff]
        %v4704 = vld [vmem:[#allocation2 + $0x90] sm:$0xff]
        %v4705 = vld [vmem:[#allocation2 + $0x98] sm:$0xff]
        %v4706 = vld [vmem:[#allocation2 + $0xa0] sm:$0xff]
        %v4707 = vld [vmem:[#allocation2 + $0xa8] sm:$0xff]
        %v4708 = vld [vmem:[#allocation2 + $0xb0] sm:$0xff]
        %v4709 = vld [vmem:[#allocation2 + $0xb8] sm:$0xff]
        %v4710 = vld [vmem:[#allocation2 + $0xc0] sm:$0xff]
        %v4711 = vld [vmem:[#allocation2 + $0xc8] sm:$0xff]
        %v4712 = vld [vmem:[#allocation2 + $0xd0] sm:$0xff]
        %v4713 = vld [vmem:[#allocation2 + $0xd8] sm:$0xff]
        %v4714 = vld [vmem:[#allocation2 + $0xe0] sm:$0xff]
        %v4715 = vld [vmem:[#allocation2 + $0xe8] sm:$0xff]
        %v4716 = vld [vmem:[#allocation2 + $0xf0] sm:$0xff]
        %v4717 = vld [vmem:[#allocation2 + $0xf8] sm:$0xff]
        %s4718 = scalar_lea.vmem %s1, 28
        %v4719 = vld [vmem:[%s4718] sm:$0xf]
        %v4720 = vunpack.c.l.b16 %v4315
        %v4721 = vunpack.c.l.b16 %v4325
        %v4722 = vunpack.c.l.b16 %v4339
        %v4723 = vunpack.c.l.b16 %v4349
        %v4724 = vunpack.c.l.b16 %v4363
        %v4725 = vunpack.c.l.b16 %v4373
        %v4726 = vunpack.c.l.b16 %v4387
        %v4727 = vunpack.c.l.b16 %v4397
        %v4728 = vunpack.c.l.b16 %v4411
        %v4729 = vunpack.c.l.b16 %v4421
        %v4730 = vunpack.c.l.b16 %v4435
        %v4731 = vunpack.c.l.b16 %v4445
        %v4732 = vunpack.c.l.b16 %v4459
        %v4733 = vunpack.c.l.b16 %v4469
        %v4734 = vunpack.c.l.b16 %v4483
        %v4735 = vunpack.c.l.b16 %v4493
        %v4736 = vunpack.c.l.b16 %v4507
        %v4737 = vunpack.c.l.b16 %v4517
        %v4738 = vunpack.c.l.b16 %v4531
        %v4739 = vunpack.c.l.b16 %v4541
        %v4740 = vunpack.c.l.b16 %v4555
        %v4741 = vunpack.c.l.b16 %v4565
        %v4742 = vunpack.c.l.b16 %v4579
        %v4743 = vunpack.c.l.b16 %v4589
        %v4744 = vunpack.c.l.b16 %v4603
        %v4745 = vunpack.c.l.b16 %v4613
        %v4746 = vunpack.c.l.b16 %v4627
        %v4747 = vunpack.c.l.b16 %v4637
        %v4748 = vunpack.c.l.b16 %v4651
        %v4749 = vunpack.c.l.b16 %v4661
        %v4750 = vunpack.c.l.b16 %v4675
        %v4751 = vunpack.c.l.b16 %v4685
        %v4752 = vpack.c.b16 %v4721, %v4720
        %v4753 = vpack.c.b16 %v4723, %v4722
        %v4754 = vpack.c.b16 %v4725, %v4724
        %v4755 = vpack.c.b16 %v4727, %v4726
        %v4756 = vpack.c.b16 %v4729, %v4728
        %v4757 = vpack.c.b16 %v4731, %v4730
        %v4758 = vpack.c.b16 %v4733, %v4732
        %v4759 = vpack.c.b16 %v4735, %v4734
        %v4760 = vpack.c.b16 %v4737, %v4736
        %v4761 = vpack.c.b16 %v4739, %v4738
        %v4762 = vpack.c.b16 %v4741, %v4740
        %v4763 = vpack.c.b16 %v4743, %v4742
        %v4764 = vpack.c.b16 %v4745, %v4744
        %v4765 = vpack.c.b16 %v4747, %v4746
        %v4766 = vpack.c.b16 %v4749, %v4748
        %v4767 = vpack.c.b16 %v4751, %v4750
        %v4769 = vsel %vm406, %v4752, 0
        %v4772 = vsel %vm406, %v4753, 0
        %v4775 = vsel %vm406, %v4754, 0
        %v4778 = vsel %vm406, %v4755, 0
        %v4781 = vsel %vm406, %v4756, 0
        %v4784 = vsel %vm406, %v4757, 0
        %v4787 = vsel %vm406, %v4758, 0
        %v4790 = vsel %vm406, %v4759, 0
        %v4793 = vsel %vm406, %v4760, 0
        %v4796 = vsel %vm406, %v4761, 0
        %v4799 = vsel %vm406, %v4762, 0
        %v4802 = vsel %vm406, %v4763, 0
        %v4805 = vsel %vm406, %v4764, 0
        %v4808 = vsel %vm406, %v4765, 0
        %v4811 = vsel %vm406, %v4766, 0
        %v4814 = vsel %vm406, %v4767, 0
        %v4817 = vsel %vm455, %v4719, 0
        %4819 = vmatprep.subr.bf16.mxu0 0
        %4820 = vmatpush1.bf16.msra.mxu0 %v4817
        %4821 = vmatprep.subr.bf16.mxu0 0
        %4822 = vmatpush1.bf16.msra.mxu0 0
        %4823 = vmatprep.subr.bf16.mxu0 0
        %4824 = vmatpush1.bf16.msra.mxu0 0
        %4825 = vmatprep.subr.bf16.mxu0 0
        %4826 = vmatpush1.bf16.msra.mxu0 0
        %4827 = vmatprep.subr.bf16.mxu0 0
        %4828 = vmatpush1.bf16.msra.mxu0 0
        %4829 = vmatprep.subr.bf16.mxu0 0
        %4830 = vmatpush1.bf16.msra.mxu0 0
        %4831 = vmatprep.subr.bf16.mxu0 0
        %4832 = vmatpush1.bf16.msra.mxu0 0
        %4833 = vmatprep.subr.bf16.mxu0 0
        %4834 = vmatpush1.bf16.msra.mxu0 0
        %4835 = vmatprep.subr.bf16.mxu0 0
        %4836 = vmatpush1.bf16.msra.mxu0 0
        %4837 = vmatprep.subr.bf16.mxu0 0
        %4838 = vmatpush1.bf16.msra.mxu0 0
        %4839 = vmatprep.subr.bf16.mxu0 0
        %4840 = vmatpush1.bf16.msra.mxu0 0
        %4841 = vmatprep.subr.bf16.mxu0 0
        %4842 = vmatpush1.bf16.msra.mxu0 0
        %4843 = vmatprep.subr.bf16.mxu0 0
        %4844 = vmatpush1.bf16.msra.mxu0 0
        %4845 = vmatprep.subr.bf16.mxu0 0
        %4846 = vmatpush1.bf16.msra.mxu0 0
        %4847 = vmatprep.subr.bf16.mxu0 0
        %4848 = vmatpush1.bf16.msra.mxu0 0
        %4849 = vmatprep.subr.bf16.mxu0 0
        %4850 = vmatpush1.bf16.msra.mxu0 0
        %4851 = vmatprep.mubr.bf16.mxu0 0
        %4852 = vmatmul.mubr.bf16.gmra.mrb[0].mxu0 %v4769
        %v4853 = vpop.f32.mrb[0].mxu0
        %v4854 = vadd.f32 0.0, %v4853
        %v4855 = vpop.f32.mrb[0].mxu0
        %v4856 = vpop.f32.mrb[0].mxu0
        %v4857 = vadd.f32 0.0, %v4856
        %v4858 = vpop.f32.mrb[0].mxu0
        %4859 = vmatprep.mubr.bf16.mxu0 0
        %4860 = vmatmul.mubr.bf16.gmra.mrb[0].mxu0 %v4772
        %v4861 = vpop.f32.mrb[0].mxu0
        %v4862 = vadd.f32 0.0, %v4861
        %v4863 = vpop.f32.mrb[0].mxu0
        %v4864 = vpop.f32.mrb[0].mxu0
        %v4865 = vadd.f32 0.0, %v4864
        %v4866 = vpop.f32.mrb[0].mxu0
        %4867 = vmatprep.mubr.bf16.mxu0 0
        %4868 = vmatmul.mubr.bf16.gmra.mrb[0].mxu0 %v4775
        %v4869 = vpop.f32.mrb[0].mxu0
        %v4870 = vadd.f32 0.0, %v4869
        %v4871 = vpop.f32.mrb[0].mxu0
        %v4872 = vpop.f32.mrb[0].mxu0
        %v4873 = vadd.f32 0.0, %v4872
        %v4874 = vpop.f32.mrb[0].mxu0
        %4875 = vmatprep.mubr.bf16.mxu0 0
        %4876 = vmatmul.mubr.bf16.gmra.mrb[0].mxu0 %v4778
        %v4877 = vpop.f32.mrb[0].mxu0
        %v4878 = vadd.f32 0.0, %v4877
        %v4879 = vpop.f32.mrb[0].mxu0
        %v4880 = vpop.f32.mrb[0].mxu0
        %v4881 = vadd.f32 0.0, %v4880
        %v4882 = vpop.f32.mrb[0].mxu0
        %4883 = vmatprep.mubr.bf16.mxu0 0
        %4884 = vmatmul.mubr.bf16.gmra.mrb[0].mxu0 %v4781
        %v4885 = vpop.f32.mrb[0].mxu0
        %v4886 = vadd.f32 0.0, %v4885
        %v4887 = vpop.f32.mrb[0].mxu0
        %v4888 = vpop.f32.mrb[0].mxu0
        %v4889 = vadd.f32 0.0, %v4888
        %v4890 = vpop.f32.mrb[0].mxu0
        %4891 = vmatprep.mubr.bf16.mxu0 0
        %4892 = vmatmul.mubr.bf16.gmra.mrb[0].mxu0 %v4784
        %v4893 = vpop.f32.mrb[0].mxu0
        %v4894 = vadd.f32 0.0, %v4893
        %v4895 = vpop.f32.mrb[0].mxu0
        %v4896 = vpop.f32.mrb[0].mxu0
        %v4897 = vadd.f32 0.0, %v4896
        %v4898 = vpop.f32.mrb[0].mxu0
        %4899 = vmatprep.mubr.bf16.mxu0 0
        %4900 = vmatmul.mubr.bf16.gmra.mrb[0].mxu0 %v4787
        %v4901 = vpop.f32.mrb[0].mxu0
        %v4902 = vadd.f32 0.0, %v4901
        %v4903 = vpop.f32.mrb[0].mxu0
        %v4904 = vpop.f32.mrb[0].mxu0
        %v4905 = vadd.f32 0.0, %v4904
        %v4906 = vpop.f32.mrb[0].mxu0
        %4907 = vmatprep.mubr.bf16.mxu0 0
        %4908 = vmatmul.mubr.bf16.gmra.mrb[0].mxu0 %v4790
        %v4909 = vpop.f32.mrb[0].mxu0
        %v4910 = vadd.f32 0.0, %v4909
        %v4911 = vpop.f32.mrb[0].mxu0
        %v4912 = vpop.f32.mrb[0].mxu0
        %v4913 = vadd.f32 0.0, %v4912
        %v4914 = vpop.f32.mrb[0].mxu0
        %4915 = vmatprep.mubr.bf16.mxu0 0
        %4916 = vmatmul.mubr.bf16.gmra.mrb[0].mxu0 %v4793
        %v4917 = vpop.f32.mrb[0].mxu0
        %v4918 = vadd.f32 0.0, %v4917
        %v4919 = vpop.f32.mrb[0].mxu0
        %v4920 = vpop.f32.mrb[0].mxu0
        %v4921 = vadd.f32 0.0, %v4920
        %v4922 = vpop.f32.mrb[0].mxu0
        %4923 = vmatprep.mubr.bf16.mxu0 0
        %4924 = vmatmul.mubr.bf16.gmra.mrb[0].mxu0 %v4796
        %v4925 = vpop.f32.mrb[0].mxu0
        %v4926 = vadd.f32 0.0, %v4925
        %v4927 = vpop.f32.mrb[0].mxu0
        %v4928 = vpop.f32.mrb[0].mxu0
        %v4929 = vadd.f32 0.0, %v4928
        %v4930 = vpop.f32.mrb[0].mxu0
        %4931 = vmatprep.mubr.bf16.mxu0 0
        %4932 = vmatmul.mubr.bf16.gmra.mrb[0].mxu0 %v4799
        %v4933 = vpop.f32.mrb[0].mxu0
        %v4934 = vadd.f32 0.0, %v4933
        %v4935 = vpop.f32.mrb[0].mxu0
        %v4936 = vpop.f32.mrb[0].mxu0
        %v4937 = vadd.f32 0.0, %v4936
        %v4938 = vpop.f32.mrb[0].mxu0
        %4939 = vmatprep.mubr.bf16.mxu0 0
        %4940 = vmatmul.mubr.bf16.gmra.mrb[0].mxu0 %v4802
        %v4941 = vpop.f32.mrb[0].mxu0
        %v4942 = vadd.f32 0.0, %v4941
        %v4943 = vpop.f32.mrb[0].mxu0
        %v4944 = vpop.f32.mrb[0].mxu0
        %v4945 = vadd.f32 0.0, %v4944
        %v4946 = vpop.f32.mrb[0].mxu0
        %4947 = vmatprep.mubr.bf16.mxu0 0
        %4948 = vmatmul.mubr.bf16.gmra.mrb[0].mxu0 %v4805
        %v4949 = vpop.f32.mrb[0].mxu0
        %v4950 = vadd.f32 0.0, %v4949
        %v4951 = vpop.f32.mrb[0].mxu0
        %v4952 = vpop.f32.mrb[0].mxu0
        %v4953 = vadd.f32 0.0, %v4952
        %v4954 = vpop.f32.mrb[0].mxu0
        %4955 = vmatprep.mubr.bf16.mxu0 0
        %4956 = vmatmul.mubr.bf16.gmra.mrb[0].mxu0 %v4808
        %v4957 = vpop.f32.mrb[0].mxu0
        %v4958 = vadd.f32 0.0, %v4957
        %v4959 = vpop.f32.mrb[0].mxu0
        %v4960 = vpop.f32.mrb[0].mxu0
        %v4961 = vadd.f32 0.0, %v4960
        %v4962 = vpop.f32.mrb[0].mxu0
        %4963 = vmatprep.mubr.bf16.mxu0 0
        %4964 = vmatmul.mubr.bf16.gmra.mrb[0].mxu0 %v4811
        %v4965 = vpop.f32.mrb[0].mxu0
        %v4966 = vadd.f32 0.0, %v4965
        %v4967 = vpop.f32.mrb[0].mxu0
        %v4968 = vpop.f32.mrb[0].mxu0
        %v4969 = vadd.f32 0.0, %v4968
        %v4970 = vpop.f32.mrb[0].mxu0
        %4971 = vmatprep.mubr.bf16.mxu0 0
        %4972 = vmatmul.mubr.bf16.gmra.mrb[0].mxu0 %v4814
        %v4973 = vpop.f32.mrb[0].mxu0
        %v4974 = vadd.f32 0.0, %v4973
        %v4975 = vpop.f32.mrb[0].mxu0
        %v4976 = vpop.f32.mrb[0].mxu0
        %v4977 = vadd.f32 0.0, %v4976
        %v4978 = vpop.f32.mrb[0].mxu0
        %4979 = vdwg.mxu0
        %v4980 = vadd.f32 %v4686, %v4854
        %v4981 = vadd.f32 %v4687, %v4857
        %v4982 = vadd.f32 %v4688, %v4862
        %v4983 = vadd.f32 %v4689, %v4865
        %v4984 = vadd.f32 %v4690, %v4870
        %v4985 = vadd.f32 %v4691, %v4873
        %v4986 = vadd.f32 %v4692, %v4878
        %v4987 = vadd.f32 %v4693, %v4881
        %v4988 = vadd.f32 %v4694, %v4886
        %v4989 = vadd.f32 %v4695, %v4889
        %v4990 = vadd.f32 %v4696, %v4894
        %v4991 = vadd.f32 %v4697, %v4897
        %v4992 = vadd.f32 %v4698, %v4902
        %v4993 = vadd.f32 %v4699, %v4905
        %v4994 = vadd.f32 %v4700, %v4910
        %v4995 = vadd.f32 %v4701, %v4913
        %v4996 = vadd.f32 %v4702, %v4918
        %v4997 = vadd.f32 %v4703, %v4921
        %v4998 = vadd.f32 %v4704, %v4926
        %v4999 = vadd.f32 %v4705, %v4929
        %v5000 = vadd.f32 %v4706, %v4934
        %v5001 = vadd.f32 %v4707, %v4937
        %v5002 = vadd.f32 %v4708, %v4942
        %v5003 = vadd.f32 %v4709, %v4945
        %v5004 = vadd.f32 %v4710, %v4950
        %v5005 = vadd.f32 %v4711, %v4953
        %v5006 = vadd.f32 %v4712, %v4958
        %v5007 = vadd.f32 %v4713, %v4961
        %v5008 = vadd.f32 %v4714, %v4966
        %v5009 = vadd.f32 %v4715, %v4969
        %v5010 = vadd.f32 %v4716, %v4974
        %v5011 = vadd.f32 %v4717, %v4977
        %5012 = vst [vmem:[#allocation2] sm:$0xff] %v4980
        %5013 = vst [vmem:[#allocation2 + $0x8] sm:$0xff] %v4981
        %5014 = vst [vmem:[#allocation2 + $0x10] sm:$0xff] %v4982
        %5015 = vst [vmem:[#allocation2 + $0x18] sm:$0xff] %v4983
        %5016 = vst [vmem:[#allocation2 + $0x20] sm:$0xff] %v4984
        %5017 = vst [vmem:[#allocation2 + $0x28] sm:$0xff] %v4985
        %5018 = vst [vmem:[#allocation2 + $0x30] sm:$0xff] %v4986
        %5019 = vst [vmem:[#allocation2 + $0x38] sm:$0xff] %v4987
        %5020 = vst [vmem:[#allocation2 + $0x40] sm:$0xff] %v4988
        %5021 = vst [vmem:[#allocation2 + $0x48] sm:$0xff] %v4989
        %5022 = vst [vmem:[#allocation2 + $0x50] sm:$0xff] %v4990
        %5023 = vst [vmem:[#allocation2 + $0x58] sm:$0xff] %v4991
        %5024 = vst [vmem:[#allocation2 + $0x60] sm:$0xff] %v4992
        %5025 = vst [vmem:[#allocation2 + $0x68] sm:$0xff] %v4993
        %5026 = vst [vmem:[#allocation2 + $0x70] sm:$0xff] %v4994
        %5027 = vst [vmem:[#allocation2 + $0x78] sm:$0xff] %v4995
        %5028 = vst [vmem:[#allocation2 + $0x80] sm:$0xff] %v4996
        %5029 = vst [vmem:[#allocation2 + $0x88] sm:$0xff] %v4997
        %5030 = vst [vmem:[#allocation2 + $0x90] sm:$0xff] %v4998
        %5031 = vst [vmem:[#allocation2 + $0x98] sm:$0xff] %v4999
        %5032 = vst [vmem:[#allocation2 + $0xa0] sm:$0xff] %v5000
        %5033 = vst [vmem:[#allocation2 + $0xa8] sm:$0xff] %v5001
        %5034 = vst [vmem:[#allocation2 + $0xb0] sm:$0xff] %v5002
        %5035 = vst [vmem:[#allocation2 + $0xb8] sm:$0xff] %v5003
        %5036 = vst [vmem:[#allocation2 + $0xc0] sm:$0xff] %v5004
        %5037 = vst [vmem:[#allocation2 + $0xc8] sm:$0xff] %v5005
        %5038 = vst [vmem:[#allocation2 + $0xd0] sm:$0xff] %v5006
        %5039 = vst [vmem:[#allocation2 + $0xd8] sm:$0xff] %v5007
        %5040 = vst [vmem:[#allocation2 + $0xe0] sm:$0xff] %v5008
        %5041 = vst [vmem:[#allocation2 + $0xe8] sm:$0xff] %v5009
        %5042 = vst [vmem:[#allocation2 + $0xf0] sm:$0xff] %v5010
        %5043 = vst [vmem:[#allocation2 + $0xf8] sm:$0xff] %v5011
        %v5044 = vld [vmem:[%s3831] sm:$0xe]
        %v5045 = vld [vmem:[%s3831 + $0x4] sm:$0xf]
        %v5046 = vld [vmem:[%s3831 + $0x8] sm:$0x1]
        %v5047 = vld [vmem:[%s3831 + $0xc] sm:$0xe]
        %v5048 = vld [vmem:[%s3831 + $0x10] sm:$0xf]
        %v5049 = vld [vmem:[%s3831 + $0x14] sm:$0x1]
        %v5050 = vld [vmem:[%s3831 + $0x18] sm:$0xe]
        %v5051 = vld [vmem:[%s3831 + $0x1c] sm:$0xf]
        %v5052 = vld [vmem:[%s3831 + $0x20] sm:$0x1]
        %v5053 = vld [vmem:[%s3831 + $0x24] sm:$0xe]
        %v5054 = vld [vmem:[%s3831 + $0x28] sm:$0xf]
        %v5055 = vld [vmem:[%s3831 + $0x2c] sm:$0x1]
        %v5056 = vld [vmem:[%s3831 + $0x30] sm:$0xe]
        %v5057 = vld [vmem:[%s3831 + $0x34] sm:$0xf]
        %v5058 = vld [vmem:[%s3831 + $0x38] sm:$0x1]
        %v5059 = vld [vmem:[%s3831 + $0x3c] sm:$0xe]
        %v5060 = vld [vmem:[%s3831 + $0x40] sm:$0xf]
        %v5061 = vld [vmem:[%s3831 + $0x44] sm:$0x1]
        %v5062 = vld [vmem:[%s3831 + $0x48] sm:$0xe]
        %v5063 = vld [vmem:[%s3831 + $0x4c] sm:$0xf]
        %v5064 = vld [vmem:[%s3831 + $0x50] sm:$0x1]
        %v5065 = vld [vmem:[%s3831 + $0x54] sm:$0xe]
        %v5066 = vld [vmem:[%s3831 + $0x58] sm:$0xf]
        %v5067 = vld [vmem:[%s3831 + $0x5c] sm:$0x1]
        %v5068 = vld [vmem:[%s3831 + $0x60] sm:$0xe]
        %v5069 = vld [vmem:[%s3831 + $0x64] sm:$0xf]
        %v5070 = vld [vmem:[%s3831 + $0x68] sm:$0x1]
        %v5071 = vld [vmem:[%s3831 + $0x6c] sm:$0xe]
        %v5072 = vld [vmem:[%s3831 + $0x70] sm:$0xf]
        %v5073 = vld [vmem:[%s3831 + $0x74] sm:$0x1]
        %v5074 = vld [vmem:[%s3831 + $0x78] sm:$0xe]
        %v5075 = vld [vmem:[%s3831 + $0x7c] sm:$0xf]
        %v5076 = vld [vmem:[%s3831 + $0x80] sm:$0x1]
        %v5077 = vld [vmem:[%s3831 + $0x84] sm:$0xe]
        %v5078 = vld [vmem:[%s3831 + $0x88] sm:$0xf]
        %v5079 = vld [vmem:[%s3831 + $0x8c] sm:$0x1]
        %v5080 = vld [vmem:[%s3831 + $0x90] sm:$0xe]
        %v5081 = vld [vmem:[%s3831 + $0x94] sm:$0xf]
        %v5082 = vld [vmem:[%s3831 + $0x98] sm:$0x1]
        %v5083 = vld [vmem:[%s3831 + $0x9c] sm:$0xe]
        %v5084 = vld [vmem:[%s3831 + $0xa0] sm:$0xf]
        %v5085 = vld [vmem:[%s3831 + $0xa4] sm:$0x1]
        %v5086 = vld [vmem:[%s3831 + $0xa8] sm:$0xe]
        %v5087 = vld [vmem:[%s3831 + $0xac] sm:$0xf]
        %v5088 = vld [vmem:[%s3831 + $0xb0] sm:$0x1]
        %v5089 = vld [vmem:[%s3831 + $0xb4] sm:$0xe]
        %v5090 = vld [vmem:[%s3831 + $0xb8] sm:$0xf]
        %v5091 = vld [vmem:[%s3831 + $0xbc] sm:$0x1]
        %v5140 = vrot.slane %v5044, 5
        %v5141 = vrot.slane %v5140, 4
        %v5142 = vrot.slane %v5045, 5
        %v5143 = vsel %vm1575, %v5141, %v5142
        %v5144 = vrot.slane %v5142, 4
        %v5145 = vrot.slane %v5046, 5
        %v5146 = vsel %vm1575, %v5144, %v5145
        %v5147 = vrot.slane %v5047, 5
        %v5148 = vrot.slane %v5147, 4
        %v5149 = vrot.slane %v5048, 5
        %v5150 = vsel %vm1575, %v5148, %v5149
        %v5151 = vrot.slane %v5149, 4
        %v5152 = vrot.slane %v5049, 5
        %v5153 = vsel %vm1575, %v5151, %v5152
        %v5154 = vrot.slane %v5050, 5
        %v5155 = vrot.slane %v5154, 4
        %v5156 = vrot.slane %v5051, 5
        %v5157 = vsel %vm1575, %v5155, %v5156
        %v5158 = vrot.slane %v5156, 4
        %v5159 = vrot.slane %v5052, 5
        %v5160 = vsel %vm1575, %v5158, %v5159
        %v5161 = vrot.slane %v5053, 5
        %v5162 = vrot.slane %v5161, 4
        %v5163 = vrot.slane %v5054, 5
        %v5164 = vsel %vm1575, %v5162, %v5163
        %v5165 = vrot.slane %v5163, 4
        %v5166 = vrot.slane %v5055, 5
        %v5167 = vsel %vm1575, %v5165, %v5166
        %v5168 = vrot.slane %v5056, 5
        %v5169 = vrot.slane %v5168, 4
        %v5170 = vrot.slane %v5057, 5
        %v5171 = vsel %vm1575, %v5169, %v5170
        %v5172 = vrot.slane %v5170, 4
        %v5173 = vrot.slane %v5058, 5
        %v5174 = vsel %vm1575, %v5172, %v5173
        %v5175 = vrot.slane %v5059, 5
        %v5176 = vrot.slane %v5175, 4
        %v5177 = vrot.slane %v5060, 5
        %v5178 = vsel %vm1575, %v5176, %v5177
        %v5179 = vrot.slane %v5177, 4
        %v5180 = vrot.slane %v5061, 5
        %v5181 = vsel %vm1575, %v5179, %v5180
        %v5182 = vrot.slane %v5062, 5
        %v5183 = vrot.slane %v5182, 4
        %v5184 = vrot.slane %v5063, 5
        %v5185 = vsel %vm1575, %v5183, %v5184
        %v5186 = vrot.slane %v5184, 4
        %v5187 = vrot.slane %v5064, 5
        %v5188 = vsel %vm1575, %v5186, %v5187
        %v5189 = vrot.slane %v5065, 5
        %v5190 = vrot.slane %v5189, 4
        %v5191 = vrot.slane %v5066, 5
        %v5192 = vsel %vm1575, %v5190, %v5191
        %v5193 = vrot.slane %v5191, 4
        %v5194 = vrot.slane %v5067, 5
        %v5195 = vsel %vm1575, %v5193, %v5194
        %v5196 = vrot.slane %v5068, 5
        %v5197 = vrot.slane %v5196, 4
        %v5198 = vrot.slane %v5069, 5
        %v5199 = vsel %vm1575, %v5197, %v5198
        %v5200 = vrot.slane %v5198, 4
        %v5201 = vrot.slane %v5070, 5
        %v5202 = vsel %vm1575, %v5200, %v5201
        %v5203 = vrot.slane %v5071, 5
        %v5204 = vrot.slane %v5203, 4
        %v5205 = vrot.slane %v5072, 5
        %v5206 = vsel %vm1575, %v5204, %v5205
        %v5207 = vrot.slane %v5205, 4
        %v5208 = vrot.slane %v5073, 5
        %v5209 = vsel %vm1575, %v5207, %v5208
        %v5210 = vrot.slane %v5074, 5
        %v5211 = vrot.slane %v5210, 4
        %v5212 = vrot.slane %v5075, 5
        %v5213 = vsel %vm1575, %v5211, %v5212
        %v5214 = vrot.slane %v5212, 4
        %v5215 = vrot.slane %v5076, 5
        %v5216 = vsel %vm1575, %v5214, %v5215
        %v5217 = vrot.slane %v5077, 5
        %v5218 = vrot.slane %v5217, 4
        %v5219 = vrot.slane %v5078, 5
        %v5220 = vsel %vm1575, %v5218, %v5219
        %v5221 = vrot.slane %v5219, 4
        %v5222 = vrot.slane %v5079, 5
        %v5223 = vsel %vm1575, %v5221, %v5222
        %v5224 = vrot.slane %v5080, 5
        %v5225 = vrot.slane %v5224, 4
        %v5226 = vrot.slane %v5081, 5
        %v5227 = vsel %vm1575, %v5225, %v5226
        %v5228 = vrot.slane %v5226, 4
        %v5229 = vrot.slane %v5082, 5
        %v5230 = vsel %vm1575, %v5228, %v5229
        %v5231 = vrot.slane %v5083, 5
        %v5232 = vrot.slane %v5231, 4
        %v5233 = vrot.slane %v5084, 5
        %v5234 = vsel %vm1575, %v5232, %v5233
        %v5235 = vrot.slane %v5233, 4
        %v5236 = vrot.slane %v5085, 5
        %v5237 = vsel %vm1575, %v5235, %v5236
        %v5238 = vrot.slane %v5086, 5
        %v5239 = vrot.slane %v5238, 4
        %v5240 = vrot.slane %v5087, 5
        %v5241 = vsel %vm1575, %v5239, %v5240
        %v5242 = vrot.slane %v5240, 4
        %v5243 = vrot.slane %v5088, 5
        %v5244 = vsel %vm1575, %v5242, %v5243
        %v5245 = vrot.slane %v5089, 5
        %v5246 = vrot.slane %v5245, 4
        %v5247 = vrot.slane %v5090, 5
        %v5248 = vsel %vm1575, %v5246, %v5247
        %v5249 = vrot.slane %v5247, 4
        %v5250 = vrot.slane %v5091, 5
        %v5251 = vsel %vm1575, %v5249, %v5250
        %v5252 = vld [vmem:[#allocation2] sm:$0xff]
        %v5253 = vld [vmem:[#allocation2 + $0x8] sm:$0xff]
        %v5254 = vld [vmem:[#allocation2 + $0x10] sm:$0xff]
        %v5255 = vld [vmem:[#allocation2 + $0x18] sm:$0xff]
        %v5256 = vld [vmem:[#allocation2 + $0x20] sm:$0xff]
        %v5257 = vld [vmem:[#allocation2 + $0x28] sm:$0xff]
        %v5258 = vld [vmem:[#allocation2 + $0x30] sm:$0xff]
        %v5259 = vld [vmem:[#allocation2 + $0x38] sm:$0xff]
        %v5260 = vld [vmem:[#allocation2 + $0x40] sm:$0xff]
        %v5261 = vld [vmem:[#allocation2 + $0x48] sm:$0xff]
        %v5262 = vld [vmem:[#allocation2 + $0x50] sm:$0xff]
        %v5263 = vld [vmem:[#allocation2 + $0x58] sm:$0xff]
        %v5264 = vld [vmem:[#allocation2 + $0x60] sm:$0xff]
        %v5265 = vld [vmem:[#allocation2 + $0x68] sm:$0xff]
        %v5266 = vld [vmem:[#allocation2 + $0x70] sm:$0xff]
        %v5267 = vld [vmem:[#allocation2 + $0x78] sm:$0xff]
        %v5268 = vld [vmem:[#allocation2 + $0x80] sm:$0xff]
        %v5269 = vld [vmem:[#allocation2 + $0x88] sm:$0xff]
        %v5270 = vld [vmem:[#allocation2 + $0x90] sm:$0xff]
        %v5271 = vld [vmem:[#allocation2 + $0x98] sm:$0xff]
        %v5272 = vld [vmem:[#allocation2 + $0xa0] sm:$0xff]
        %v5273 = vld [vmem:[#allocation2 + $0xa8] sm:$0xff]
        %v5274 = vld [vmem:[#allocation2 + $0xb0] sm:$0xff]
        %v5275 = vld [vmem:[#allocation2 + $0xb8] sm:$0xff]
        %v5276 = vld [vmem:[#allocation2 + $0xc0] sm:$0xff]
        %v5277 = vld [vmem:[#allocation2 + $0xc8] sm:$0xff]
        %v5278 = vld [vmem:[#allocation2 + $0xd0] sm:$0xff]
        %v5279 = vld [vmem:[#allocation2 + $0xd8] sm:$0xff]
        %v5280 = vld [vmem:[#allocation2 + $0xe0] sm:$0xff]
        %v5281 = vld [vmem:[#allocation2 + $0xe8] sm:$0xff]
        %v5282 = vld [vmem:[#allocation2 + $0xf0] sm:$0xff]
        %v5283 = vld [vmem:[#allocation2 + $0xf8] sm:$0xff]
        %s5284 = scalar_lea.vmem %s1, 32
        %v5285 = vld [vmem:[%s5284] sm:$0xf]
        %v5286 = vunpack.c.l.b16 %v5143
        %v5287 = vunpack.c.l.b16 %v5146
        %v5288 = vunpack.c.l.b16 %v5150
        %v5289 = vunpack.c.l.b16 %v5153
        %v5290 = vunpack.c.l.b16 %v5157
        %v5291 = vunpack.c.l.b16 %v5160
        %v5292 = vunpack.c.l.b16 %v5164
        %v5293 = vunpack.c.l.b16 %v5167
        %v5294 = vunpack.c.l.b16 %v5171
        %v5295 = vunpack.c.l.b16 %v5174
        %v5296 = vunpack.c.l.b16 %v5178
        %v5297 = vunpack.c.l.b16 %v5181
        %v5298 = vunpack.c.l.b16 %v5185
        %v5299 = vunpack.c.l.b16 %v5188
        %v5300 = vunpack.c.l.b16 %v5192
        %v5301 = vunpack.c.l.b16 %v5195
        %v5302 = vunpack.c.l.b16 %v5199
        %v5303 = vunpack.c.l.b16 %v5202
        %v5304 = vunpack.c.l.b16 %v5206
        %v5305 = vunpack.c.l.b16 %v5209
        %v5306 = vunpack.c.l.b16 %v5213
        %v5307 = vunpack.c.l.b16 %v5216
        %v5308 = vunpack.c.l.b16 %v5220
        %v5309 = vunpack.c.l.b16 %v5223
        %v5310 = vunpack.c.l.b16 %v5227
        %v5311 = vunpack.c.l.b16 %v5230
        %v5312 = vunpack.c.l.b16 %v5234
        %v5313 = vunpack.c.l.b16 %v5237
        %v5314 = vunpack.c.l.b16 %v5241
        %v5315 = vunpack.c.l.b16 %v5244
        %v5316 = vunpack.c.l.b16 %v5248
        %v5317 = vunpack.c.l.b16 %v5251
        %v5318 = vpack.c.b16 %v5287, %v5286
        %v5319 = vpack.c.b16 %v5289, %v5288
        %v5320 = vpack.c.b16 %v5291, %v5290
        %v5321 = vpack.c.b16 %v5293, %v5292
        %v5322 = vpack.c.b16 %v5295, %v5294
        %v5323 = vpack.c.b16 %v5297, %v5296
        %v5324 = vpack.c.b16 %v5299, %v5298
        %v5325 = vpack.c.b16 %v5301, %v5300
        %v5326 = vpack.c.b16 %v5303, %v5302
        %v5327 = vpack.c.b16 %v5305, %v5304
        %v5328 = vpack.c.b16 %v5307, %v5306
        %v5329 = vpack.c.b16 %v5309, %v5308
        %v5330 = vpack.c.b16 %v5311, %v5310
        %v5331 = vpack.c.b16 %v5313, %v5312
        %v5332 = vpack.c.b16 %v5315, %v5314
        %v5333 = vpack.c.b16 %v5317, %v5316
        %v5335 = vsel %vm406, %v5318, 0
        %v5338 = vsel %vm406, %v5319, 0
        %v5341 = vsel %vm406, %v5320, 0
        %v5344 = vsel %vm406, %v5321, 0
        %v5347 = vsel %vm406, %v5322, 0
        %v5350 = vsel %vm406, %v5323, 0
        %v5353 = vsel %vm406, %v5324, 0
        %v5356 = vsel %vm406, %v5325, 0
        %v5359 = vsel %vm406, %v5326, 0
        %v5362 = vsel %vm406, %v5327, 0
        %v5365 = vsel %vm406, %v5328, 0
        %v5368 = vsel %vm406, %v5329, 0
        %v5371 = vsel %vm406, %v5330, 0
        %v5374 = vsel %vm406, %v5331, 0
        %v5377 = vsel %vm406, %v5332, 0
        %v5380 = vsel %vm406, %v5333, 0
        %v5383 = vsel %vm455, %v5285, 0
        %5385 = vmatprep.subr.bf16.mxu0 0
        %5386 = vmatpush1.bf16.msra.mxu0 %v5383
        %5387 = vmatprep.subr.bf16.mxu0 0
        %5388 = vmatpush1.bf16.msra.mxu0 0
        %5389 = vmatprep.subr.bf16.mxu0 0
        %5390 = vmatpush1.bf16.msra.mxu0 0
        %5391 = vmatprep.subr.bf16.mxu0 0
        %5392 = vmatpush1.bf16.msra.mxu0 0
        %5393 = vmatprep.subr.bf16.mxu0 0
        %5394 = vmatpush1.bf16.msra.mxu0 0
        %5395 = vmatprep.subr.bf16.mxu0 0
        %5396 = vmatpush1.bf16.msra.mxu0 0
        %5397 = vmatprep.subr.bf16.mxu0 0
        %5398 = vmatpush1.bf16.msra.mxu0 0
        %5399 = vmatprep.subr.bf16.mxu0 0
        %5400 = vmatpush1.bf16.msra.mxu0 0
        %5401 = vmatprep.subr.bf16.mxu0 0
        %5402 = vmatpush1.bf16.msra.mxu0 0
        %5403 = vmatprep.subr.bf16.mxu0 0
        %5404 = vmatpush1.bf16.msra.mxu0 0
        %5405 = vmatprep.subr.bf16.mxu0 0
        %5406 = vmatpush1.bf16.msra.mxu0 0
        %5407 = vmatprep.subr.bf16.mxu0 0
        %5408 = vmatpush1.bf16.msra.mxu0 0
        %5409 = vmatprep.subr.bf16.mxu0 0
        %5410 = vmatpush1.bf16.msra.mxu0 0
        %5411 = vmatprep.subr.bf16.mxu0 0
        %5412 = vmatpush1.bf16.msra.mxu0 0
        %5413 = vmatprep.subr.bf16.mxu0 0
        %5414 = vmatpush1.bf16.msra.mxu0 0
        %5415 = vmatprep.subr.bf16.mxu0 0
        %5416 = vmatpush1.bf16.msra.mxu0 0
        %5417 = vmatprep.mubr.bf16.mxu0 0
        %5418 = vmatmul.mubr.bf16.gmra.mrb[0].mxu0 %v5335
        %v5419 = vpop.f32.mrb[0].mxu0
        %v5420 = vadd.f32 0.0, %v5419
        %v5421 = vpop.f32.mrb[0].mxu0
        %v5422 = vpop.f32.mrb[0].mxu0
        %v5423 = vadd.f32 0.0, %v5422
        %v5424 = vpop.f32.mrb[0].mxu0
        %5425 = vmatprep.mubr.bf16.mxu0 0
        %5426 = vmatmul.mubr.bf16.gmra.mrb[0].mxu0 %v5338
        %v5427 = vpop.f32.mrb[0].mxu0
        %v5428 = vadd.f32 0.0, %v5427
        %v5429 = vpop.f32.mrb[0].mxu0
        %v5430 = vpop.f32.mrb[0].mxu0
        %v5431 = vadd.f32 0.0, %v5430
        %v5432 = vpop.f32.mrb[0].mxu0
        %5433 = vmatprep.mubr.bf16.mxu0 0
        %5434 = vmatmul.mubr.bf16.gmra.mrb[0].mxu0 %v5341
        %v5435 = vpop.f32.mrb[0].mxu0
        %v5436 = vadd.f32 0.0, %v5435
        %v5437 = vpop.f32.mrb[0].mxu0
        %v5438 = vpop.f32.mrb[0].mxu0
        %v5439 = vadd.f32 0.0, %v5438
        %v5440 = vpop.f32.mrb[0].mxu0
        %5441 = vmatprep.mubr.bf16.mxu0 0
        %5442 = vmatmul.mubr.bf16.gmra.mrb[0].mxu0 %v5344
        %v5443 = vpop.f32.mrb[0].mxu0
        %v5444 = vadd.f32 0.0, %v5443
        %v5445 = vpop.f32.mrb[0].mxu0
        %v5446 = vpop.f32.mrb[0].mxu0
        %v5447 = vadd.f32 0.0, %v5446
        %v5448 = vpop.f32.mrb[0].mxu0
        %5449 = vmatprep.mubr.bf16.mxu0 0
        %5450 = vmatmul.mubr.bf16.gmra.mrb[0].mxu0 %v5347
        %v5451 = vpop.f32.mrb[0].mxu0
        %v5452 = vadd.f32 0.0, %v5451
        %v5453 = vpop.f32.mrb[0].mxu0
        %v5454 = vpop.f32.mrb[0].mxu0
        %v5455 = vadd.f32 0.0, %v5454
        %v5456 = vpop.f32.mrb[0].mxu0
        %5457 = vmatprep.mubr.bf16.mxu0 0
        %5458 = vmatmul.mubr.bf16.gmra.mrb[0].mxu0 %v5350
        %v5459 = vpop.f32.mrb[0].mxu0
        %v5460 = vadd.f32 0.0, %v5459
        %v5461 = vpop.f32.mrb[0].mxu0
        %v5462 = vpop.f32.mrb[0].mxu0
        %v5463 = vadd.f32 0.0, %v5462
        %v5464 = vpop.f32.mrb[0].mxu0
        %5465 = vmatprep.mubr.bf16.mxu0 0
        %5466 = vmatmul.mubr.bf16.gmra.mrb[0].mxu0 %v5353
        %v5467 = vpop.f32.mrb[0].mxu0
        %v5468 = vadd.f32 0.0, %v5467
        %v5469 = vpop.f32.mrb[0].mxu0
        %v5470 = vpop.f32.mrb[0].mxu0
        %v5471 = vadd.f32 0.0, %v5470
        %v5472 = vpop.f32.mrb[0].mxu0
        %5473 = vmatprep.mubr.bf16.mxu0 0
        %5474 = vmatmul.mubr.bf16.gmra.mrb[0].mxu0 %v5356
        %v5475 = vpop.f32.mrb[0].mxu0
        %v5476 = vadd.f32 0.0, %v5475
        %v5477 = vpop.f32.mrb[0].mxu0
        %v5478 = vpop.f32.mrb[0].mxu0
        %v5479 = vadd.f32 0.0, %v5478
        %v5480 = vpop.f32.mrb[0].mxu0
        %5481 = vmatprep.mubr.bf16.mxu0 0
        %5482 = vmatmul.mubr.bf16.gmra.mrb[0].mxu0 %v5359
        %v5483 = vpop.f32.mrb[0].mxu0
        %v5484 = vadd.f32 0.0, %v5483
        %v5485 = vpop.f32.mrb[0].mxu0
        %v5486 = vpop.f32.mrb[0].mxu0
        %v5487 = vadd.f32 0.0, %v5486
        %v5488 = vpop.f32.mrb[0].mxu0
        %5489 = vmatprep.mubr.bf16.mxu0 0
        %5490 = vmatmul.mubr.bf16.gmra.mrb[0].mxu0 %v5362
        %v5491 = vpop.f32.mrb[0].mxu0
        %v5492 = vadd.f32 0.0, %v5491
        %v5493 = vpop.f32.mrb[0].mxu0
        %v5494 = vpop.f32.mrb[0].mxu0
        %v5495 = vadd.f32 0.0, %v5494
        %v5496 = vpop.f32.mrb[0].mxu0
        %5497 = vmatprep.mubr.bf16.mxu0 0
        %5498 = vmatmul.mubr.bf16.gmra.mrb[0].mxu0 %v5365
        %v5499 = vpop.f32.mrb[0].mxu0
        %v5500 = vadd.f32 0.0, %v5499
        %v5501 = vpop.f32.mrb[0].mxu0
        %v5502 = vpop.f32.mrb[0].mxu0
        %v5503 = vadd.f32 0.0, %v5502
        %v5504 = vpop.f32.mrb[0].mxu0
        %5505 = vmatprep.mubr.bf16.mxu0 0
        %5506 = vmatmul.mubr.bf16.gmra.mrb[0].mxu0 %v5368
        %v5507 = vpop.f32.mrb[0].mxu0
        %v5508 = vadd.f32 0.0, %v5507
        %v5509 = vpop.f32.mrb[0].mxu0
        %v5510 = vpop.f32.mrb[0].mxu0
        %v5511 = vadd.f32 0.0, %v5510
        %v5512 = vpop.f32.mrb[0].mxu0
        %5513 = vmatprep.mubr.bf16.mxu0 0
        %5514 = vmatmul.mubr.bf16.gmra.mrb[0].mxu0 %v5371
        %v5515 = vpop.f32.mrb[0].mxu0
        %v5516 = vadd.f32 0.0, %v5515
        %v5517 = vpop.f32.mrb[0].mxu0
        %v5518 = vpop.f32.mrb[0].mxu0
        %v5519 = vadd.f32 0.0, %v5518
        %v5520 = vpop.f32.mrb[0].mxu0
        %5521 = vmatprep.mubr.bf16.mxu0 0
        %5522 = vmatmul.mubr.bf16.gmra.mrb[0].mxu0 %v5374
        %v5523 = vpop.f32.mrb[0].mxu0
        %v5524 = vadd.f32 0.0, %v5523
        %v5525 = vpop.f32.mrb[0].mxu0
        %v5526 = vpop.f32.mrb[0].mxu0
        %v5527 = vadd.f32 0.0, %v5526
        %v5528 = vpop.f32.mrb[0].mxu0
        %5529 = vmatprep.mubr.bf16.mxu0 0
        %5530 = vmatmul.mubr.bf16.gmra.mrb[0].mxu0 %v5377
        %v5531 = vpop.f32.mrb[0].mxu0
        %v5532 = vadd.f32 0.0, %v5531
        %v5533 = vpop.f32.mrb[0].mxu0
        %v5534 = vpop.f32.mrb[0].mxu0
        %v5535 = vadd.f32 0.0, %v5534
        %v5536 = vpop.f32.mrb[0].mxu0
        %5537 = vmatprep.mubr.bf16.mxu0 0
        %5538 = vmatmul.mubr.bf16.gmra.mrb[0].mxu0 %v5380
        %v5539 = vpop.f32.mrb[0].mxu0
        %v5540 = vadd.f32 0.0, %v5539
        %v5541 = vpop.f32.mrb[0].mxu0
        %v5542 = vpop.f32.mrb[0].mxu0
        %v5543 = vadd.f32 0.0, %v5542
        %v5544 = vpop.f32.mrb[0].mxu0
        %5545 = vdwg.mxu0
        %v5546 = vadd.f32 %v5252, %v5420
        %v5547 = vadd.f32 %v5253, %v5423
        %v5548 = vadd.f32 %v5254, %v5428
        %v5549 = vadd.f32 %v5255, %v5431
        %v5550 = vadd.f32 %v5256, %v5436
        %v5551 = vadd.f32 %v5257, %v5439
        %v5552 = vadd.f32 %v5258, %v5444
        %v5553 = vadd.f32 %v5259, %v5447
        %v5554 = vadd.f32 %v5260, %v5452
        %v5555 = vadd.f32 %v5261, %v5455
        %v5556 = vadd.f32 %v5262, %v5460
        %v5557 = vadd.f32 %v5263, %v5463
        %v5558 = vadd.f32 %v5264, %v5468
        %v5559 = vadd.f32 %v5265, %v5471
        %v5560 = vadd.f32 %v5266, %v5476
        %v5561 = vadd.f32 %v5267, %v5479
        %v5562 = vadd.f32 %v5268, %v5484
        %v5563 = vadd.f32 %v5269, %v5487
        %v5564 = vadd.f32 %v5270, %v5492
        %v5565 = vadd.f32 %v5271, %v5495
        %v5566 = vadd.f32 %v5272, %v5500
        %v5567 = vadd.f32 %v5273, %v5503
        %v5568 = vadd.f32 %v5274, %v5508
        %v5569 = vadd.f32 %v5275, %v5511
        %v5570 = vadd.f32 %v5276, %v5516
        %v5571 = vadd.f32 %v5277, %v5519
        %v5572 = vadd.f32 %v5278, %v5524
        %v5573 = vadd.f32 %v5279, %v5527
        %v5574 = vadd.f32 %v5280, %v5532
        %v5575 = vadd.f32 %v5281, %v5535
        %v5576 = vadd.f32 %v5282, %v5540
        %v5577 = vadd.f32 %v5283, %v5543
        %5578 = vst [vmem:[#allocation2] sm:$0xff] %v5546
        %5579 = vst [vmem:[#allocation2 + $0x8] sm:$0xff] %v5547
        %5580 = vst [vmem:[#allocation2 + $0x10] sm:$0xff] %v5548
        %5581 = vst [vmem:[#allocation2 + $0x18] sm:$0xff] %v5549
        %5582 = vst [vmem:[#allocation2 + $0x20] sm:$0xff] %v5550
        %5583 = vst [vmem:[#allocation2 + $0x28] sm:$0xff] %v5551
        %5584 = vst [vmem:[#allocation2 + $0x30] sm:$0xff] %v5552
        %5585 = vst [vmem:[#allocation2 + $0x38] sm:$0xff] %v5553
        %5586 = vst [vmem:[#allocation2 + $0x40] sm:$0xff] %v5554
        %5587 = vst [vmem:[#allocation2 + $0x48] sm:$0xff] %v5555
        %5588 = vst [vmem:[#allocation2 + $0x50] sm:$0xff] %v5556
        %5589 = vst [vmem:[#allocation2 + $0x58] sm:$0xff] %v5557
        %5590 = vst [vmem:[#allocation2 + $0x60] sm:$0xff] %v5558
        %5591 = vst [vmem:[#allocation2 + $0x68] sm:$0xff] %v5559
        %5592 = vst [vmem:[#allocation2 + $0x70] sm:$0xff] %v5560
        %5593 = vst [vmem:[#allocation2 + $0x78] sm:$0xff] %v5561
        %5594 = vst [vmem:[#allocation2 + $0x80] sm:$0xff] %v5562
        %5595 = vst [vmem:[#allocation2 + $0x88] sm:$0xff] %v5563
        %5596 = vst [vmem:[#allocation2 + $0x90] sm:$0xff] %v5564
        %5597 = vst [vmem:[#allocation2 + $0x98] sm:$0xff] %v5565
        %5598 = vst [vmem:[#allocation2 + $0xa0] sm:$0xff] %v5566
        %5599 = vst [vmem:[#allocation2 + $0xa8] sm:$0xff] %v5567
        %5600 = vst [vmem:[#allocation2 + $0xb0] sm:$0xff] %v5568
        %5601 = vst [vmem:[#allocation2 + $0xb8] sm:$0xff] %v5569
        %5602 = vst [vmem:[#allocation2 + $0xc0] sm:$0xff] %v5570
        %5603 = vst [vmem:[#allocation2 + $0xc8] sm:$0xff] %v5571
        %5604 = vst [vmem:[#allocation2 + $0xd0] sm:$0xff] %v5572
        %5605 = vst [vmem:[#allocation2 + $0xd8] sm:$0xff] %v5573
        %5606 = vst [vmem:[#allocation2 + $0xe0] sm:$0xff] %v5574
        %5607 = vst [vmem:[#allocation2 + $0xe8] sm:$0xff] %v5575
        %5608 = vst [vmem:[#allocation2 + $0xf0] sm:$0xff] %v5576
        %5609 = vst [vmem:[#allocation2 + $0xf8] sm:$0xff] %v5577
        %v5610 = vld [vmem:[#allocation2] sm:$0xff]
        %v5611 = vld [vmem:[#allocation2 + $0x8] sm:$0xff]
        %v5612 = vld [vmem:[#allocation2 + $0x10] sm:$0xff]
        %v5613 = vld [vmem:[#allocation2 + $0x18] sm:$0xff]
        %v5614 = vld [vmem:[#allocation2 + $0x20] sm:$0xff]
        %v5615 = vld [vmem:[#allocation2 + $0x28] sm:$0xff]
        %v5616 = vld [vmem:[#allocation2 + $0x30] sm:$0xff]
        %v5617 = vld [vmem:[#allocation2 + $0x38] sm:$0xff]
        %v5618 = vld [vmem:[#allocation2 + $0x40] sm:$0xff]
        %v5619 = vld [vmem:[#allocation2 + $0x48] sm:$0xff]
        %v5620 = vld [vmem:[#allocation2 + $0x50] sm:$0xff]
        %v5621 = vld [vmem:[#allocation2 + $0x58] sm:$0xff]
        %v5622 = vld [vmem:[#allocation2 + $0x60] sm:$0xff]
        %v5623 = vld [vmem:[#allocation2 + $0x68] sm:$0xff]
        %v5624 = vld [vmem:[#allocation2 + $0x70] sm:$0xff]
        %v5625 = vld [vmem:[#allocation2 + $0x78] sm:$0xff]
        %v5626 = vld [vmem:[#allocation2 + $0x80] sm:$0xff]
        %v5627 = vld [vmem:[#allocation2 + $0x88] sm:$0xff]
        %v5628 = vld [vmem:[#allocation2 + $0x90] sm:$0xff]
        %v5629 = vld [vmem:[#allocation2 + $0x98] sm:$0xff]
        %v5630 = vld [vmem:[#allocation2 + $0xa0] sm:$0xff]
        %v5631 = vld [vmem:[#allocation2 + $0xa8] sm:$0xff]
        %v5632 = vld [vmem:[#allocation2 + $0xb0] sm:$0xff]
        %v5633 = vld [vmem:[#allocation2 + $0xb8] sm:$0xff]
        %v5634 = vld [vmem:[#allocation2 + $0xc0] sm:$0xff]
        %v5635 = vld [vmem:[#allocation2 + $0xc8] sm:$0xff]
        %v5636 = vld [vmem:[#allocation2 + $0xd0] sm:$0xff]
        %v5637 = vld [vmem:[#allocation2 + $0xd8] sm:$0xff]
        %v5638 = vld [vmem:[#allocation2 + $0xe0] sm:$0xff]
        %v5639 = vld [vmem:[#allocation2 + $0xe8] sm:$0xff]
        %v5640 = vld [vmem:[#allocation2 + $0xf0] sm:$0xff]
        %v5641 = vld [vmem:[#allocation2 + $0xf8] sm:$0xff]
        %v5642 = vld [vmem:[%s2] sm:$0x1]
        %v5644 = vlaneseq
        %v5645 = vshrl.u32 %v5644, 7
        %v5646 = vsub.s32 0, %v5645
        %v5647 = vrot.slane %v5642, %v5646
        %v5649 = vadd.f32 %v5610, %v5647
        %v5650 = vadd.f32 %v5611, %v5647
        %v5651 = vadd.f32 %v5612, %v5647
        %v5652 = vadd.f32 %v5613, %v5647
        %v5653 = vadd.f32 %v5614, %v5647
        %v5654 = vadd.f32 %v5615, %v5647
        %v5655 = vadd.f32 %v5616, %v5647
        %v5656 = vadd.f32 %v5617, %v5647
        %v5657 = vadd.f32 %v5618, %v5647
        %v5658 = vadd.f32 %v5619, %v5647
        %v5659 = vadd.f32 %v5620, %v5647
        %v5660 = vadd.f32 %v5621, %v5647
        %v5661 = vadd.f32 %v5622, %v5647
        %v5662 = vadd.f32 %v5623, %v5647
        %v5663 = vadd.f32 %v5624, %v5647
        %v5664 = vadd.f32 %v5625, %v5647
        %v5665 = vadd.f32 %v5626, %v5647
        %v5666 = vadd.f32 %v5627, %v5647
        %v5667 = vadd.f32 %v5628, %v5647
        %v5668 = vadd.f32 %v5629, %v5647
        %v5669 = vadd.f32 %v5630, %v5647
        %v5670 = vadd.f32 %v5631, %v5647
        %v5671 = vadd.f32 %v5632, %v5647
        %v5672 = vadd.f32 %v5633, %v5647
        %v5673 = vadd.f32 %v5634, %v5647
        %v5674 = vadd.f32 %v5635, %v5647
        %v5675 = vadd.f32 %v5636, %v5647
        %v5676 = vadd.f32 %v5637, %v5647
        %v5677 = vadd.f32 %v5638, %v5647
        %v5678 = vadd.f32 %v5639, %v5647
        %v5679 = vadd.f32 %v5640, %v5647
        %v5680 = vadd.f32 %v5641, %v5647
        %5681 = vst [vmem:[%s210] sm:$0xff] %v5649
        %5682 = vst [vmem:[%s210 + $0x8] sm:$0xff] %v5650
        %5683 = vst [vmem:[%s210 + $0x10] sm:$0xff] %v5651
        %5684 = vst [vmem:[%s210 + $0x18] sm:$0xff] %v5652
        %5685 = vst [vmem:[%s210 + $0x20] sm:$0xff] %v5653
        %5686 = vst [vmem:[%s210 + $0x28] sm:$0xff] %v5654
        %5687 = vst [vmem:[%s210 + $0x30] sm:$0xff] %v5655
        %5688 = vst [vmem:[%s210 + $0x38] sm:$0xff] %v5656
        %5689 = vst [vmem:[%s210 + $0x40] sm:$0xff] %v5657
        %5690 = vst [vmem:[%s210 + $0x48] sm:$0xff] %v5658
        %5691 = vst [vmem:[%s210 + $0x50] sm:$0xff] %v5659
        %5692 = vst [vmem:[%s210 + $0x58] sm:$0xff] %v5660
        %5693 = vst [vmem:[%s210 + $0x60] sm:$0xff] %v5661
        %5694 = vst [vmem:[%s210 + $0x68] sm:$0xff] %v5662
        %5695 = vst [vmem:[%s210 + $0x70] sm:$0xff] %v5663
        %5696 = vst [vmem:[%s210 + $0x78] sm:$0xff] %v5664
        %5697 = vst [vmem:[%s210 + $0x80] sm:$0xff] %v5665
        %5698 = vst [vmem:[%s210 + $0x88] sm:$0xff] %v5666
        %5699 = vst [vmem:[%s210 + $0x90] sm:$0xff] %v5667
        %5700 = vst [vmem:[%s210 + $0x98] sm:$0xff] %v5668
        %5701 = vst [vmem:[%s210 + $0xa0] sm:$0xff] %v5669
        %5702 = vst [vmem:[%s210 + $0xa8] sm:$0xff] %v5670
        %5703 = vst [vmem:[%s210 + $0xb0] sm:$0xff] %v5671
        %5704 = vst [vmem:[%s210 + $0xb8] sm:$0xff] %v5672
        %5705 = vst [vmem:[%s210 + $0xc0] sm:$0xff] %v5673
        %5706 = vst [vmem:[%s210 + $0xc8] sm:$0xff] %v5674
        %5707 = vst [vmem:[%s210 + $0xd0] sm:$0xff] %v5675
        %5708 = vst [vmem:[%s210 + $0xd8] sm:$0xff] %v5676
        %5709 = vst [vmem:[%s210 + $0xe0] sm:$0xff] %v5677
        %5710 = vst [vmem:[%s210 + $0xe8] sm:$0xff] %v5678
        %5711 = vst [vmem:[%s210 + $0xf0] sm:$0xff] %v5679
        %5712 = vst [vmem:[%s210 + $0xf8] sm:$0xff] %v5680
        %v5713 = vadd.f32 %v5649, %v5650
        %v5714 = vadd.f32 %v5713, %v5651
        %v5715 = vadd.f32 %v5714, %v5652
        %v5716 = vadd.f32 %v5715, %v5653
        %v5717 = vadd.f32 %v5716, %v5654
        %v5718 = vadd.f32 %v5717, %v5655
        %v5719 = vadd.f32 %v5718, %v5656
        %v5720 = vadd.f32 %v5719, %v5657
        %v5721 = vadd.f32 %v5720, %v5658
        %v5722 = vadd.f32 %v5721, %v5659
        %v5723 = vadd.f32 %v5722, %v5660
        %v5724 = vadd.f32 %v5723, %v5661
        %v5725 = vadd.f32 %v5724, %v5662
        %v5726 = vadd.f32 %v5725, %v5663
        %v5727 = vadd.f32 %v5726, %v5664
        %v5728 = vadd.f32 %v5727, %v5665
        %v5729 = vadd.f32 %v5728, %v5666
        %v5730 = vadd.f32 %v5729, %v5667
        %v5731 = vadd.f32 %v5730, %v5668
        %v5732 = vadd.f32 %v5731, %v5669
        %v5733 = vadd.f32 %v5732, %v5670
        %v5734 = vadd.f32 %v5733, %v5671
        %v5735 = vadd.f32 %v5734, %v5672
        %v5736 = vadd.f32 %v5735, %v5673
        %v5737 = vadd.f32 %v5736, %v5674
        %v5738 = vadd.f32 %v5737, %v5675
        %v5739 = vadd.f32 %v5738, %v5676
        %v5740 = vadd.f32 %v5739, %v5677
        %v5741 = vadd.f32 %v5740, %v5678
        %v5742 = vadd.f32 %v5741, %v5679
        %v5743 = vadd.f32 %v5742, %v5680
        %v5744 = vrot.slane %v5743, 4
        %v5745 = vadd.f32 %v5743, %v5744
        %v5746 = vrot.slane %v5745, 2
        %v5747 = vadd.f32 %v5745, %v5746
        %v5748 = vrot.slane %v5747, 1
        %v5749 = vadd.f32 %v5747, %v5748
        %v5750 = vmul.f32 %v5649, %v5649
        %v5751 = vmul.f32 %v5650, %v5650
        %v5752 = vmul.f32 %v5651, %v5651
        %v5753 = vmul.f32 %v5652, %v5652
        %v5754 = vmul.f32 %v5653, %v5653
        %v5755 = vmul.f32 %v5654, %v5654
        %v5756 = vmul.f32 %v5655, %v5655
        %v5757 = vmul.f32 %v5656, %v5656
        %v5758 = vmul.f32 %v5657, %v5657
        %v5759 = vmul.f32 %v5658, %v5658
        %v5760 = vmul.f32 %v5659, %v5659
        %v5761 = vmul.f32 %v5660, %v5660
        %v5762 = vmul.f32 %v5661, %v5661
        %v5763 = vmul.f32 %v5662, %v5662
        %v5764 = vmul.f32 %v5663, %v5663
        %v5765 = vmul.f32 %v5664, %v5664
        %v5766 = vmul.f32 %v5665, %v5665
        %v5767 = vmul.f32 %v5666, %v5666
        %v5768 = vmul.f32 %v5667, %v5667
        %v5769 = vmul.f32 %v5668, %v5668
        %v5770 = vmul.f32 %v5669, %v5669
        %v5771 = vmul.f32 %v5670, %v5670
        %v5772 = vmul.f32 %v5671, %v5671
        %v5773 = vmul.f32 %v5672, %v5672
        %v5774 = vmul.f32 %v5673, %v5673
        %v5775 = vmul.f32 %v5674, %v5674
        %v5776 = vmul.f32 %v5675, %v5675
        %v5777 = vmul.f32 %v5676, %v5676
        %v5778 = vmul.f32 %v5677, %v5677
        %v5779 = vmul.f32 %v5678, %v5678
        %v5780 = vmul.f32 %v5679, %v5679
        %v5781 = vmul.f32 %v5680, %v5680
        %v5782 = vadd.f32 %v5750, %v5751
        %v5783 = vadd.f32 %v5782, %v5752
        %v5784 = vadd.f32 %v5783, %v5753
        %v5785 = vadd.f32 %v5784, %v5754
        %v5786 = vadd.f32 %v5785, %v5755
        %v5787 = vadd.f32 %v5786, %v5756
        %v5788 = vadd.f32 %v5787, %v5757
        %v5789 = vadd.f32 %v5788, %v5758
        %v5790 = vadd.f32 %v5789, %v5759
        %v5791 = vadd.f32 %v5790, %v5760
        %v5792 = vadd.f32 %v5791, %v5761
        %v5793 = vadd.f32 %v5792, %v5762
        %v5794 = vadd.f32 %v5793, %v5763
        %v5795 = vadd.f32 %v5794, %v5764
        %v5796 = vadd.f32 %v5795, %v5765
        %v5797 = vadd.f32 %v5796, %v5766
        %v5798 = vadd.f32 %v5797, %v5767
        %v5799 = vadd.f32 %v5798, %v5768
        %v5800 = vadd.f32 %v5799, %v5769
        %v5801 = vadd.f32 %v5800, %v5770
        %v5802 = vadd.f32 %v5801, %v5771
        %v5803 = vadd.f32 %v5802, %v5772
        %v5804 = vadd.f32 %v5803, %v5773
        %v5805 = vadd.f32 %v5804, %v5774
        %v5806 = vadd.f32 %v5805, %v5775
        %v5807 = vadd.f32 %v5806, %v5776
        %v5808 = vadd.f32 %v5807, %v5777
        %v5809 = vadd.f32 %v5808, %v5778
        %v5810 = vadd.f32 %v5809, %v5779
        %v5811 = vadd.f32 %v5810, %v5780
        %v5812 = vadd.f32 %v5811, %v5781
        %v5813 = vrot.slane %v5812, 4
        %v5814 = vadd.f32 %v5812, %v5813
        %v5815 = vrot.slane %v5814, 2
        %v5816 = vadd.f32 %v5814, %v5815
        %v5817 = vrot.slane %v5816, 1
        %v5818 = vadd.f32 %v5816, %v5817
        %vm5819 = vcmask 1040384
        %v5820 = vsel %vm5819, %v5749, %v5818
        %5821 = vst [vmem:[%s217] sm:$0x3] %v5820
        %s5822 = sand.u32 %s112, 1
        %s5823 = scalar_lea.sflag [#allocation4], %s5822
        %s5824 = sand.u32 %s112, 1
        %s5825 = smul.addr %s5824, 256
        %s5826 = scalar_lea.vmem [#allocation3], %s5825
        %s5827 = sand.u32 %s140, 1
        %s5828 = scalar_lea.sflag [#allocation6], %s5827
        %s5829 = sand.u32 %s140, 1
        %s5830 = smul.addr %s5829, 2
        %s5831 = scalar_lea.vmem [#allocation5], %s5830
        // Predicated region
        $region33: #{tpu_custom_call.1} parent=31 // pred_check
          %p5832 = pneg %p122
        $region34: #{tpu_custom_call.1} parent=31 // pred_check_branch
          %5834 = sbr.rel (%p5832) target = $region36
        $region35: #{tpu_custom_call.1} parent=31 // pred_region
          %s5835 = smul.u32 16, %s27
          %s5837 = ssub.s32 4096, 4096
          %5838 = vsyncadd %s5823, %s5837
          %s5839 = smul.addr %s5835, 2
          %s5840 = smul.addr %s26, 32
          %s5841 = sadd.s32 %s5839, %s5840
          %s5842 = smul.addr %s5841, 128
          %s5843 = scalar_lea.hbm %s3, %s5842
          %s5844 = sshll.u32 %s5826, 4
          %s5845 = int_to_ptr.vmem [resolvable:$true] %s5844
          %5850 = dma.vmem_to_hbm [thread:$0]  %s5845, 4096, %s5843, %s5823, 128, 128, 8
        $region36: #{tpu_custom_call.1} parent=31 // pred_fallthru
          _
        // Predicated region
        $region37: #{tpu_custom_call.1} parent=31 // pred_check
          %p5851 = pneg %p150
        $region38: #{tpu_custom_call.1} parent=31 // pred_check_branch
          %5853 = sbr.rel (%p5851) target = $region40
        $region39: #{tpu_custom_call.1} parent=31 // pred_region
          %s5855 = ssub.s32 32, 32
          %5856 = vsyncadd %s5828, %s5855
          %s5857 = sadd.s32 %s27, %s26
          %s5858 = smul.addr %s5857, 32
          %s5859 = scalar_lea.hbm %s4, %s5858
          %s5861 = sshll.u32 %s5831, 4
          %s5862 = int_to_ptr.vmem [resolvable:$true] %s5861
          %5864 = dma.vmem_to_hbm [thread:$0]  %s5862, 32, %s5859, %s5828
        $region40: #{tpu_custom_call.1} parent=31 // pred_fallthru
          _
      $region32: #{tpu_custom_call.1} parent=5 // pred_fallthru
        _
      %p5865 = scmp.le.s32.totalorder 2, %s17
      // Predicated region
      $region41: #{tpu_custom_call.1} parent=5 // pred_check
        %p5866 = pneg %p5865
      $region42: #{tpu_custom_call.1} parent=5 // pred_check_branch
        %5868 = sbr.rel (%p5866) target = $region44
      $region43: #{tpu_custom_call.1} parent=5 // pred_region
        %s5869 = ssub.s32 %s17, 2
        // Predicated region
        $region45: #{tpu_custom_call.1} parent=43 // pred_check
          %p5870 = pneg %p128
        $region46: #{tpu_custom_call.1} parent=43 // pred_check_branch
          %5872 = sbr.rel (%p5870) target = $region48
        $region47: #{tpu_custom_call.1} parent=43 // pred_region
          %s5873 = sand.u32 %s113, 1
          %s5874 = scalar_lea.sflag [#allocation4], %s5873
          %s5875 = sand.u32 %s113, 1
          %s5876 = smul.addr %s5875, 256
          %s5877 = scalar_lea.vmem [#allocation3], %s5876
          %5878 = dma.done %s5874, 4096
        $region48: #{tpu_custom_call.1} parent=43 // pred_fallthru
          _
        // Predicated region
        $region49: #{tpu_custom_call.1} parent=43 // pred_check
          %p5879 = pneg %p156
        $region50: #{tpu_custom_call.1} parent=43 // pred_check_branch
          %5881 = sbr.rel (%p5879) target = $region52
        $region51: #{tpu_custom_call.1} parent=43 // pred_region
          %s5882 = sand.u32 %s141, 1
          %s5883 = scalar_lea.sflag [#allocation6], %s5882
          %s5884 = sand.u32 %s141, 1
          %s5885 = smul.addr %s5884, 2
          %s5886 = scalar_lea.vmem [#allocation5], %s5885
          %5887 = dma.done %s5883, 32
        $region52: #{tpu_custom_call.1} parent=43 // pred_fallthru
          _
      $region44: #{tpu_custom_call.1} parent=5 // pred_fallthru
        _
    $region6: #{tpu_custom_call.1} parent=1 // loop_footer
      %s21 = sadd.s32 1, %s17
    $region7: #{tpu_custom_call.1} parent=1 // loop_footer_branch
      %16 = sbr.rel target = $region3
    $region8: #{tpu_custom_call.1} parent=1 // loop_exit
      _
    %5888 = vsyncpa [#allocation4], 1
    %s5889 = scalar_lea.sflag [#allocation4], 1
    %5890 = vsyncpa %s5889, 1
    %5891 = vsyncpa [#allocation6], 1
    %s5892 = scalar_lea.sflag [#allocation6], 1
    %5893 = vsyncpa %s5892, 1

</llo_original>
